<compile_context>
chip_gen: v6e
topology: v6e:2x2x1
jax: 0.10.0
libtpu: 0.0.40
codegen_flags: <defaults>
</compile_context>

<pallas_src>
import functools

import jax
import jax.numpy as jnp
from jax.experimental import pallas as pl
from jax.experimental.pallas import tpu as pltpu


_COMPILER_PARAMS = pltpu.CompilerParams(
    dimension_semantics=("arbitrary",),
    vmem_limit_bytes=16 * 1024 * 1024,
)


# ----------------------------------------------------------------------------
# In-kernel helpers
# ----------------------------------------------------------------------------
def _fill_row_patch(dst_ref, a):
    """Fill the row-patch scratch for a 3x3 / stride-1 conv.

    dst_ref : VMEM scratch [N, H+2, W, 3*C]
    a       : activation   [N, H,   W,   C] (bf16)

    Channel group dx of padded row p holds a_padded[:, p, x+dx, :] for
    x in [0, W).  Only the 1-row top/bottom halo is zeroed; the interior is
    written once (the left/right halo is folded into the channel shifts).
    """
    n, h, w, c = a.shape
    zcol = jnp.zeros((n, h, 1, c), a.dtype)
    left = jnp.concatenate([zcol, a[:, :, :w - 1, :]], axis=2)    # a_pad[x + 0]
    right = jnp.concatenate([a[:, :, 1:, :], zcol], axis=2)       # a_pad[x + 2]
    dst_ref[:, 1:h + 1, :, :] = jnp.concatenate([left, a, right], axis=-1)
    zrow = jnp.zeros((n, 1, w, 3 * c), a.dtype)
    dst_ref[:, 0:1, :, :] = zrow
    dst_ref[:, h + 1:h + 2, :, :] = zrow


# ----------------------------------------------------------------------------
# Kernels
# ----------------------------------------------------------------------------
def _preact_block_s1_kernel(*refs, n, h, w, cin, planes, has_proj):
    """Whole stride-1 PreActBlock.  Grid axis k in [0, 6):
         k = 0..2 : conv1 row-tap k   (w1 row blocks streamed by BlockSpec)
         k = 3..5 : conv2 row-tap k-3 (w2 row blocks streamed by BlockSpec)
       BN1+ReLU + shortcut at k==0, BN2+ReLU at k==3, final store at k==5."""
    if has_proj:
        (x_ref, s1_ref, b1_ref, w1_ref, s2_ref, b2_ref, w2_ref, wsc_ref,
         o_ref, xs1_ref, xs2_ref, acc1_ref, acc2_ref) = refs
    else:
        (x_ref, s1_ref, b1_ref, w1_ref, s2_ref, b2_ref, w2_ref,
         o_ref, xs1_ref, xs2_ref, acc1_ref, acc2_ref) = refs
        wsc_ref = None
    k = pl.program_id(0)
    m = n * h * w

    @pl.when(k == 0)
    def _init():
        xf = x_ref[...].astype(jnp.float32)                        # (m, cin)
        a1 = jnp.maximum(xf * s1_ref[...] + b1_ref[...], 0.0)      # BN1 + ReLU
        a1b = a1.astype(jnp.bfloat16)
        _fill_row_patch(xs1_ref, a1b.reshape(n, h, w, cin))
        acc1_ref[...] = jnp.zeros_like(acc1_ref)
        if has_proj:   # 1x1 projection of the PRE-ACTIVATED input
            acc2_ref[...] = jnp.dot(a1b, wsc_ref[...],
                                    preferred_element_type=jnp.float32)
        else:          # identity shortcut = original input
            acc2_ref[...] = xf

    @pl.when(k < 3)
    def _conv1_row():
        xrow = xs1_ref[:, pl.ds(k, h), :, :]                       # (n, h, w, 3*cin)
        acc1_ref[...] += jnp.dot(xrow.reshape(m, 3 * cin), w1_ref[...],
                                 preferred_element_type=jnp.float32)

    @pl.when(k == 3)
    def _mid():
        a2 = jnp.maximum(acc1_ref[...] * s2_ref[...] + b2_ref[...], 0.0)
        _fill_row_patch(xs2_ref,
                        a2.astype(jnp.bfloat16).reshape(n, h, w, planes))

    @pl.when(k >= 3)
    def _conv2_row():
        xrow = xs2_ref[:, pl.ds(k - 3, h), :, :]                   # (n, h, w, 3*planes)
        acc2_ref[...] += jnp.dot(xrow.reshape(m, 3 * planes), w2_ref[...],
                                 preferred_element_type=jnp.float32)

    @pl.when(k == 5)
    def _store():
        o_ref[...] = acc2_ref[...].astype(o_ref.dtype)


def _preact_block_s2_kernel(p_ref, w1_ref, s2_ref, b2_ref, w2_ref, wsc_ref,
                            o_ref, xs2_ref, acc1_ref, acc2_ref,
                            *, n, ho, wo, cin, planes):
    """Stride-2 PreActBlock.  conv1 consumes pre-gathered stride-2 row patches
    (streamed per row-tap); conv2 runs on an in-VMEM row-patch scratch.
    Grid k in [0, 6): k=0..2 conv1 row-taps, k=3..5 conv2 row-taps."""
    k = pl.program_id(0)
    m = n * ho * wo

    @pl.when(k == 0)
    def _init():
        acc1_ref[...] = jnp.zeros_like(acc1_ref)

    @pl.when(k < 3)
    def _conv1_row():
        acc1_ref[...] += jnp.dot(p_ref[...], w1_ref[...],
                                 preferred_element_type=jnp.float32)

    @pl.when(k == 1)
    def _shortcut():
        # 1x1 stride-2 conv of the pre-activated input == centre tap
        # (dy=1, dx=1) of the patch matrix = middle channel group of row 1.
        centre = p_ref[:, cin:2 * cin]
        acc2_ref[...] = jnp.dot(centre, wsc_ref[...],
                                preferred_element_type=jnp.float32)

    @pl.when(k == 3)
    def _mid():
        a2 = jnp.maximum(acc1_ref[...] * s2_ref[...] + b2_ref[...], 0.0)
        _fill_row_patch(xs2_ref,
                        a2.astype(jnp.bfloat16).reshape(n, ho, wo, planes))

    @pl.when(k >= 3)
    def _conv2_row():
        xrow = xs2_ref[:, pl.ds(k - 3, ho), :, :]
        acc2_ref[...] += jnp.dot(xrow.reshape(m, 3 * planes), w2_ref[...],
                                 preferred_element_type=jnp.float32)

    @pl.when(k == 5)
    def _store():
        o_ref[...] = acc2_ref[...].astype(o_ref.dtype)


# ----------------------------------------------------------------------------
# Wrappers
# ----------------------------------------------------------------------------
def preact_block_s1(x_nhwc, p, out_dtype=jnp.bfloat16):
    n, h, w, cin = x_nhwc.shape
    planes = p['w2'].shape[-1]
    has_proj = 'w_sc' in p
    m = n * h * w
    x2 = x_nhwc.astype(jnp.bfloat16).reshape(m, cin)

    in_specs = [
        pl.BlockSpec((m, cin), lambda k: (0, 0)),                        # x (resident)
        pl.BlockSpec((1, cin), lambda k: (0, 0)),                        # s1
        pl.BlockSpec((1, cin), lambda k: (0, 0)),                        # b1
        pl.BlockSpec((None, 3 * cin, planes),                            # w1 rows
                     lambda k: (jnp.minimum(k, 2), 0, 0)),
        pl.BlockSpec((1, planes), lambda k: (0, 0)),                     # s2
        pl.BlockSpec((1, planes), lambda k: (0, 0)),                     # b2
        pl.BlockSpec((None, 3 * planes, planes),                         # w2 rows
                     lambda k: (jnp.maximum(k - 3, 0), 0, 0)),
    ]
    inputs = [x2, p['s1'], p['b1'], p['w1'], p['s2'], p['b2'], p['w2']]
    if has_proj:
        in_specs.append(pl.BlockSpec((cin, planes), lambda k: (0, 0)))   # w_sc
        inputs.append(p['w_sc'])

    kern = functools.partial(_preact_block_s1_kernel, n=n, h=h, w=w,
                             cin=cin, planes=planes, has_proj=has_proj)
    out = pl.pallas_call(
        kern,
        grid=(6,),
        in_specs=in_specs,
        out_specs=pl.BlockSpec((m, planes), lambda k: (0, 0)),
        out_shape=jax.ShapeDtypeStruct((m, planes), out_dtype),
        scratch_shapes=[
            pltpu.VMEM((n, h + 2, w, 3 * cin), jnp.bfloat16),     # conv1 row patches
            pltpu.VMEM((n, h + 2, w, 3 * planes), jnp.bfloat16),  # conv2 row patches
            pltpu.VMEM((m, planes), jnp.float32),                 # conv1 accumulator
            pltpu.VMEM((m, planes), jnp.float32),                 # conv2 + shortcut acc
        ],
        compiler_params=_COMPILER_PARAMS,
    )(*inputs)
    return out.reshape(n, h, w, planes)


def preact_block_s2(x_nhwc, p, out_dtype=jnp.bfloat16):
    n, h, w, cin = x_nhwc.shape
    assert h % 2 == 0 and w % 2 == 0
    planes = p['w2'].shape[-1]
    ho, wo = h // 2, w // 2
    m = n * ho * wo

    # TODO(synk): move BN1+ReLU + the stride-2 tap gather in-kernel (strided
    # pl.ds reads from a padded VMEM scratch); kept in XLA glue because the
    # stride-2 inputs are tiny and this keeps every in-kernel read contiguous.
    s1 = p['s1'].reshape(1, 1, 1, cin)
    b1 = p['b1'].reshape(1, 1, 1, cin)
    a = jnp.maximum(x_nhwc.astype(jnp.bfloat16).astype(jnp.float32) * s1 + b1, 0.0)
    ap = jnp.pad(a, ((0, 0), (1, 1), (1, 1), (0, 0)))
    rows = []
    for dy in range(3):
        taps = [ap[:, dy:dy + 2 * ho:2, dx:dx + 2 * wo:2, :] for dx in range(3)]
        rows.append(jnp.concatenate(taps, axis=-1).reshape(m, 3 * cin))
    patches = jnp.stack(rows, axis=0).astype(jnp.bfloat16)        # (3, m, 3*cin)

    kern = functools.partial(_preact_block_s2_kernel, n=n, ho=ho, wo=wo,
                             cin=cin, planes=planes)
    out = pl.pallas_call(
        kern,
        grid=(6,),
        in_specs=[
            pl.BlockSpec((None, m, 3 * cin),                             # patches rows
                         lambda k: (jnp.minimum(k, 2), 0, 0)),
            pl.BlockSpec((None, 3 * cin, planes),                        # w1 rows
                         lambda k: (jnp.minimum(k, 2), 0, 0)),
            pl.BlockSpec((1, planes), lambda k: (0, 0)),                 # s2
            pl.BlockSpec((1, planes), lambda k: (0, 0)),                 # b2
            pl.BlockSpec((None, 3 * planes, planes),                     # w2 rows
                         lambda k: (jnp.maximum(k - 3, 0), 0, 0)),
            pl.BlockSpec((cin, planes), lambda k: (0, 0)),               # w_sc
        ],
        out_specs=pl.BlockSpec((m, planes), lambda k: (0, 0)),
        out_shape=jax.ShapeDtypeStruct((m, planes), out_dtype),
        scratch_shapes=[
            pltpu.VMEM((n, ho + 2, wo, 3 * planes), jnp.bfloat16),  # conv2 row patches
            pltpu.VMEM((m, planes), jnp.float32),                   # conv1 accumulator
            pltpu.VMEM((m, planes), jnp.float32),                   # conv2 + shortcut acc
        ],
        compiler_params=_COMPILER_PARAMS,
    )(patches, p['w1'], p['s2'], p['b2'], p['w2'], p['w_sc'])
    return out.reshape(n, ho, wo, planes)


def preact_block_forward(x_nchw, p):
    """PreActBlock forward: PyTorch NCHW in / NCHW out (bf16 activations)."""
    x = jnp.transpose(x_nchw, (0, 2, 3, 1))
    if p['stride'] == 1:
        y = preact_block_s1(x, p)
    else:
        y = preact_block_s2(x, p)
    return jnp.transpose(y, (0, 3, 1, 2))


# ----------------------------------------------------------------------------
# Parameters (BN folded, eval mode) and pure-JAX reference
# ----------------------------------------------------------------------------
def make_block_params(key, in_planes, planes, stride=1, eps=1e-5):
    """Synthetic PreActBlock parameters.  BatchNorm (eval mode) is folded to a
    per-channel scale/bias; conv weights are kept in kernel row-major layout
    (3, 3*Cin, Cout) bf16 and in HWIO f32 (bf16-quantized) for the reference."""
    ks = jax.random.split(key, 8)

    def conv3x3(k, cin, cout):
        std = (2.0 / (9 * cin)) ** 0.5
        return std * jax.random.normal(k, (3, 3, cin, cout), jnp.float32)

    def folded_bn(k, c):
        kg, kb, km, kv = jax.random.split(k, 4)
        gamma = 1.0 + 0.1 * jax.random.normal(kg, (c,), jnp.float32)
        beta = 0.1 * jax.random.normal(kb, (c,), jnp.float32)
        mean = 0.1 * jax.random.normal(km, (c,), jnp.float32)
        var = 1.0 + 0.1 * jax.random.uniform(kv, (c,), jnp.float32)
        scale = gamma / jnp.sqrt(var + eps)
        bias = beta - mean * scale
        return scale.reshape(1, c), bias.reshape(1, c)

    w1 = conv3x3(ks[0], in_planes, planes).astype(jnp.bfloat16)
    w2 = conv3x3(ks[1], planes, planes).astype(jnp.bfloat16)
    s1, b1 = folded_bn(ks[2], in_planes)
    s2, b2 = folded_bn(ks[3], planes)
    p = {
        'stride': stride, 's1': s1, 'b1': b1, 's2': s2, 'b2': b2,
        'w1': w1.reshape(3, 3 * in_planes, planes),   # row-major 3x3 taps
        'w2': w2.reshape(3, 3 * planes, planes),
        'w1_hwio': w1.astype(jnp.float32),
        'w2_hwio': w2.astype(jnp.float32),
    }
    if stride != 1 or in_planes != planes:
        std = (2.0 / in_planes) ** 0.5
        wsc = (std * jax.random.normal(ks[4], (in_planes, planes), jnp.float32)
               ).astype(jnp.bfloat16)
        p['w_sc'] = wsc
        p['w_sc_hwio'] = wsc.astype(jnp.float32).reshape(1, 1, in_planes, planes)
    return p


def _conv_ref(x, w_hwio, stride, padding):
    return jax.lax.conv_general_dilated(
        x, w_hwio, window_strides=(stride, stride), padding=padding,
        dimension_numbers=('NHWC', 'HWIO', 'NHWC'),
        precision=jax.lax.Precision.HIGHEST)


def preact_block_reference(x_nchw, p):
    """Pure-JAX f32 reference with the same bf16 operand-quantization points
    as the Pallas kernel (NCHW in / NCHW out)."""
    stride = p['stride']
    x = jnp.transpose(x_nchw, (0, 2, 3, 1)).astype(jnp.bfloat16).astype(jnp.float32)
    cin = x.shape[-1]
    a1 = jnp.maximum(x * p['s1'].reshape(1, 1, 1, cin)
                     + p['b1'].reshape(1, 1, 1, cin), 0.0)
    a1q = a1.astype(jnp.bfloat16).astype(jnp.float32)
    if 'w_sc' in p:
        shortcut = _conv_ref(a1q, p['w_sc_hwio'], stride, ((0, 0), (0, 0)))
    else:
        shortcut = x
    y1 = _conv_ref(a1q, p['w1_hwio'], stride, ((1, 1), (1, 1)))
    planes = y1.shape[-1]
    a2 = jnp.maximum(y1 * p['s2'].reshape(1, 1, 1, planes)
                     + p['b2'].reshape(1, 1, 1, planes), 0.0)
    a2q = a2.astype(jnp.bfloat16).astype(jnp.float32)
    y2 = _conv_ref(a2q, p['w2_hwio'], 1, ((1, 1), (1, 1)))
    return jnp.transpose(y2 + shortcut, (0, 3, 1, 2))


def _assert_close(name, out, ref, tol=3e-2):
    out = jnp.asarray(out, jnp.float32)
    ref = jnp.asarray(ref, jnp.float32)
    assert bool(jnp.all(jnp.isfinite(out))), name
    scale = float(jnp.maximum(jnp.max(jnp.abs(ref)), 1.0))
    err = float(jnp.max(jnp.abs(out - ref))) / scale
    assert err < tol, (name, err)


# ----------------------------------------------------------------------------
if __name__ == "__main__":
    key = jax.random.PRNGKey(0)
    kx, kp1, kp2 = jax.random.split(key, 3)
    # PyTorch-style NCHW input, ResNet-scale channels at small spatial size.
    x = jax.random.normal(kx, (2, 64, 16, 16), jnp.float32)

    # Case 1: stride=1, in_planes == planes  -> identity shortcut.
    p1 = make_block_params(kp1, in_planes=64, planes=64, stride=1)
    fwd1 = jax.jit(lambda a: preact_block_forward(a, p1))
    out1 = jax.block_until_ready(fwd1(x))
    assert out1.shape == (2, 64, 16, 16), out1.shape
    _assert_close("stride1_identity", out1, preact_block_reference(x, p1))

    # Case 2: stride=2, in_planes != planes  -> 1x1 stride-2 projection shortcut.
    p2 = make_block_params(kp2, in_planes=64, planes=128, stride=2)
    fwd2 = jax.jit(lambda a: preact_block_forward(a, p2))
    out2 = jax.block_until_ready(fwd2(x))
    assert out2.shape == (2, 128, 8, 8), out2.shape
    _assert_close("stride2_projection", out2, preact_block_reference(x, p2))

    print("KERNEL_OK")
</pallas_src>

<mosaic_0001>
module attributes {stable_mosaic.version = 11 : i64} {
  func.func @_preact_block_s1_kernel(%arg0: i32, %arg1: memref<512x64xbf16, #tpu.memory_space<vmem>>, %arg2: memref<1x64xf32, #tpu.memory_space<vmem>>, %arg3: memref<1x64xf32, #tpu.memory_space<vmem>>, %arg4: memref<1x192x64xbf16, #tpu.memory_space<vmem>>, %arg5: memref<1x64xf32, #tpu.memory_space<vmem>>, %arg6: memref<1x64xf32, #tpu.memory_space<vmem>>, %arg7: memref<1x192x64xbf16, #tpu.memory_space<vmem>>, %arg8: memref<512x64xbf16, #tpu.memory_space<vmem>>, %arg9: memref<2x18x16x192xbf16, #tpu.memory_space<vmem>>, %arg10: memref<2x18x16x192xbf16, #tpu.memory_space<vmem>>, %arg11: memref<512x64xf32, #tpu.memory_space<vmem>>, %arg12: memref<512x64xf32, #tpu.memory_space<vmem>>) attributes {dimension_semantics = [#tpu.dimension_semantics<arbitrary>], iteration_bounds = array<i64: 6>, scalar_prefetch = 0 : i64, scratch_operands = 4 : i64, tpu.core_type = #tpu.core_type<tc>, window_params = [{pipeline_mode = #tpu.pipeline_mode<synchronous>, transform_indices = @transform_0, window_bounds = array<i64: 512, 64>}, {pipeline_mode = #tpu.pipeline_mode<synchronous>, transform_indices = @transform_1, window_bounds = array<i64: 1, 64>}, {pipeline_mode = #tpu.pipeline_mode<synchronous>, transform_indices = @transform_2, window_bounds = array<i64: 1, 64>}, {transform_indices = @transform_3, window_bounds = array<i64: 1, 192, 64>}, {pipeline_mode = #tpu.pipeline_mode<synchronous>, transform_indices = @transform_4, window_bounds = array<i64: 1, 64>}, {pipeline_mode = #tpu.pipeline_mode<synchronous>, transform_indices = @transform_5, window_bounds = array<i64: 1, 64>}, {transform_indices = @transform_6, window_bounds = array<i64: 1, 192, 64>}, {pipeline_mode = #tpu.pipeline_mode<synchronous>, transform_indices = @transform_7, window_bounds = array<i64: 512, 64>}]} {
    %c0_i32 = arith.constant 0 : i32
    %0 = arith.cmpi eq, %arg0, %c0_i32 : i32
    %1 = arith.extui %0 : i1 to i32
    %c0_i32_0 = arith.constant 0 : i32
    %2 = arith.cmpi ne, %1, %c0_i32_0 : i32
    scf.if %2 {
      %c0 = arith.constant 0 : index
      %c0_7 = arith.constant 0 : index
      %15 = vector.load %arg1[%c0, %c0_7] : memref<512x64xbf16, #tpu.memory_space<vmem>>, vector<512x64xbf16>
      %16 = arith.extf %15 : vector<512x64xbf16> to vector<512x64xf32>
      %c0_8 = arith.constant 0 : index
      %c0_9 = arith.constant 0 : index
      %17 = vector.load %arg2[%c0_8, %c0_9] : memref<1x64xf32, #tpu.memory_space<vmem>>, vector<1x64xf32>
      %18 = vector.broadcast %17 : vector<1x64xf32> to vector<512x64xf32>
      %19 = arith.mulf %16, %18 : vector<512x64xf32>
      %c0_10 = arith.constant 0 : index
      %c0_11 = arith.constant 0 : index
      %20 = vector.load %arg3[%c0_10, %c0_11] : memref<1x64xf32, #tpu.memory_space<vmem>>, vector<1x64xf32>
      %21 = vector.broadcast %20 : vector<1x64xf32> to vector<512x64xf32>
      %22 = arith.addf %19, %21 : vector<512x64xf32>
      %cst = arith.constant 0.000000e+00 : f32
      %23 = vector.broadcast %cst : f32 to vector<512x64xf32>
      %24 = arith.maximumf %22, %23 : vector<512x64xf32>
      %25 = arith.truncf %24 : vector<512x64xf32> to vector<512x64xbf16>
      %26 = vector.shape_cast %25 : vector<512x64xbf16> to vector<2x16x16x64xbf16>
      %cst_12 = arith.constant 0.000000e+00 : bf16
      %27 = vector.broadcast %cst_12 : bf16 to vector<2x16x1x64xbf16>
      %28 = vector.extract_strided_slice %26 {offsets = [0, 0, 0, 0], sizes = [2, 16, 15, 64], strides = [1, 1, 1, 1]} : vector<2x16x16x64xbf16> to vector<2x16x15x64xbf16>
      %29 = tpu.concatenate %27, %28 in 2 : vector<2x16x1x64xbf16>, vector<2x16x15x64xbf16> -> vector<2x16x16x64xbf16>
      %30 = vector.extract_strided_slice %26 {offsets = [0, 0, 1, 0], sizes = [2, 16, 15, 64], strides = [1, 1, 1, 1]} : vector<2x16x16x64xbf16> to vector<2x16x15x64xbf16>
      %31 = tpu.concatenate %30, %27 in 2 : vector<2x16x15x64xbf16>, vector<2x16x1x64xbf16> -> vector<2x16x16x64xbf16>
      %32 = tpu.concatenate %29, %26, %31 in 3 : vector<2x16x16x64xbf16>, vector<2x16x16x64xbf16>, vector<2x16x16x64xbf16> -> vector<2x16x16x192xbf16>
      %c0_13 = arith.constant 0 : index
      %c1 = arith.constant 1 : index
      %c0_14 = arith.constant 0 : index
      %c0_15 = arith.constant 0 : index
      %33 = vector.load %arg9[%c0_13, %c1, %c0_14, %c0_15] : memref<2x18x16x192xbf16, #tpu.memory_space<vmem>>, vector<2x16x16x192xbf16>
      tpu.vector_store %arg9[%c0_13, %c1, %c0_14, %c0_15], %32 {strides = array<i32>} : memref<2x18x16x192xbf16, #tpu.memory_space<vmem>>, vector<2x16x16x192xbf16>,
      %cst_16 = arith.constant 0.000000e+00 : bf16
      %34 = vector.broadcast %cst_16 : bf16 to vector<2x1x16x192xbf16>
      %c0_17 = arith.constant 0 : index
      %c0_18 = arith.constant 0 : index
      %c0_19 = arith.constant 0 : index
      %c0_20 = arith.constant 0 : index
      %35 = vector.load %arg9[%c0_17, %c0_18, %c0_19, %c0_20] : memref<2x18x16x192xbf16, #tpu.memory_space<vmem>>, vector<2x1x16x192xbf16>
      tpu.vector_store %arg9[%c0_17, %c0_18, %c0_19, %c0_20], %34 {strides = array<i32>} : memref<2x18x16x192xbf16, #tpu.memory_space<vmem>>, vector<2x1x16x192xbf16>,
      %c0_21 = arith.constant 0 : index
      %c17 = arith.constant 17 : index
      %c0_22 = arith.constant 0 : index
      %c0_23 = arith.constant 0 : index
      %36 = vector.load %arg9[%c0_21, %c17, %c0_22, %c0_23] : memref<2x18x16x192xbf16, #tpu.memory_space<vmem>>, vector<2x1x16x192xbf16>
      tpu.vector_store %arg9[%c0_21, %c17, %c0_22, %c0_23], %34 {strides = array<i32>} : memref<2x18x16x192xbf16, #tpu.memory_space<vmem>>, vector<2x1x16x192xbf16>,
      %cst_24 = arith.constant 0.000000e+00 : f32
      %37 = vector.broadcast %cst_24 : f32 to vector<512x64xf32>
      %c0_25 = arith.constant 0 : index
      %c0_26 = arith.constant 0 : index
      %38 = vector.load %arg11[%c0_25, %c0_26] : memref<512x64xf32, #tpu.memory_space<vmem>>, vector<512x64xf32>
      tpu.vector_store %arg11[%c0_25, %c0_26], %37 {strides = array<i32>} : memref<512x64xf32, #tpu.memory_space<vmem>>, vector<512x64xf32>,
      %c0_27 = arith.constant 0 : index
      %c0_28 = arith.constant 0 : index
      %39 = vector.load %arg12[%c0_27, %c0_28] : memref<512x64xf32, #tpu.memory_space<vmem>>, vector<512x64xf32>
      tpu.vector_store %arg12[%c0_27, %c0_28], %16 {strides = array<i32>} : memref<512x64xf32, #tpu.memory_space<vmem>>, vector<512x64xf32>,
    } else {
    }
    %c3_i32 = arith.constant 3 : i32
    %3 = arith.cmpi slt, %arg0, %c3_i32 : i32
    %4 = arith.extui %3 : i1 to i32
    %c0_i32_1 = arith.constant 0 : i32
    %5 = arith.cmpi ne, %4, %c0_i32_1 : i32
    scf.if %5 {
      %c0 = arith.constant 0 : index
      %15 = arith.index_cast %arg0 : i32 to index
      %c0_7 = arith.constant 0 : index
      %c0_8 = arith.constant 0 : index
      %16 = vector.load %arg9[%c0, %15, %c0_7, %c0_8] : memref<2x18x16x192xbf16, #tpu.memory_space<vmem>>, vector<2x16x16x192xbf16>
      %c0_9 = arith.constant 0 : index
      %c0_10 = arith.constant 0 : index
      %17 = vector.load %arg11[%c0_9, %c0_10] : memref<512x64xf32, #tpu.memory_space<vmem>>, vector<512x64xf32>
      %18 = vector.shape_cast %16 : vector<2x16x16x192xbf16> to vector<512x192xbf16>
      %c0_11 = arith.constant 0 : index
      %c0_12 = arith.constant 0 : index
      %c0_13 = arith.constant 0 : index
      %19 = vector.load %arg4[%c0_11, %c0_12, %c0_13] : memref<1x192x64xbf16, #tpu.memory_space<vmem>>, vector<1x192x64xbf16>
      %20 = vector.shape_cast %19 : vector<1x192x64xbf16> to vector<192x64xbf16>
      %cst = arith.constant dense<0.000000e+00> : vector<512x64xf32>
      %21 = tpu.matmul %18, %20, %cst {dimension_numbers = #tpu.dot_dimension_numbers<[1], [0], [0], [1], [0, 0, 1, 1], [], []>} : vector<512x192xbf16>, vector<192x64xbf16>, vector<512x64xf32> -> vector<512x64xf32>
      %22 = arith.addf %17, %21 : vector<512x64xf32>
      %c0_14 = arith.constant 0 : index
      %c0_15 = arith.constant 0 : index
      %23 = vector.load %arg11[%c0_14, %c0_15] : memref<512x64xf32, #tpu.memory_space<vmem>>, vector<512x64xf32>
      tpu.vector_store %arg11[%c0_14, %c0_15], %22 {strides = array<i32>} : memref<512x64xf32, #tpu.memory_space<vmem>>, vector<512x64xf32>,
    } else {
    }
    %c3_i32_2 = arith.constant 3 : i32
    %6 = arith.cmpi eq, %arg0, %c3_i32_2 : i32
    %7 = arith.extui %6 : i1 to i32
    %c0_i32_3 = arith.constant 0 : i32
    %8 = arith.cmpi ne, %7, %c0_i32_3 : i32
    scf.if %8 {
      %c0 = arith.constant 0 : index
      %c0_7 = arith.constant 0 : index
      %15 = vector.load %arg11[%c0, %c0_7] : memref<512x64xf32, #tpu.memory_space<vmem>>, vector<512x64xf32>
      %c0_8 = arith.constant 0 : index
      %c0_9 = arith.constant 0 : index
      %16 = vector.load %arg5[%c0_8, %c0_9] : memref<1x64xf32, #tpu.memory_space<vmem>>, vector<1x64xf32>
      %17 = vector.broadcast %16 : vector<1x64xf32> to vector<512x64xf32>
      %18 = arith.mulf %15, %17 : vector<512x64xf32>
      %c0_10 = arith.constant 0 : index
      %c0_11 = arith.constant 0 : index
      %19 = vector.load %arg6[%c0_10, %c0_11] : memref<1x64xf32, #tpu.memory_space<vmem>>, vector<1x64xf32>
      %20 = vector.broadcast %19 : vector<1x64xf32> to vector<512x64xf32>
      %21 = arith.addf %18, %20 : vector<512x64xf32>
      %cst = arith.constant 0.000000e+00 : f32
      %22 = vector.broadcast %cst : f32 to vector<512x64xf32>
      %23 = arith.maximumf %21, %22 : vector<512x64xf32>
      %24 = arith.truncf %23 : vector<512x64xf32> to vector<512x64xbf16>
      %25 = vector.shape_cast %24 : vector<512x64xbf16> to vector<2x16x16x64xbf16>
      %cst_12 = arith.constant 0.000000e+00 : bf16
      %26 = vector.broadcast %cst_12 : bf16 to vector<2x16x1x64xbf16>
      %27 = vector.extract_strided_slice %25 {offsets = [0, 0, 0, 0], sizes = [2, 16, 15, 64], strides = [1, 1, 1, 1]} : vector<2x16x16x64xbf16> to vector<2x16x15x64xbf16>
      %28 = tpu.concatenate %26, %27 in 2 : vector<2x16x1x64xbf16>, vector<2x16x15x64xbf16> -> vector<2x16x16x64xbf16>
      %29 = vector.extract_strided_slice %25 {offsets = [0, 0, 1, 0], sizes = [2, 16, 15, 64], strides = [1, 1, 1, 1]} : vector<2x16x16x64xbf16> to vector<2x16x15x64xbf16>
      %30 = tpu.concatenate %29, %26 in 2 : vector<2x16x15x64xbf16>, vector<2x16x1x64xbf16> -> vector<2x16x16x64xbf16>
      %31 = tpu.concatenate %28, %25, %30 in 3 : vector<2x16x16x64xbf16>, vector<2x16x16x64xbf16>, vector<2x16x16x64xbf16> -> vector<2x16x16x192xbf16>
      %c0_13 = arith.constant 0 : index
      %c1 = arith.constant 1 : index
      %c0_14 = arith.constant 0 : index
      %c0_15 = arith.constant 0 : index
      %32 = vector.load %arg10[%c0_13, %c1, %c0_14, %c0_15] : memref<2x18x16x192xbf16, #tpu.memory_space<vmem>>, vector<2x16x16x192xbf16>
      tpu.vector_store %arg10[%c0_13, %c1, %c0_14, %c0_15], %31 {strides = array<i32>} : memref<2x18x16x192xbf16, #tpu.memory_space<vmem>>, vector<2x16x16x192xbf16>,
      %cst_16 = arith.constant 0.000000e+00 : bf16
      %33 = vector.broadcast %cst_16 : bf16 to vector<2x1x16x192xbf16>
      %c0_17 = arith.constant 0 : index
      %c0_18 = arith.constant 0 : index
      %c0_19 = arith.constant 0 : index
      %c0_20 = arith.constant 0 : index
      %34 = vector.load %arg10[%c0_17, %c0_18, %c0_19, %c0_20] : memref<2x18x16x192xbf16, #tpu.memory_space<vmem>>, vector<2x1x16x192xbf16>
      tpu.vector_store %arg10[%c0_17, %c0_18, %c0_19, %c0_20], %33 {strides = array<i32>} : memref<2x18x16x192xbf16, #tpu.memory_space<vmem>>, vector<2x1x16x192xbf16>,
      %c0_21 = arith.constant 0 : index
      %c17 = arith.constant 17 : index
      %c0_22 = arith.constant 0 : index
      %c0_23 = arith.constant 0 : index
      %35 = vector.load %arg10[%c0_21, %c17, %c0_22, %c0_23] : memref<2x18x16x192xbf16, #tpu.memory_space<vmem>>, vector<2x1x16x192xbf16>
      tpu.vector_store %arg10[%c0_21, %c17, %c0_22, %c0_23], %33 {strides = array<i32>} : memref<2x18x16x192xbf16, #tpu.memory_space<vmem>>, vector<2x1x16x192xbf16>,
    } else {
    }
    %c3_i32_4 = arith.constant 3 : i32
    %9 = arith.cmpi sge, %arg0, %c3_i32_4 : i32
    %10 = arith.extui %9 : i1 to i32
    %c0_i32_5 = arith.constant 0 : i32
    %11 = arith.cmpi ne, %10, %c0_i32_5 : i32
    scf.if %11 {
      %c3_i32_7 = arith.constant 3 : i32
      %15 = arith.subi %arg0, %c3_i32_7 : i32
      %c0 = arith.constant 0 : index
      %16 = arith.index_cast %15 : i32 to index
      %c0_8 = arith.constant 0 : index
      %c0_9 = arith.constant 0 : index
      %17 = vector.load %arg10[%c0, %16, %c0_8, %c0_9] : memref<2x18x16x192xbf16, #tpu.memory_space<vmem>>, vector<2x16x16x192xbf16>
      %c0_10 = arith.constant 0 : index
      %c0_11 = arith.constant 0 : index
      %18 = vector.load %arg12[%c0_10, %c0_11] : memref<512x64xf32, #tpu.memory_space<vmem>>, vector<512x64xf32>
      %19 = vector.shape_cast %17 : vector<2x16x16x192xbf16> to vector<512x192xbf16>
      %c0_12 = arith.constant 0 : index
      %c0_13 = arith.constant 0 : index
      %c0_14 = arith.constant 0 : index
      %20 = vector.load %arg7[%c0_12, %c0_13, %c0_14] : memref<1x192x64xbf16, #tpu.memory_space<vmem>>, vector<1x192x64xbf16>
      %21 = vector.shape_cast %20 : vector<1x192x64xbf16> to vector<192x64xbf16>
      %cst = arith.constant dense<0.000000e+00> : vector<512x64xf32>
      %22 = tpu.matmul %19, %21, %cst {dimension_numbers = #tpu.dot_dimension_numbers<[1], [0], [0], [1], [0, 0, 1, 1], [], []>} : vector<512x192xbf16>, vector<192x64xbf16>, vector<512x64xf32> -> vector<512x64xf32>
      %23 = arith.addf %18, %22 : vector<512x64xf32>
      %c0_15 = arith.constant 0 : index
      %c0_16 = arith.constant 0 : index
      %24 = vector.load %arg12[%c0_15, %c0_16] : memref<512x64xf32, #tpu.memory_space<vmem>>, vector<512x64xf32>
      tpu.vector_store %arg12[%c0_15, %c0_16], %23 {strides = array<i32>} : memref<512x64xf32, #tpu.memory_space<vmem>>, vector<512x64xf32>,
    } else {
    }
    %c5_i32 = arith.constant 5 : i32
    %12 = arith.cmpi eq, %arg0, %c5_i32 : i32
    %13 = arith.extui %12 : i1 to i32
    %c0_i32_6 = arith.constant 0 : i32
    %14 = arith.cmpi ne, %13, %c0_i32_6 : i32
    scf.if %14 {
      %c0 = arith.constant 0 : index
      %c0_7 = arith.constant 0 : index
      %15 = vector.load %arg12[%c0, %c0_7] : memref<512x64xf32, #tpu.memory_space<vmem>>, vector<512x64xf32>
      %16 = arith.truncf %15 : vector<512x64xf32> to vector<512x64xbf16>
      %c0_8 = arith.constant 0 : index
      %c0_9 = arith.constant 0 : index
      %17 = vector.load %arg8[%c0_8, %c0_9] : memref<512x64xbf16, #tpu.memory_space<vmem>>, vector<512x64xbf16>
      tpu.vector_store %arg8[%c0_8, %c0_9], %16 {strides = array<i32>} : memref<512x64xbf16, #tpu.memory_space<vmem>>, vector<512x64xbf16>,
    } else {
    }
    return
  }
  func.func @transform_0(%arg0: i32) -> (i32, i32) {
    %c0_i32 = arith.constant 0 : i32
    %c0_i32_0 = arith.constant 0 : i32
    %c0_i32_1 = arith.constant 0 : i32
    return %c0_i32, %c0_i32_0 : i32, i32
  }
  func.func @transform_1(%arg0: i32) -> (i32, i32) {
    %c0_i32 = arith.constant 0 : i32
    %c0_i32_0 = arith.constant 0 : i32
    %c0_i32_1 = arith.constant 0 : i32
    return %c0_i32, %c0_i32_0 : i32, i32
  }
  func.func @transform_2(%arg0: i32) -> (i32, i32) {
    %c0_i32 = arith.constant 0 : i32
    %c0_i32_0 = arith.constant 0 : i32
    %c0_i32_1 = arith.constant 0 : i32
    return %c0_i32, %c0_i32_0 : i32, i32
  }
  func.func @transform_3(%arg0: i32) -> (i32, i32, i32) {
    %c2_i32 = arith.constant 2 : i32
    %0 = arith.minsi %arg0, %c2_i32 : i32
    %c0_i32 = arith.constant 0 : i32
    %c0_i32_0 = arith.constant 0 : i32
    %c0_i32_1 = arith.constant 0 : i32
    return %0, %c0_i32, %c0_i32_0 : i32, i32, i32
  }
  func.func @transform_4(%arg0: i32) -> (i32, i32) {
    %c0_i32 = arith.constant 0 : i32
    %c0_i32_0 = arith.constant 0 : i32
    %c0_i32_1 = arith.constant 0 : i32
    return %c0_i32, %c0_i32_0 : i32, i32
  }
  func.func @transform_5(%arg0: i32) -> (i32, i32) {
    %c0_i32 = arith.constant 0 : i32
    %c0_i32_0 = arith.constant 0 : i32
    %c0_i32_1 = arith.constant 0 : i32
    return %c0_i32, %c0_i32_0 : i32, i32
  }
  func.func @transform_6(%arg0: i32) -> (i32, i32, i32) {
    %c3_i32 = arith.constant 3 : i32
    %0 = arith.subi %arg0, %c3_i32 : i32
    %c0_i32 = arith.constant 0 : i32
    %1 = arith.maxsi %0, %c0_i32 : i32
    %c0_i32_0 = arith.constant 0 : i32
    %c0_i32_1 = arith.constant 0 : i32
    %c0_i32_2 = arith.constant 0 : i32
    return %1, %c0_i32_0, %c0_i32_1 : i32, i32, i32
  }
  func.func @transform_7(%arg0: i32) -> (i32, i32) {
    %c0_i32 = arith.constant 0 : i32
    %c0_i32_0 = arith.constant 0 : i32
    %c0_i32_1 = arith.constant 0 : i32
    return %c0_i32, %c0_i32_0 : i32, i32
  }
}

</mosaic_0001>

<llo_original>
// kernel: _lambda_.1
$region0: #{_lambda_.1}
  #allocation0 [shape = 'u32[]', space=smem, size = 0x4, offset = 0x4, fixed_abs, tag = 'smem constant byte address 0x4 - core index']
  #allocation1 [shape = 'u32[144,128]{1,0:T(1,128)}', space=vmem, size = 0x12000, scoped, tag = 'internal scratch']
  #allocation2 [shape = 'bf16[2,18,16,192]{3,2,1,0:T(8,128)(2,1)}', space=vmem, size = 0x48000, scoped, tag = 'scratch operand']
  #allocation3 [shape = 'bf16[2,18,16,192]{3,2,1,0:T(8,128)(2,1)}', space=vmem, size = 0x48000, scoped, tag = 'scratch operand']
  #allocation4 [shape = 'f32[512,64]{1,0:T(8,128)}', space=vmem, size = 0x40000, scoped, tag = 'scratch operand']
  #allocation5 [shape = 'f32[512,64]{1,0:T(8,128)}', space=vmem, size = 0x40000, scoped, tag = 'scratch operand']
  %s0 = inlined_call_operand.vmem [shape: bf16[512,64], index: 0, kind: input, shape index: {}]
  %s1 = inlined_call_operand.vmem [shape: f32[1,64], index: 1, kind: input, shape index: {}]
  %s2 = inlined_call_operand.vmem [shape: f32[1,64], index: 2, kind: input, shape index: {}]
  %s3 = inlined_call_operand.vmem [shape: bf16[3,192,64], index: 3, kind: input, shape index: {}]
  %s4 = inlined_call_operand.vmem [shape: f32[1,64], index: 4, kind: input, shape index: {}]
  %s5 = inlined_call_operand.vmem [shape: f32[1,64], index: 5, kind: input, shape index: {}]
  %s6 = inlined_call_operand.vmem [shape: bf16[3,192,64], index: 6, kind: input, shape index: {}]
  %s7 = inlined_call_operand.hbm [shape: bf16[512,64], index: 7, kind: output, shape index: {}]
  %s8 = sld [smem:[#allocation0]]
  $region81: #{_lambda_.1} parent=0
    _
  %s10 = ssub.s32 1, %s8
  %s11 = scalar_select 0, %s10, %s8
  $region1: #{_lambda_.1} parent=0
    #allocation6 [shape = 'u8[131072]{0}', space=vmem, size = 0x20000, scoped, tag = 'output window, operand 0, single buffered']
    #allocation7 [shape = 's32[2]{0}', space=sflag, size = 0x8, scoped, tag = 'scoped memory for _lambda_.1']
    %12 = vsyncpa [#allocation7], 0
    loop: start=0, step=1, limit=8
    $region2: #{_lambda_.1} parent=1 // loop_pre_header
      _
    $region3: #{_lambda_.1} parent=1 // loop_header
      %s14 = sphi 0, %s18
      %p15 = scmp.ge.s32.totalorder %s14, 8
      %s22 = sphi 0, %s22
      %s24 = sphi 0, %s22
      %s25 = sphi 0, %s24
      %s39 = sphi 0, %s25
      %s43 = sphi 0, %s43
      %s45 = sphi 0, %s43
      %s46 = sphi 0, %s45
      %s60 = sphi 0, %s46
      %s64 = sphi 0, %s64
      %s66 = sphi 0, %s64
      %s67 = sphi 0, %s66
      %s81 = sphi 0, %s67
      %s91 = sphi 0, %s93
      %s94 = sphi 0, %s91
      %s95 = sphi 0, %s94
      %s111 = sphi 0, %s95
      %s115 = sphi 0, %s115
      %s117 = sphi 0, %s115
      %s118 = sphi 0, %s117
      %s132 = sphi 0, %s118
      %s136 = sphi 0, %s136
      %s138 = sphi 0, %s136
      %s139 = sphi 0, %s138
      %s153 = sphi 0, %s139
      %s165 = sphi 0, %s167
      %s168 = sphi 0, %s165
      %s169 = sphi 0, %s168
      %s185 = sphi 0, %s169
      %s189 = sphi 0, %s189
      %s191 = sphi 0, %s189
      %s192 = sphi 0, %s191
      %s206 = sphi 0, %s192
    $region4: #{_lambda_.1} parent=1 // loop_header_branch
      %17 = sbr.rel (%p15) target = $region8
    $region5: #{_lambda_.1} parent=1 // loop_body
      %s19 = ssub.s32 %s14, 1
      %s20 = ssub.s32 %s14, 2
      %s21 = sadd.s32 %s14, 1
      %s23 = sadd.s32 %s22, 1
      %p26 = scmp.eq.s32.totalorder %s14, 5
      %p27 = scmp.ne.s32.totalorder %s22, %s24
      %p28 = scmp.eq.s32.totalorder %s14, 0
      %p29 = por %p27, %p28
      %p30 = scmp.ne.s32.totalorder %s22, %s24
      %p31 = scmp.eq.s32.totalorder %s19, 5
      %p32 = por %p30, %p31
      %p33 = scmp.ne.s32.totalorder %s24, %s25
      %p34 = scmp.eq.s32.totalorder %s19, 0
      %p35 = por %p33, %p34
      %p36 = scmp.ne.s32.totalorder %s24, %s25
      %p37 = scmp.eq.s32.totalorder %s20, 5
      %p38 = por %p36, %p37
      %p40 = scmp.ne.s32.totalorder %s25, %s39
      %p41 = scmp.eq.s32.totalorder %s20, 0
      %p42 = por %p40, %p41
      %s44 = sadd.s32 %s43, 1
      %p47 = scmp.eq.s32.totalorder %s14, 5
      %p48 = scmp.ne.s32.totalorder %s43, %s45
      %p49 = scmp.eq.s32.totalorder %s14, 0
      %p50 = por %p48, %p49
      %p51 = scmp.ne.s32.totalorder %s43, %s45
      %p52 = scmp.eq.s32.totalorder %s19, 5
      %p53 = por %p51, %p52
      %p54 = scmp.ne.s32.totalorder %s45, %s46
      %p55 = scmp.eq.s32.totalorder %s19, 0
      %p56 = por %p54, %p55
      %p57 = scmp.ne.s32.totalorder %s45, %s46
      %p58 = scmp.eq.s32.totalorder %s20, 5
      %p59 = por %p57, %p58
      %p61 = scmp.ne.s32.totalorder %s46, %s60
      %p62 = scmp.eq.s32.totalorder %s20, 0
      %p63 = por %p61, %p62
      %s65 = sadd.s32 %s64, 1
      %p68 = scmp.eq.s32.totalorder %s14, 5
      %p69 = scmp.ne.s32.totalorder %s64, %s66
      %p70 = scmp.eq.s32.totalorder %s14, 0
      %p71 = por %p69, %p70
      %p72 = scmp.ne.s32.totalorder %s64, %s66
      %p73 = scmp.eq.s32.totalorder %s19, 5
      %p74 = por %p72, %p73
      %p75 = scmp.ne.s32.totalorder %s66, %s67
      %p76 = scmp.eq.s32.totalorder %s19, 0
      %p77 = por %p75, %p76
      %p78 = scmp.ne.s32.totalorder %s66, %s67
      %p79 = scmp.eq.s32.totalorder %s20, 5
      %p80 = por %p78, %p79
      %p82 = scmp.ne.s32.totalorder %s67, %s81
      %p83 = scmp.eq.s32.totalorder %s20, 0
      %p84 = por %p82, %p83
      %p85 = scmp.lt.s32.totalorder %s14, 2
      %s86 = scalar_select %p85, %s14, 2
      %p87 = scmp.lt.s32.totalorder %s21, 2
      %s88 = scalar_select %p87, %s21, 2
      %s89 = ssub.s32 %s86, %s88
      %p90 = scmp.eq.s32.totalorder %s89, 0
      %s92 = sadd.s32 %s91, 1
      %s93 = scalar_select %p90, %s91, %s92
      %p96 = pneg %p90
      %p97 = scmp.eq.s32.totalorder %s14, 5
      %p98 = por %p96, %p97
      %p99 = scmp.ne.s32.totalorder %s91, %s94
      %p100 = scmp.eq.s32.totalorder %s14, 0
      %p101 = por %p99, %p100
      %p102 = scmp.ne.s32.totalorder %s91, %s94
      %p103 = scmp.eq.s32.totalorder %s19, 5
      %p104 = por %p102, %p103
      %p105 = scmp.ne.s32.totalorder %s94, %s95
      %p106 = scmp.eq.s32.totalorder %s19, 0
      %p107 = por %p105, %p106
      %p108 = scmp.ne.s32.totalorder %s94, %s95
      %p109 = scmp.eq.s32.totalorder %s20, 5
      %p110 = por %p108, %p109
      %p112 = scmp.ne.s32.totalorder %s95, %s111
      %p113 = scmp.eq.s32.totalorder %s20, 0
      %p114 = por %p112, %p113
      %s116 = sadd.s32 %s115, 1
      %p119 = scmp.eq.s32.totalorder %s14, 5
      %p120 = scmp.ne.s32.totalorder %s115, %s117
      %p121 = scmp.eq.s32.totalorder %s14, 0
      %p122 = por %p120, %p121
      %p123 = scmp.ne.s32.totalorder %s115, %s117
      %p124 = scmp.eq.s32.totalorder %s19, 5
      %p125 = por %p123, %p124
      %p126 = scmp.ne.s32.totalorder %s117, %s118
      %p127 = scmp.eq.s32.totalorder %s19, 0
      %p128 = por %p126, %p127
      %p129 = scmp.ne.s32.totalorder %s117, %s118
      %p130 = scmp.eq.s32.totalorder %s20, 5
      %p131 = por %p129, %p130
      %p133 = scmp.ne.s32.totalorder %s118, %s132
      %p134 = scmp.eq.s32.totalorder %s20, 0
      %p135 = por %p133, %p134
      %s137 = sadd.s32 %s136, 1
      %p140 = scmp.eq.s32.totalorder %s14, 5
      %p141 = scmp.ne.s32.totalorder %s136, %s138
      %p142 = scmp.eq.s32.totalorder %s14, 0
      %p143 = por %p141, %p142
      %p144 = scmp.ne.s32.totalorder %s136, %s138
      %p145 = scmp.eq.s32.totalorder %s19, 5
      %p146 = por %p144, %p145
      %p147 = scmp.ne.s32.totalorder %s138, %s139
      %p148 = scmp.eq.s32.totalorder %s19, 0
      %p149 = por %p147, %p148
      %p150 = scmp.ne.s32.totalorder %s138, %s139
      %p151 = scmp.eq.s32.totalorder %s20, 5
      %p152 = por %p150, %p151
      %p154 = scmp.ne.s32.totalorder %s139, %s153
      %p155 = scmp.eq.s32.totalorder %s20, 0
      %p156 = por %p154, %p155
      %s157 = ssub.s32 %s14, 3
      %p158 = scmp.gt.s32.totalorder %s157, 0
      %s159 = scalar_select %p158, %s157, 0
      %s160 = ssub.s32 %s21, 3
      %p161 = scmp.gt.s32.totalorder %s160, 0
      %s162 = scalar_select %p161, %s160, 0
      %s163 = ssub.s32 %s159, %s162
      %p164 = scmp.eq.s32.totalorder %s163, 0
      %s166 = sadd.s32 %s165, 1
      %s167 = scalar_select %p164, %s165, %s166
      %p170 = pneg %p164
      %p171 = scmp.eq.s32.totalorder %s14, 5
      %p172 = por %p170, %p171
      %p173 = scmp.ne.s32.totalorder %s165, %s168
      %p174 = scmp.eq.s32.totalorder %s14, 0
      %p175 = por %p173, %p174
      %p176 = scmp.ne.s32.totalorder %s165, %s168
      %p177 = scmp.eq.s32.totalorder %s19, 5
      %p178 = por %p176, %p177
      %p179 = scmp.ne.s32.totalorder %s168, %s169
      %p180 = scmp.eq.s32.totalorder %s19, 0
      %p181 = por %p179, %p180
      %p182 = scmp.ne.s32.totalorder %s168, %s169
      %p183 = scmp.eq.s32.totalorder %s20, 5
      %p184 = por %p182, %p183
      %p186 = scmp.ne.s32.totalorder %s169, %s185
      %p187 = scmp.eq.s32.totalorder %s20, 0
      %p188 = por %p186, %p187
      %s190 = sadd.s32 %s189, 1
      %p193 = scmp.eq.s32.totalorder %s14, 5
      %p194 = scmp.ne.s32.totalorder %s189, %s191
      %p195 = scmp.eq.s32.totalorder %s14, 0
      %p196 = por %p194, %p195
      %p197 = scmp.ne.s32.totalorder %s189, %s191
      %p198 = scmp.eq.s32.totalorder %s19, 5
      %p199 = por %p197, %p198
      %p200 = scmp.ne.s32.totalorder %s191, %s192
      %p201 = scmp.eq.s32.totalorder %s19, 0
      %p202 = por %p200, %p201
      %p203 = scmp.ne.s32.totalorder %s191, %s192
      %p204 = scmp.eq.s32.totalorder %s20, 5
      %p205 = por %p203, %p204
      %p207 = scmp.ne.s32.totalorder %s192, %s206
      %p208 = scmp.eq.s32.totalorder %s20, 0
      %p209 = por %p207, %p208
      %p210 = scmp.le.s32.totalorder 1, %s14
      %p211 = scmp.lt.s32.totalorder %s14, 7
      %p212 = pnand %p210, %p211
      %p213 = pneg %p212
      // Predicated region
      $region9: #{_lambda_.1} parent=5 // pred_check
        _
      $region10: #{_lambda_.1} parent=5 // pred_check_branch
        %215 = sbr.rel (%p212) target = $region12
      $region11: #{_lambda_.1} parent=5 // pred_region
        %s216 = ssub.s32 %s14, 1
        // Predicated region
        $region13: #{_lambda_.1} parent=11 // pred_check
          %p217 = pneg %p35
        $region14: #{_lambda_.1} parent=11 // pred_check_branch
          %219 = sbr.rel (%p217) target = $region16
        $region15: #{_lambda_.1} parent=11 // pred_region
          _
        $region16: #{_lambda_.1} parent=11 // pred_fallthru
          _
        // Predicated region
        $region17: #{_lambda_.1} parent=11 // pred_check
          %p220 = pneg %p56
        $region18: #{_lambda_.1} parent=11 // pred_check_branch
          %222 = sbr.rel (%p220) target = $region20
        $region19: #{_lambda_.1} parent=11 // pred_region
          _
        $region20: #{_lambda_.1} parent=11 // pred_fallthru
          _
        // Predicated region
        $region21: #{_lambda_.1} parent=11 // pred_check
          %p223 = pneg %p77
        $region22: #{_lambda_.1} parent=11 // pred_check_branch
          %225 = sbr.rel (%p223) target = $region24
        $region23: #{_lambda_.1} parent=11 // pred_region
          _
        $region24: #{_lambda_.1} parent=11 // pred_fallthru
          _
        // Predicated region
        $region25: #{_lambda_.1} parent=11 // pred_check
          %p226 = pneg %p128
        $region26: #{_lambda_.1} parent=11 // pred_check_branch
          %228 = sbr.rel (%p226) target = $region28
        $region27: #{_lambda_.1} parent=11 // pred_region
          _
        $region28: #{_lambda_.1} parent=11 // pred_fallthru
          _
        // Predicated region
        $region29: #{_lambda_.1} parent=11 // pred_check
          %p229 = pneg %p149
        $region30: #{_lambda_.1} parent=11 // pred_check_branch
          %231 = sbr.rel (%p229) target = $region32
        $region31: #{_lambda_.1} parent=11 // pred_region
          _
        $region32: #{_lambda_.1} parent=11 // pred_fallthru
          _
      $region12: #{_lambda_.1} parent=5 // pred_fallthru
        _
      %p232 = scmp.lt.s32.totalorder %s14, 6
      // Predicated region
      $region33: #{_lambda_.1} parent=5 // pred_check
        %p233 = pneg %p232
      $region34: #{_lambda_.1} parent=5 // pred_check_branch
        %235 = sbr.rel (%p233) target = $region36
      $region35: #{_lambda_.1} parent=5 // pred_region
        // Predicated region
        $region37: #{_lambda_.1} parent=35 // pred_check
          %p236 = pneg %p101
        $region38: #{_lambda_.1} parent=35 // pred_check_branch
          %238 = sbr.rel (%p236) target = $region40
        $region39: #{_lambda_.1} parent=35 // pred_region
          %p239 = scmp.lt.s32.totalorder %s14, 2
          %s240 = scalar_select %p239, %s14, 2
          %p241 = scmp.lt.s32.totalorder %s240, 2
          %s242 = scalar_select %p241, %s240, 2
          %s243 = smul.addr %s242, 24
          %s244 = smul.addr %s243, 4
          %s245 = scalar_lea.vmem %s3, %s244
          %p246 = scmp.lt.s32.totalorder %s14, 2
          %s247 = scalar_select %p246, %s14, 2
        $region40: #{_lambda_.1} parent=35 // pred_fallthru
          _
        // Predicated region
        $region41: #{_lambda_.1} parent=35 // pred_check
          %p248 = pneg %p175
        $region42: #{_lambda_.1} parent=35 // pred_check_branch
          %250 = sbr.rel (%p248) target = $region44
        $region43: #{_lambda_.1} parent=35 // pred_region
          %s251 = ssub.s32 %s14, 3
          %p252 = scmp.gt.s32.totalorder %s251, 0
          %s253 = scalar_select %p252, %s251, 0
          %p254 = scmp.lt.s32.totalorder %s253, 2
          %s255 = scalar_select %p254, %s253, 2
          %s256 = smul.addr %s255, 24
          %s257 = smul.addr %s256, 4
          %s258 = scalar_lea.vmem %s6, %s257
          %s259 = ssub.s32 %s14, 3
          %p260 = scmp.gt.s32.totalorder %s259, 0
          %s261 = scalar_select %p260, %s259, 0
        $region44: #{_lambda_.1} parent=35 // pred_fallthru
          _
      $region36: #{_lambda_.1} parent=5 // pred_fallthru
        _
      %p262 = scmp.le.s32.totalorder 1, %s14
      %p263 = scmp.lt.s32.totalorder %s14, 7
      %p264 = pnand %p262, %p263
      %p265 = pneg %p264
      // Predicated region
      $region45: #{_lambda_.1} parent=5 // pred_check
        _
      $region46: #{_lambda_.1} parent=5 // pred_check_branch
        %267 = sbr.rel (%p264) target = $region48
      $region47: #{_lambda_.1} parent=5 // pred_region
        %s268 = ssub.s32 %s14, 1
        %p269 = pneg %p35
        %p270 = pneg %p32
        %p271 = pneg %p56
        %p272 = pneg %p53
        %p273 = pneg %p77
        %p274 = pneg %p74
        %p275 = scmp.lt.s32.totalorder %s19, 2
        %s276 = scalar_select %p275, %s19, 2
        %p277 = scmp.lt.s32.totalorder %s276, 2
        %s278 = scalar_select %p277, %s276, 2
        %s279 = smul.addr %s278, 24
        %s280 = smul.addr %s279, 4
        %s281 = scalar_lea.vmem %s3, %s280
        %p282 = pneg %p107
        %p283 = pneg %p104
        %p284 = pneg %p128
        %p285 = pneg %p125
        %p286 = pneg %p149
        %p287 = pneg %p146
        %s288 = ssub.s32 %s19, 3
        %p289 = scmp.gt.s32.totalorder %s288, 0
        %s290 = scalar_select %p289, %s288, 0
        %p291 = scmp.lt.s32.totalorder %s290, 2
        %s292 = scalar_select %p291, %s290, 2
        %s293 = smul.addr %s292, 24
        %s294 = smul.addr %s293, 4
        %s295 = scalar_lea.vmem %s6, %s294
        %p296 = pneg %p181
        %p297 = pneg %p178
        %p298 = pneg %p202
        %p299 = pneg %p199
        %p300 = scmp.lt.s32.totalorder %s19, 2
        %s301 = scalar_select %p300, %s19, 2
        %p302 = scmp.lt.s32.totalorder %s301, 2
        %s303 = scalar_select %p302, %s301, 2
        %s304 = smul.addr %s303, 24
        %s305 = smul.addr %s304, 4
        %s306 = scalar_lea.vmem %s3, %s305
        %p307 = scmp.lt.s32.totalorder %s19, 2
        %s308 = scalar_select %p307, %s19, 2
        %s309 = ssub.s32 %s19, 3
        %p310 = scmp.gt.s32.totalorder %s309, 0
        %s311 = scalar_select %p310, %s309, 0
        %p312 = scmp.lt.s32.totalorder %s311, 2
        %s313 = scalar_select %p312, %s311, 2
        %s314 = smul.addr %s313, 24
        %s315 = smul.addr %s314, 4
        %s316 = scalar_lea.vmem %s6, %s315
        %s317 = ssub.s32 %s19, 3
        %p318 = scmp.gt.s32.totalorder %s317, 0
        %s319 = scalar_select %p318, %s317, 0
        %p321 = scmp.eq.s32.totalorder %s19, 0
        // Predicated region
        $region49: #{_lambda_.1} parent=47 // pred_check
          %p322 = pneg %p321
        $region50: #{_lambda_.1} parent=47 // pred_check_branch
          %324 = sbr.rel (%p322) target = $region52
        $region51: #{_lambda_.1} parent=47 // pred_region
          %v325 = vld [vmem:[%s0] sm:$0xf]
          %v326 = vld [vmem:[%s0 + $0x4] sm:$0xf]
          %v327 = vld [vmem:[%s0 + $0x8] sm:$0xf]
          %v328 = vld [vmem:[%s0 + $0xc] sm:$0xf]
          %v329 = vld [vmem:[%s0 + $0x10] sm:$0xf]
          %v330 = vld [vmem:[%s0 + $0x14] sm:$0xf]
          %v331 = vld [vmem:[%s0 + $0x18] sm:$0xf]
          %v332 = vld [vmem:[%s0 + $0x1c] sm:$0xf]
          %v333 = vld [vmem:[%s0 + $0x20] sm:$0xf]
          %v334 = vld [vmem:[%s0 + $0x24] sm:$0xf]
          %v335 = vld [vmem:[%s0 + $0x28] sm:$0xf]
          %v336 = vld [vmem:[%s0 + $0x2c] sm:$0xf]
          %v337 = vld [vmem:[%s0 + $0x30] sm:$0xf]
          %v338 = vld [vmem:[%s0 + $0x34] sm:$0xf]
          %v339 = vld [vmem:[%s0 + $0x38] sm:$0xf]
          %v340 = vld [vmem:[%s0 + $0x3c] sm:$0xf]
          %v341 = vld [vmem:[%s0 + $0x40] sm:$0xf]
          %v342 = vld [vmem:[%s0 + $0x44] sm:$0xf]
          %v343 = vld [vmem:[%s0 + $0x48] sm:$0xf]
          %v344 = vld [vmem:[%s0 + $0x4c] sm:$0xf]
          %v345 = vld [vmem:[%s0 + $0x50] sm:$0xf]
          %v346 = vld [vmem:[%s0 + $0x54] sm:$0xf]
          %v347 = vld [vmem:[%s0 + $0x58] sm:$0xf]
          %v348 = vld [vmem:[%s0 + $0x5c] sm:$0xf]
          %v349 = vld [vmem:[%s0 + $0x60] sm:$0xf]
          %v350 = vld [vmem:[%s0 + $0x64] sm:$0xf]
          %v351 = vld [vmem:[%s0 + $0x68] sm:$0xf]
          %v352 = vld [vmem:[%s0 + $0x6c] sm:$0xf]
          %v353 = vld [vmem:[%s0 + $0x70] sm:$0xf]
          %v354 = vld [vmem:[%s0 + $0x74] sm:$0xf]
          %v355 = vld [vmem:[%s0 + $0x78] sm:$0xf]
          %v356 = vld [vmem:[%s0 + $0x7c] sm:$0xf]
          %v357 = vld [vmem:[%s0 + $0x80] sm:$0xf]
          %v358 = vld [vmem:[%s0 + $0x84] sm:$0xf]
          %v359 = vld [vmem:[%s0 + $0x88] sm:$0xf]
          %v360 = vld [vmem:[%s0 + $0x8c] sm:$0xf]
          %v361 = vld [vmem:[%s0 + $0x90] sm:$0xf]
          %v362 = vld [vmem:[%s0 + $0x94] sm:$0xf]
          %v363 = vld [vmem:[%s0 + $0x98] sm:$0xf]
          %v364 = vld [vmem:[%s0 + $0x9c] sm:$0xf]
          %v365 = vld [vmem:[%s0 + $0xa0] sm:$0xf]
          %v366 = vld [vmem:[%s0 + $0xa4] sm:$0xf]
          %v367 = vld [vmem:[%s0 + $0xa8] sm:$0xf]
          %v368 = vld [vmem:[%s0 + $0xac] sm:$0xf]
          %v369 = vld [vmem:[%s0 + $0xb0] sm:$0xf]
          %v370 = vld [vmem:[%s0 + $0xb4] sm:$0xf]
          %v371 = vld [vmem:[%s0 + $0xb8] sm:$0xf]
          %v372 = vld [vmem:[%s0 + $0xbc] sm:$0xf]
          %v373 = vld [vmem:[%s0 + $0xc0] sm:$0xf]
          %v374 = vld [vmem:[%s0 + $0xc4] sm:$0xf]
          %v375 = vld [vmem:[%s0 + $0xc8] sm:$0xf]
          %v376 = vld [vmem:[%s0 + $0xcc] sm:$0xf]
          %v377 = vld [vmem:[%s0 + $0xd0] sm:$0xf]
          %v378 = vld [vmem:[%s0 + $0xd4] sm:$0xf]
          %v379 = vld [vmem:[%s0 + $0xd8] sm:$0xf]
          %v380 = vld [vmem:[%s0 + $0xdc] sm:$0xf]
          %v381 = vld [vmem:[%s0 + $0xe0] sm:$0xf]
          %v382 = vld [vmem:[%s0 + $0xe4] sm:$0xf]
          %v383 = vld [vmem:[%s0 + $0xe8] sm:$0xf]
          %v384 = vld [vmem:[%s0 + $0xec] sm:$0xf]
          %v385 = vld [vmem:[%s0 + $0xf0] sm:$0xf]
          %v386 = vld [vmem:[%s0 + $0xf4] sm:$0xf]
          %v387 = vld [vmem:[%s0 + $0xf8] sm:$0xf]
          %v388 = vld [vmem:[%s0 + $0xfc] sm:$0xf]
          %v389 = vunpack.c.l.bf16 %v325
          %v390 = vunpack.c.l.bf16 %v326
          %v391 = vunpack.c.l.bf16 %v327
          %v392 = vunpack.c.l.bf16 %v328
          %v393 = vunpack.c.l.bf16 %v329
          %v394 = vunpack.c.l.bf16 %v330
          %v395 = vunpack.c.l.bf16 %v331
          %v396 = vunpack.c.l.bf16 %v332
          %v397 = vunpack.c.l.bf16 %v333
          %v398 = vunpack.c.l.bf16 %v334
          %v399 = vunpack.c.l.bf16 %v335
          %v400 = vunpack.c.l.bf16 %v336
          %v401 = vunpack.c.l.bf16 %v337
          %v402 = vunpack.c.l.bf16 %v338
          %v403 = vunpack.c.l.bf16 %v339
          %v404 = vunpack.c.l.bf16 %v340
          %v405 = vunpack.c.l.bf16 %v341
          %v406 = vunpack.c.l.bf16 %v342
          %v407 = vunpack.c.l.bf16 %v343
          %v408 = vunpack.c.l.bf16 %v344
          %v409 = vunpack.c.l.bf16 %v345
          %v410 = vunpack.c.l.bf16 %v346
          %v411 = vunpack.c.l.bf16 %v347
          %v412 = vunpack.c.l.bf16 %v348
          %v413 = vunpack.c.l.bf16 %v349
          %v414 = vunpack.c.l.bf16 %v350
          %v415 = vunpack.c.l.bf16 %v351
          %v416 = vunpack.c.l.bf16 %v352
          %v417 = vunpack.c.l.bf16 %v353
          %v418 = vunpack.c.l.bf16 %v354
          %v419 = vunpack.c.l.bf16 %v355
          %v420 = vunpack.c.l.bf16 %v356
          %v421 = vunpack.c.l.bf16 %v357
          %v422 = vunpack.c.l.bf16 %v358
          %v423 = vunpack.c.l.bf16 %v359
          %v424 = vunpack.c.l.bf16 %v360
          %v425 = vunpack.c.l.bf16 %v361
          %v426 = vunpack.c.l.bf16 %v362
          %v427 = vunpack.c.l.bf16 %v363
          %v428 = vunpack.c.l.bf16 %v364
          %v429 = vunpack.c.l.bf16 %v365
          %v430 = vunpack.c.l.bf16 %v366
          %v431 = vunpack.c.l.bf16 %v367
          %v432 = vunpack.c.l.bf16 %v368
          %v433 = vunpack.c.l.bf16 %v369
          %v434 = vunpack.c.l.bf16 %v370
          %v435 = vunpack.c.l.bf16 %v371
          %v436 = vunpack.c.l.bf16 %v372
          %v437 = vunpack.c.l.bf16 %v373
          %v438 = vunpack.c.l.bf16 %v374
          %v439 = vunpack.c.l.bf16 %v375
          %v440 = vunpack.c.l.bf16 %v376
          %v441 = vunpack.c.l.bf16 %v377
          %v442 = vunpack.c.l.bf16 %v378
          %v443 = vunpack.c.l.bf16 %v379
          %v444 = vunpack.c.l.bf16 %v380
          %v445 = vunpack.c.l.bf16 %v381
          %v446 = vunpack.c.l.bf16 %v382
          %v447 = vunpack.c.l.bf16 %v383
          %v448 = vunpack.c.l.bf16 %v384
          %v449 = vunpack.c.l.bf16 %v385
          %v450 = vunpack.c.l.bf16 %v386
          %v451 = vunpack.c.l.bf16 %v387
          %v452 = vunpack.c.l.bf16 %v388
          %v453 = vld [vmem:[%s1] sm:$0x1]
          %v455 = vlaneseq
          %v456 = vshrl.u32 %v455, 7
          %v457 = vsub.s32 0, %v456
          %v458 = vrot.slane %v453, %v457
          %v460 = vmul.f32 %v389, %v458
          %v461 = vmul.f32 %v390, %v458
          %v462 = vmul.f32 %v391, %v458
          %v463 = vmul.f32 %v392, %v458
          %v464 = vmul.f32 %v393, %v458
          %v465 = vmul.f32 %v394, %v458
          %v466 = vmul.f32 %v395, %v458
          %v467 = vmul.f32 %v396, %v458
          %v468 = vmul.f32 %v397, %v458
          %v469 = vmul.f32 %v398, %v458
          %v470 = vmul.f32 %v399, %v458
          %v471 = vmul.f32 %v400, %v458
          %v472 = vmul.f32 %v401, %v458
          %v473 = vmul.f32 %v402, %v458
          %v474 = vmul.f32 %v403, %v458
          %v475 = vmul.f32 %v404, %v458
          %v476 = vmul.f32 %v405, %v458
          %v477 = vmul.f32 %v406, %v458
          %v478 = vmul.f32 %v407, %v458
          %v479 = vmul.f32 %v408, %v458
          %v480 = vmul.f32 %v409, %v458
          %v481 = vmul.f32 %v410, %v458
          %v482 = vmul.f32 %v411, %v458
          %v483 = vmul.f32 %v412, %v458
          %v484 = vmul.f32 %v413, %v458
          %v485 = vmul.f32 %v414, %v458
          %v486 = vmul.f32 %v415, %v458
          %v487 = vmul.f32 %v416, %v458
          %v488 = vmul.f32 %v417, %v458
          %v489 = vmul.f32 %v418, %v458
          %v490 = vmul.f32 %v419, %v458
          %v491 = vmul.f32 %v420, %v458
          %v492 = vmul.f32 %v421, %v458
          %v493 = vmul.f32 %v422, %v458
          %v494 = vmul.f32 %v423, %v458
          %v495 = vmul.f32 %v424, %v458
          %v496 = vmul.f32 %v425, %v458
          %v497 = vmul.f32 %v426, %v458
          %v498 = vmul.f32 %v427, %v458
          %v499 = vmul.f32 %v428, %v458
          %v500 = vmul.f32 %v429, %v458
          %v501 = vmul.f32 %v430, %v458
          %v502 = vmul.f32 %v431, %v458
          %v503 = vmul.f32 %v432, %v458
          %v504 = vmul.f32 %v433, %v458
          %v505 = vmul.f32 %v434, %v458
          %v506 = vmul.f32 %v435, %v458
          %v507 = vmul.f32 %v436, %v458
          %v508 = vmul.f32 %v437, %v458
          %v509 = vmul.f32 %v438, %v458
          %v510 = vmul.f32 %v439, %v458
          %v511 = vmul.f32 %v440, %v458
          %v512 = vmul.f32 %v441, %v458
          %v513 = vmul.f32 %v442, %v458
          %v514 = vmul.f32 %v443, %v458
          %v515 = vmul.f32 %v444, %v458
          %v516 = vmul.f32 %v445, %v458
          %v517 = vmul.f32 %v446, %v458
          %v518 = vmul.f32 %v447, %v458
          %v519 = vmul.f32 %v448, %v458
          %v520 = vmul.f32 %v449, %v458
          %v521 = vmul.f32 %v450, %v458
          %v522 = vmul.f32 %v451, %v458
          %v523 = vmul.f32 %v452, %v458
          %v524 = vld [vmem:[%s2] sm:$0x1]
          %v526 = vlaneseq
          %v527 = vshrl.u32 %v526, 7
          %v528 = vsub.s32 0, %v527
          %v529 = vrot.slane %v524, %v528
          %v531 = vadd.f32 %v460, %v529
          %v532 = vadd.f32 %v461, %v529
          %v533 = vadd.f32 %v462, %v529
          %v534 = vadd.f32 %v463, %v529
          %v535 = vadd.f32 %v464, %v529
          %v536 = vadd.f32 %v465, %v529
          %v537 = vadd.f32 %v466, %v529
          %v538 = vadd.f32 %v467, %v529
          %v539 = vadd.f32 %v468, %v529
          %v540 = vadd.f32 %v469, %v529
          %v541 = vadd.f32 %v470, %v529
          %v542 = vadd.f32 %v471, %v529
          %v543 = vadd.f32 %v472, %v529
          %v544 = vadd.f32 %v473, %v529
          %v545 = vadd.f32 %v474, %v529
          %v546 = vadd.f32 %v475, %v529
          %v547 = vadd.f32 %v476, %v529
          %v548 = vadd.f32 %v477, %v529
          %v549 = vadd.f32 %v478, %v529
          %v550 = vadd.f32 %v479, %v529
          %v551 = vadd.f32 %v480, %v529
          %v552 = vadd.f32 %v481, %v529
          %v553 = vadd.f32 %v482, %v529
          %v554 = vadd.f32 %v483, %v529
          %v555 = vadd.f32 %v484, %v529
          %v556 = vadd.f32 %v485, %v529
          %v557 = vadd.f32 %v486, %v529
          %v558 = vadd.f32 %v487, %v529
          %v559 = vadd.f32 %v488, %v529
          %v560 = vadd.f32 %v489, %v529
          %v561 = vadd.f32 %v490, %v529
          %v562 = vadd.f32 %v491, %v529
          %v563 = vadd.f32 %v492, %v529
          %v564 = vadd.f32 %v493, %v529
          %v565 = vadd.f32 %v494, %v529
          %v566 = vadd.f32 %v495, %v529
          %v567 = vadd.f32 %v496, %v529
          %v568 = vadd.f32 %v497, %v529
          %v569 = vadd.f32 %v498, %v529
          %v570 = vadd.f32 %v499, %v529
          %v571 = vadd.f32 %v500, %v529
          %v572 = vadd.f32 %v501, %v529
          %v573 = vadd.f32 %v502, %v529
          %v574 = vadd.f32 %v503, %v529
          %v575 = vadd.f32 %v504, %v529
          %v576 = vadd.f32 %v505, %v529
          %v577 = vadd.f32 %v506, %v529
          %v578 = vadd.f32 %v507, %v529
          %v579 = vadd.f32 %v508, %v529
          %v580 = vadd.f32 %v509, %v529
          %v581 = vadd.f32 %v510, %v529
          %v582 = vadd.f32 %v511, %v529
          %v583 = vadd.f32 %v512, %v529
          %v584 = vadd.f32 %v513, %v529
          %v585 = vadd.f32 %v514, %v529
          %v586 = vadd.f32 %v515, %v529
          %v587 = vadd.f32 %v516, %v529
          %v588 = vadd.f32 %v517, %v529
          %v589 = vadd.f32 %v518, %v529
          %v590 = vadd.f32 %v519, %v529
          %v591 = vadd.f32 %v520, %v529
          %v592 = vadd.f32 %v521, %v529
          %v593 = vadd.f32 %v522, %v529
          %v594 = vadd.f32 %v523, %v529
          %v595 = vmax.f32 %v531, 0.0
          %v596 = vmax.f32 %v532, 0.0
          %v597 = vmax.f32 %v533, 0.0
          %v598 = vmax.f32 %v534, 0.0
          %v599 = vmax.f32 %v535, 0.0
          %v600 = vmax.f32 %v536, 0.0
          %v601 = vmax.f32 %v537, 0.0
          %v602 = vmax.f32 %v538, 0.0
          %v603 = vmax.f32 %v539, 0.0
          %v604 = vmax.f32 %v540, 0.0
          %v605 = vmax.f32 %v541, 0.0
          %v606 = vmax.f32 %v542, 0.0
          %v607 = vmax.f32 %v543, 0.0
          %v608 = vmax.f32 %v544, 0.0
          %v609 = vmax.f32 %v545, 0.0
          %v610 = vmax.f32 %v546, 0.0
          %v611 = vmax.f32 %v547, 0.0
          %v612 = vmax.f32 %v548, 0.0
          %v613 = vmax.f32 %v549, 0.0
          %v614 = vmax.f32 %v550, 0.0
          %v615 = vmax.f32 %v551, 0.0
          %v616 = vmax.f32 %v552, 0.0
          %v617 = vmax.f32 %v553, 0.0
          %v618 = vmax.f32 %v554, 0.0
          %v619 = vmax.f32 %v555, 0.0
          %v620 = vmax.f32 %v556, 0.0
          %v621 = vmax.f32 %v557, 0.0
          %v622 = vmax.f32 %v558, 0.0
          %v623 = vmax.f32 %v559, 0.0
          %v624 = vmax.f32 %v560, 0.0
          %v625 = vmax.f32 %v561, 0.0
          %v626 = vmax.f32 %v562, 0.0
          %v627 = vmax.f32 %v563, 0.0
          %v628 = vmax.f32 %v564, 0.0
          %v629 = vmax.f32 %v565, 0.0
          %v630 = vmax.f32 %v566, 0.0
          %v631 = vmax.f32 %v567, 0.0
          %v632 = vmax.f32 %v568, 0.0
          %v633 = vmax.f32 %v569, 0.0
          %v634 = vmax.f32 %v570, 0.0
          %v635 = vmax.f32 %v571, 0.0
          %v636 = vmax.f32 %v572, 0.0
          %v637 = vmax.f32 %v573, 0.0
          %v638 = vmax.f32 %v574, 0.0
          %v639 = vmax.f32 %v575, 0.0
          %v640 = vmax.f32 %v576, 0.0
          %v641 = vmax.f32 %v577, 0.0
          %v642 = vmax.f32 %v578, 0.0
          %v643 = vmax.f32 %v579, 0.0
          %v644 = vmax.f32 %v580, 0.0
          %v645 = vmax.f32 %v581, 0.0
          %v646 = vmax.f32 %v582, 0.0
          %v647 = vmax.f32 %v583, 0.0
          %v648 = vmax.f32 %v584, 0.0
          %v649 = vmax.f32 %v585, 0.0
          %v650 = vmax.f32 %v586, 0.0
          %v651 = vmax.f32 %v587, 0.0
          %v652 = vmax.f32 %v588, 0.0
          %v653 = vmax.f32 %v589, 0.0
          %v654 = vmax.f32 %v590, 0.0
          %v655 = vmax.f32 %v591, 0.0
          %v656 = vmax.f32 %v592, 0.0
          %v657 = vmax.f32 %v593, 0.0
          %v658 = vmax.f32 %v594, 0.0
          %v659 = vpack.c.bf16 %v596, %v595
          %v660 = vpack.c.bf16 %v598, %v597
          %v661 = vpack.c.bf16 %v600, %v599
          %v662 = vpack.c.bf16 %v602, %v601
          %v663 = vpack.c.bf16 %v604, %v603
          %v664 = vpack.c.bf16 %v606, %v605
          %v665 = vpack.c.bf16 %v608, %v607
          %v666 = vpack.c.bf16 %v610, %v609
          %v667 = vpack.c.bf16 %v612, %v611
          %v668 = vpack.c.bf16 %v614, %v613
          %v669 = vpack.c.bf16 %v616, %v615
          %v670 = vpack.c.bf16 %v618, %v617
          %v671 = vpack.c.bf16 %v620, %v619
          %v672 = vpack.c.bf16 %v622, %v621
          %v673 = vpack.c.bf16 %v624, %v623
          %v674 = vpack.c.bf16 %v626, %v625
          %v675 = vpack.c.bf16 %v628, %v627
          %v676 = vpack.c.bf16 %v630, %v629
          %v677 = vpack.c.bf16 %v632, %v631
          %v678 = vpack.c.bf16 %v634, %v633
          %v679 = vpack.c.bf16 %v636, %v635
          %v680 = vpack.c.bf16 %v638, %v637
          %v681 = vpack.c.bf16 %v640, %v639
          %v682 = vpack.c.bf16 %v642, %v641
          %v683 = vpack.c.bf16 %v644, %v643
          %v684 = vpack.c.bf16 %v646, %v645
          %v685 = vpack.c.bf16 %v648, %v647
          %v686 = vpack.c.bf16 %v650, %v649
          %v687 = vpack.c.bf16 %v652, %v651
          %v688 = vpack.c.bf16 %v654, %v653
          %v689 = vpack.c.bf16 %v656, %v655
          %v690 = vpack.c.bf16 %v658, %v657
          %v692 = vshrl.u32 %v659, 16
          %v694 = vrot.slane %v692, 7
          %v695 = vshll.u32 %v659, 16
          %v697 = vor.u32 %v694, %v695
          %v699 = vshrl.u32 %v660, 16
          %v701 = vrot.slane %v699, 7
          %v702 = vshll.u32 %v660, 16
          %v704 = vor.u32 %v701, %v702
          %v706 = vshrl.u32 %v661, 16
          %v708 = vrot.slane %v706, 7
          %v709 = vshll.u32 %v661, 16
          %v711 = vor.u32 %v708, %v709
          %v713 = vshrl.u32 %v662, 16
          %v715 = vrot.slane %v713, 7
          %v716 = vshll.u32 %v662, 16
          %v718 = vor.u32 %v715, %v716
          %v720 = vshrl.u32 %v663, 16
          %v722 = vrot.slane %v720, 7
          %v723 = vshll.u32 %v663, 16
          %v725 = vor.u32 %v722, %v723
          %v727 = vshrl.u32 %v664, 16
          %v729 = vrot.slane %v727, 7
          %v730 = vshll.u32 %v664, 16
          %v732 = vor.u32 %v729, %v730
          %v734 = vshrl.u32 %v665, 16
          %v736 = vrot.slane %v734, 7
          %v737 = vshll.u32 %v665, 16
          %v739 = vor.u32 %v736, %v737
          %v741 = vshrl.u32 %v666, 16
          %v743 = vrot.slane %v741, 7
          %v744 = vshll.u32 %v666, 16
          %v746 = vor.u32 %v743, %v744
          %v748 = vshrl.u32 %v667, 16
          %v750 = vrot.slane %v748, 7
          %v751 = vshll.u32 %v667, 16
          %v753 = vor.u32 %v750, %v751
          %v755 = vshrl.u32 %v668, 16
          %v757 = vrot.slane %v755, 7
          %v758 = vshll.u32 %v668, 16
          %v760 = vor.u32 %v757, %v758
          %v762 = vshrl.u32 %v669, 16
          %v764 = vrot.slane %v762, 7
          %v765 = vshll.u32 %v669, 16
          %v767 = vor.u32 %v764, %v765
          %v769 = vshrl.u32 %v670, 16
          %v771 = vrot.slane %v769, 7
          %v772 = vshll.u32 %v670, 16
          %v774 = vor.u32 %v771, %v772
          %v776 = vshrl.u32 %v671, 16
          %v778 = vrot.slane %v776, 7
          %v779 = vshll.u32 %v671, 16
          %v781 = vor.u32 %v778, %v779
          %v783 = vshrl.u32 %v672, 16
          %v785 = vrot.slane %v783, 7
          %v786 = vshll.u32 %v672, 16
          %v788 = vor.u32 %v785, %v786
          %v790 = vshrl.u32 %v673, 16
          %v792 = vrot.slane %v790, 7
          %v793 = vshll.u32 %v673, 16
          %v795 = vor.u32 %v792, %v793
          %v797 = vshrl.u32 %v674, 16
          %v799 = vrot.slane %v797, 7
          %v800 = vshll.u32 %v674, 16
          %v802 = vor.u32 %v799, %v800
          %v804 = vshrl.u32 %v675, 16
          %v806 = vrot.slane %v804, 7
          %v807 = vshll.u32 %v675, 16
          %v809 = vor.u32 %v806, %v807
          %v811 = vshrl.u32 %v676, 16
          %v813 = vrot.slane %v811, 7
          %v814 = vshll.u32 %v676, 16
          %v816 = vor.u32 %v813, %v814
          %v818 = vshrl.u32 %v677, 16
          %v820 = vrot.slane %v818, 7
          %v821 = vshll.u32 %v677, 16
          %v823 = vor.u32 %v820, %v821
          %v825 = vshrl.u32 %v678, 16
          %v827 = vrot.slane %v825, 7
          %v828 = vshll.u32 %v678, 16
          %v830 = vor.u32 %v827, %v828
          %v832 = vshrl.u32 %v679, 16
          %v834 = vrot.slane %v832, 7
          %v835 = vshll.u32 %v679, 16
          %v837 = vor.u32 %v834, %v835
          %v839 = vshrl.u32 %v680, 16
          %v841 = vrot.slane %v839, 7
          %v842 = vshll.u32 %v680, 16
          %v844 = vor.u32 %v841, %v842
          %v846 = vshrl.u32 %v681, 16
          %v848 = vrot.slane %v846, 7
          %v849 = vshll.u32 %v681, 16
          %v851 = vor.u32 %v848, %v849
          %v853 = vshrl.u32 %v682, 16
          %v855 = vrot.slane %v853, 7
          %v856 = vshll.u32 %v682, 16
          %v858 = vor.u32 %v855, %v856
          %v860 = vshrl.u32 %v683, 16
          %v862 = vrot.slane %v860, 7
          %v863 = vshll.u32 %v683, 16
          %v865 = vor.u32 %v862, %v863
          %v867 = vshrl.u32 %v684, 16
          %v869 = vrot.slane %v867, 7
          %v870 = vshll.u32 %v684, 16
          %v872 = vor.u32 %v869, %v870
          %v874 = vshrl.u32 %v685, 16
          %v876 = vrot.slane %v874, 7
          %v877 = vshll.u32 %v685, 16
          %v879 = vor.u32 %v876, %v877
          %v881 = vshrl.u32 %v686, 16
          %v883 = vrot.slane %v881, 7
          %v884 = vshll.u32 %v686, 16
          %v886 = vor.u32 %v883, %v884
          %v888 = vshrl.u32 %v687, 16
          %v890 = vrot.slane %v888, 7
          %v891 = vshll.u32 %v687, 16
          %v893 = vor.u32 %v890, %v891
          %v895 = vshrl.u32 %v688, 16
          %v897 = vrot.slane %v895, 7
          %v898 = vshll.u32 %v688, 16
          %v900 = vor.u32 %v897, %v898
          %v902 = vshrl.u32 %v689, 16
          %v904 = vrot.slane %v902, 7
          %v905 = vshll.u32 %v689, 16
          %v907 = vor.u32 %v904, %v905
          %v909 = vshrl.u32 %v690, 16
          %v911 = vrot.slane %v909, 7
          %v912 = vshll.u32 %v690, 16
          %v914 = vor.u32 %v911, %v912
          %vm947 = vcmask 1040384
          %vm948 = vsmask.f32 256
          %vm949 = vmand %vm947, %vm948
          %v950 = vsel %vm949, 0, %v697
          %v951 = vsel %vm949, 0, %v704
          %v952 = vsel %vm949, 0, %v711
          %v953 = vsel %vm949, 0, %v718
          %v954 = vsel %vm949, 0, %v725
          %v955 = vsel %vm949, 0, %v732
          %v956 = vsel %vm949, 0, %v739
          %v957 = vsel %vm949, 0, %v746
          %v958 = vsel %vm949, 0, %v753
          %v959 = vsel %vm949, 0, %v760
          %v960 = vsel %vm949, 0, %v767
          %v961 = vsel %vm949, 0, %v774
          %v962 = vsel %vm949, 0, %v781
          %v963 = vsel %vm949, 0, %v788
          %v964 = vsel %vm949, 0, %v795
          %v965 = vsel %vm949, 0, %v802
          %v966 = vsel %vm949, 0, %v809
          %v967 = vsel %vm949, 0, %v816
          %v968 = vsel %vm949, 0, %v823
          %v969 = vsel %vm949, 0, %v830
          %v970 = vsel %vm949, 0, %v837
          %v971 = vsel %vm949, 0, %v844
          %v972 = vsel %vm949, 0, %v851
          %v973 = vsel %vm949, 0, %v858
          %v974 = vsel %vm949, 0, %v865
          %v975 = vsel %vm949, 0, %v872
          %v976 = vsel %vm949, 0, %v879
          %v977 = vsel %vm949, 0, %v886
          %v978 = vsel %vm949, 0, %v893
          %v979 = vsel %vm949, 0, %v900
          %v980 = vsel %vm949, 0, %v907
          %v981 = vsel %vm949, 0, %v914
          %v982 = vrot.slane %v695, 1
          %v983 = vor.u32 %v692, %v982
          %v984 = vrot.slane %v702, 1
          %v985 = vor.u32 %v699, %v984
          %v986 = vrot.slane %v709, 1
          %v987 = vor.u32 %v706, %v986
          %v988 = vrot.slane %v716, 1
          %v989 = vor.u32 %v713, %v988
          %v990 = vrot.slane %v723, 1
          %v991 = vor.u32 %v720, %v990
          %v992 = vrot.slane %v730, 1
          %v993 = vor.u32 %v727, %v992
          %v994 = vrot.slane %v737, 1
          %v995 = vor.u32 %v734, %v994
          %v996 = vrot.slane %v744, 1
          %v997 = vor.u32 %v741, %v996
          %v998 = vrot.slane %v751, 1
          %v999 = vor.u32 %v748, %v998
          %v1000 = vrot.slane %v758, 1
          %v1001 = vor.u32 %v755, %v1000
          %v1002 = vrot.slane %v765, 1
          %v1003 = vor.u32 %v762, %v1002
          %v1004 = vrot.slane %v772, 1
          %v1005 = vor.u32 %v769, %v1004
          %v1006 = vrot.slane %v779, 1
          %v1007 = vor.u32 %v776, %v1006
          %v1008 = vrot.slane %v786, 1
          %v1009 = vor.u32 %v783, %v1008
          %v1010 = vrot.slane %v793, 1
          %v1011 = vor.u32 %v790, %v1010
          %v1012 = vrot.slane %v800, 1
          %v1013 = vor.u32 %v797, %v1012
          %v1014 = vrot.slane %v807, 1
          %v1015 = vor.u32 %v804, %v1014
          %v1016 = vrot.slane %v814, 1
          %v1017 = vor.u32 %v811, %v1016
          %v1018 = vrot.slane %v821, 1
          %v1019 = vor.u32 %v818, %v1018
          %v1020 = vrot.slane %v828, 1
          %v1021 = vor.u32 %v825, %v1020
          %v1022 = vrot.slane %v835, 1
          %v1023 = vor.u32 %v832, %v1022
          %v1024 = vrot.slane %v842, 1
          %v1025 = vor.u32 %v839, %v1024
          %v1026 = vrot.slane %v849, 1
          %v1027 = vor.u32 %v846, %v1026
          %v1028 = vrot.slane %v856, 1
          %v1029 = vor.u32 %v853, %v1028
          %v1030 = vrot.slane %v863, 1
          %v1031 = vor.u32 %v860, %v1030
          %v1032 = vrot.slane %v870, 1
          %v1033 = vor.u32 %v867, %v1032
          %v1034 = vrot.slane %v877, 1
          %v1035 = vor.u32 %v874, %v1034
          %v1036 = vrot.slane %v884, 1
          %v1037 = vor.u32 %v881, %v1036
          %v1038 = vrot.slane %v891, 1
          %v1039 = vor.u32 %v888, %v1038
          %v1040 = vrot.slane %v898, 1
          %v1041 = vor.u32 %v895, %v1040
          %v1042 = vrot.slane %v905, 1
          %v1043 = vor.u32 %v902, %v1042
          %v1044 = vrot.slane %v912, 1
          %v1045 = vor.u32 %v909, %v1044
          %vm1078 = vcmask 1047552
          %vm1079 = vsmask.f32 7424
          %vm1080 = vmand %vm1078, %vm1079
          %v1081 = vsel %vm1080, %v983, 0
          %v1082 = vsel %vm1080, %v985, 0
          %v1083 = vsel %vm1080, %v987, 0
          %v1084 = vsel %vm1080, %v989, 0
          %v1085 = vsel %vm1080, %v991, 0
          %v1086 = vsel %vm1080, %v993, 0
          %v1087 = vsel %vm1080, %v995, 0
          %v1088 = vsel %vm1080, %v997, 0
          %v1089 = vsel %vm1080, %v999, 0
          %v1090 = vsel %vm1080, %v1001, 0
          %v1091 = vsel %vm1080, %v1003, 0
          %v1092 = vsel %vm1080, %v1005, 0
          %v1093 = vsel %vm1080, %v1007, 0
          %v1094 = vsel %vm1080, %v1009, 0
          %v1095 = vsel %vm1080, %v1011, 0
          %v1096 = vsel %vm1080, %v1013, 0
          %v1097 = vsel %vm1080, %v1015, 0
          %v1098 = vsel %vm1080, %v1017, 0
          %v1099 = vsel %vm1080, %v1019, 0
          %v1100 = vsel %vm1080, %v1021, 0
          %v1101 = vsel %vm1080, %v1023, 0
          %v1102 = vsel %vm1080, %v1025, 0
          %v1103 = vsel %vm1080, %v1027, 0
          %v1104 = vsel %vm1080, %v1029, 0
          %v1105 = vsel %vm1080, %v1031, 0
          %v1106 = vsel %vm1080, %v1033, 0
          %v1107 = vsel %vm1080, %v1035, 0
          %v1108 = vsel %vm1080, %v1037, 0
          %v1109 = vsel %vm1080, %v1039, 0
          %v1110 = vsel %vm1080, %v1041, 0
          %v1111 = vsel %vm1080, %v1043, 0
          %v1112 = vsel %vm1080, %v1045, 0
          %1145 = vrot.lane.b32.xlu0 %v659, 64
          %v1146 = vpop.permute.xlu0 %1145
          %1147 = vrot.lane.b32.xlu0 %v660, 64
          %v1148 = vpop.permute.xlu0 %1147
          %1149 = vrot.lane.b32.xlu0 %v661, 64
          %v1150 = vpop.permute.xlu0 %1149
          %1151 = vrot.lane.b32.xlu0 %v662, 64
          %v1152 = vpop.permute.xlu0 %1151
          %1153 = vrot.lane.b32.xlu0 %v663, 64
          %v1154 = vpop.permute.xlu0 %1153
          %1155 = vrot.lane.b32.xlu0 %v664, 64
          %v1156 = vpop.permute.xlu0 %1155
          %1157 = vrot.lane.b32.xlu0 %v665, 64
          %v1158 = vpop.permute.xlu0 %1157
          %1159 = vrot.lane.b32.xlu0 %v666, 64
          %v1160 = vpop.permute.xlu0 %1159
          %1161 = vrot.lane.b32.xlu0 %v667, 64
          %v1162 = vpop.permute.xlu0 %1161
          %1163 = vrot.lane.b32.xlu0 %v668, 64
          %v1164 = vpop.permute.xlu0 %1163
          %1165 = vrot.lane.b32.xlu0 %v669, 64
          %v1166 = vpop.permute.xlu0 %1165
          %1167 = vrot.lane.b32.xlu0 %v670, 64
          %v1168 = vpop.permute.xlu0 %1167
          %1169 = vrot.lane.b32.xlu0 %v671, 64
          %v1170 = vpop.permute.xlu0 %1169
          %1171 = vrot.lane.b32.xlu0 %v672, 64
          %v1172 = vpop.permute.xlu0 %1171
          %1173 = vrot.lane.b32.xlu0 %v673, 64
          %v1174 = vpop.permute.xlu0 %1173
          %1175 = vrot.lane.b32.xlu0 %v674, 64
          %v1176 = vpop.permute.xlu0 %1175
          %1177 = vrot.lane.b32.xlu0 %v675, 64
          %v1178 = vpop.permute.xlu0 %1177
          %1179 = vrot.lane.b32.xlu0 %v676, 64
          %v1180 = vpop.permute.xlu0 %1179
          %1181 = vrot.lane.b32.xlu0 %v677, 64
          %v1182 = vpop.permute.xlu0 %1181
          %1183 = vrot.lane.b32.xlu0 %v678, 64
          %v1184 = vpop.permute.xlu0 %1183
          %1185 = vrot.lane.b32.xlu0 %v679, 64
          %v1186 = vpop.permute.xlu0 %1185
          %1187 = vrot.lane.b32.xlu0 %v680, 64
          %v1188 = vpop.permute.xlu0 %1187
          %1189 = vrot.lane.b32.xlu0 %v681, 64
          %v1190 = vpop.permute.xlu0 %1189
          %1191 = vrot.lane.b32.xlu0 %v682, 64
          %v1192 = vpop.permute.xlu0 %1191
          %1193 = vrot.lane.b32.xlu0 %v683, 64
          %v1194 = vpop.permute.xlu0 %1193
          %1195 = vrot.lane.b32.xlu0 %v684, 64
          %v1196 = vpop.permute.xlu0 %1195
          %1197 = vrot.lane.b32.xlu0 %v685, 64
          %v1198 = vpop.permute.xlu0 %1197
          %1199 = vrot.lane.b32.xlu0 %v686, 64
          %v1200 = vpop.permute.xlu0 %1199
          %1201 = vrot.lane.b32.xlu0 %v687, 64
          %v1202 = vpop.permute.xlu0 %1201
          %1203 = vrot.lane.b32.xlu0 %v688, 64
          %v1204 = vpop.permute.xlu0 %1203
          %1205 = vrot.lane.b32.xlu0 %v689, 64
          %v1206 = vpop.permute.xlu0 %1205
          %1207 = vrot.lane.b32.xlu0 %v690, 64
          %v1208 = vpop.permute.xlu0 %1207
          %vm1209 = vcmask 523264
          %v1212 = vsel %vm1209, %v950, %v1146
          %v1215 = vsel %vm1209, %v951, %v1148
          %v1218 = vsel %vm1209, %v952, %v1150
          %v1221 = vsel %vm1209, %v953, %v1152
          %v1224 = vsel %vm1209, %v954, %v1154
          %v1227 = vsel %vm1209, %v955, %v1156
          %v1230 = vsel %vm1209, %v956, %v1158
          %v1233 = vsel %vm1209, %v957, %v1160
          %v1236 = vsel %vm1209, %v958, %v1162
          %v1239 = vsel %vm1209, %v959, %v1164
          %v1242 = vsel %vm1209, %v960, %v1166
          %v1245 = vsel %vm1209, %v961, %v1168
          %v1248 = vsel %vm1209, %v962, %v1170
          %v1251 = vsel %vm1209, %v963, %v1172
          %v1254 = vsel %vm1209, %v964, %v1174
          %v1257 = vsel %vm1209, %v965, %v1176
          %v1260 = vsel %vm1209, %v966, %v1178
          %v1263 = vsel %vm1209, %v967, %v1180
          %v1266 = vsel %vm1209, %v968, %v1182
          %v1269 = vsel %vm1209, %v969, %v1184
          %v1272 = vsel %vm1209, %v970, %v1186
          %v1275 = vsel %vm1209, %v971, %v1188
          %v1278 = vsel %vm1209, %v972, %v1190
          %v1281 = vsel %vm1209, %v973, %v1192
          %v1284 = vsel %vm1209, %v974, %v1194
          %v1287 = vsel %vm1209, %v975, %v1196
          %v1290 = vsel %vm1209, %v976, %v1198
          %v1293 = vsel %vm1209, %v977, %v1200
          %v1296 = vsel %vm1209, %v978, %v1202
          %v1299 = vsel %vm1209, %v979, %v1204
          %v1302 = vsel %vm1209, %v980, %v1206
          %v1305 = vsel %vm1209, %v981, %v1208
          %v1370 = vunpack.c.l.b16 %v1212
          %v1371 = vunpack.c.l.b16 %v1081
          %v1372 = vunpack.c.h.b16 %v1212
          %v1373 = vunpack.c.h.b16 %v1081
          %v1374 = vunpack.c.l.b16 %v1215
          %v1375 = vunpack.c.l.b16 %v1082
          %v1376 = vunpack.c.h.b16 %v1215
          %v1377 = vunpack.c.h.b16 %v1082
          %v1378 = vunpack.c.l.b16 %v1218
          %v1379 = vunpack.c.l.b16 %v1083
          %v1380 = vunpack.c.h.b16 %v1218
          %v1381 = vunpack.c.h.b16 %v1083
          %v1382 = vunpack.c.l.b16 %v1221
          %v1383 = vunpack.c.l.b16 %v1084
          %v1384 = vunpack.c.h.b16 %v1221
          %v1385 = vunpack.c.h.b16 %v1084
          %v1386 = vunpack.c.l.b16 %v1224
          %v1387 = vunpack.c.l.b16 %v1085
          %v1388 = vunpack.c.h.b16 %v1224
          %v1389 = vunpack.c.h.b16 %v1085
          %v1390 = vunpack.c.l.b16 %v1227
          %v1391 = vunpack.c.l.b16 %v1086
          %v1392 = vunpack.c.h.b16 %v1227
          %v1393 = vunpack.c.h.b16 %v1086
          %v1394 = vunpack.c.l.b16 %v1230
          %v1395 = vunpack.c.l.b16 %v1087
          %v1396 = vunpack.c.h.b16 %v1230
          %v1397 = vunpack.c.h.b16 %v1087
          %v1398 = vunpack.c.l.b16 %v1233
          %v1399 = vunpack.c.l.b16 %v1088
          %v1400 = vunpack.c.h.b16 %v1233
          %v1401 = vunpack.c.h.b16 %v1088
          %v1402 = vunpack.c.l.b16 %v1236
          %v1403 = vunpack.c.l.b16 %v1089
          %v1404 = vunpack.c.h.b16 %v1236
          %v1405 = vunpack.c.h.b16 %v1089
          %v1406 = vunpack.c.l.b16 %v1239
          %v1407 = vunpack.c.l.b16 %v1090
          %v1408 = vunpack.c.h.b16 %v1239
          %v1409 = vunpack.c.h.b16 %v1090
          %v1410 = vunpack.c.l.b16 %v1242
          %v1411 = vunpack.c.l.b16 %v1091
          %v1412 = vunpack.c.h.b16 %v1242
          %v1413 = vunpack.c.h.b16 %v1091
          %v1414 = vunpack.c.l.b16 %v1245
          %v1415 = vunpack.c.l.b16 %v1092
          %v1416 = vunpack.c.h.b16 %v1245
          %v1417 = vunpack.c.h.b16 %v1092
          %v1418 = vunpack.c.l.b16 %v1248
          %v1419 = vunpack.c.l.b16 %v1093
          %v1420 = vunpack.c.h.b16 %v1248
          %v1421 = vunpack.c.h.b16 %v1093
          %v1422 = vunpack.c.l.b16 %v1251
          %v1423 = vunpack.c.l.b16 %v1094
          %v1424 = vunpack.c.h.b16 %v1251
          %v1425 = vunpack.c.h.b16 %v1094
          %v1426 = vunpack.c.l.b16 %v1254
          %v1427 = vunpack.c.l.b16 %v1095
          %v1428 = vunpack.c.h.b16 %v1254
          %v1429 = vunpack.c.h.b16 %v1095
          %v1430 = vunpack.c.l.b16 %v1257
          %v1431 = vunpack.c.l.b16 %v1096
          %v1432 = vunpack.c.h.b16 %v1257
          %v1433 = vunpack.c.h.b16 %v1096
          %v1434 = vunpack.c.l.b16 %v1260
          %v1435 = vunpack.c.l.b16 %v1097
          %v1436 = vunpack.c.h.b16 %v1260
          %v1437 = vunpack.c.h.b16 %v1097
          %v1438 = vunpack.c.l.b16 %v1263
          %v1439 = vunpack.c.l.b16 %v1098
          %v1440 = vunpack.c.h.b16 %v1263
          %v1441 = vunpack.c.h.b16 %v1098
          %v1442 = vunpack.c.l.b16 %v1266
          %v1443 = vunpack.c.l.b16 %v1099
          %v1444 = vunpack.c.h.b16 %v1266
          %v1445 = vunpack.c.h.b16 %v1099
          %v1446 = vunpack.c.l.b16 %v1269
          %v1447 = vunpack.c.l.b16 %v1100
          %v1448 = vunpack.c.h.b16 %v1269
          %v1449 = vunpack.c.h.b16 %v1100
          %v1450 = vunpack.c.l.b16 %v1272
          %v1451 = vunpack.c.l.b16 %v1101
          %v1452 = vunpack.c.h.b16 %v1272
          %v1453 = vunpack.c.h.b16 %v1101
          %v1454 = vunpack.c.l.b16 %v1275
          %v1455 = vunpack.c.l.b16 %v1102
          %v1456 = vunpack.c.h.b16 %v1275
          %v1457 = vunpack.c.h.b16 %v1102
          %v1458 = vunpack.c.l.b16 %v1278
          %v1459 = vunpack.c.l.b16 %v1103
          %v1460 = vunpack.c.h.b16 %v1278
          %v1461 = vunpack.c.h.b16 %v1103
          %v1462 = vunpack.c.l.b16 %v1281
          %v1463 = vunpack.c.l.b16 %v1104
          %v1464 = vunpack.c.h.b16 %v1281
          %v1465 = vunpack.c.h.b16 %v1104
          %v1466 = vunpack.c.l.b16 %v1284
          %v1467 = vunpack.c.l.b16 %v1105
          %v1468 = vunpack.c.h.b16 %v1284
          %v1469 = vunpack.c.h.b16 %v1105
          %v1470 = vunpack.c.l.b16 %v1287
          %v1471 = vunpack.c.l.b16 %v1106
          %v1472 = vunpack.c.h.b16 %v1287
          %v1473 = vunpack.c.h.b16 %v1106
          %v1474 = vunpack.c.l.b16 %v1290
          %v1475 = vunpack.c.l.b16 %v1107
          %v1476 = vunpack.c.h.b16 %v1290
          %v1477 = vunpack.c.h.b16 %v1107
          %v1478 = vunpack.c.l.b16 %v1293
          %v1479 = vunpack.c.l.b16 %v1108
          %v1480 = vunpack.c.h.b16 %v1293
          %v1481 = vunpack.c.h.b16 %v1108
          %v1482 = vunpack.c.l.b16 %v1296
          %v1483 = vunpack.c.l.b16 %v1109
          %v1484 = vunpack.c.h.b16 %v1296
          %v1485 = vunpack.c.h.b16 %v1109
          %v1486 = vunpack.c.l.b16 %v1299
          %v1487 = vunpack.c.l.b16 %v1110
          %v1488 = vunpack.c.h.b16 %v1299
          %v1489 = vunpack.c.h.b16 %v1110
          %v1490 = vunpack.c.l.b16 %v1302
          %v1491 = vunpack.c.l.b16 %v1111
          %v1492 = vunpack.c.h.b16 %v1302
          %v1493 = vunpack.c.h.b16 %v1111
          %v1494 = vunpack.c.l.b16 %v1305
          %v1495 = vunpack.c.l.b16 %v1112
          %v1496 = vunpack.c.h.b16 %v1305
          %v1497 = vunpack.c.h.b16 %v1112
          %v1498 = vpack.c.b16 %v1371, %v1370
          %v1499 = vpack.c.b16 %v1373, %v1372
          %v1500 = vpack.c.b16 %v1375, %v1374
          %v1501 = vpack.c.b16 %v1377, %v1376
          %v1502 = vpack.c.b16 %v1379, %v1378
          %v1503 = vpack.c.b16 %v1381, %v1380
          %v1504 = vpack.c.b16 %v1383, %v1382
          %v1505 = vpack.c.b16 %v1385, %v1384
          %v1506 = vpack.c.b16 %v1387, %v1386
          %v1507 = vpack.c.b16 %v1389, %v1388
          %v1508 = vpack.c.b16 %v1391, %v1390
          %v1509 = vpack.c.b16 %v1393, %v1392
          %v1510 = vpack.c.b16 %v1395, %v1394
          %v1511 = vpack.c.b16 %v1397, %v1396
          %v1512 = vpack.c.b16 %v1399, %v1398
          %v1513 = vpack.c.b16 %v1401, %v1400
          %v1514 = vpack.c.b16 %v1403, %v1402
          %v1515 = vpack.c.b16 %v1405, %v1404
          %v1516 = vpack.c.b16 %v1407, %v1406
          %v1517 = vpack.c.b16 %v1409, %v1408
          %v1518 = vpack.c.b16 %v1411, %v1410
          %v1519 = vpack.c.b16 %v1413, %v1412
          %v1520 = vpack.c.b16 %v1415, %v1414
          %v1521 = vpack.c.b16 %v1417, %v1416
          %v1522 = vpack.c.b16 %v1419, %v1418
          %v1523 = vpack.c.b16 %v1421, %v1420
          %v1524 = vpack.c.b16 %v1423, %v1422
          %v1525 = vpack.c.b16 %v1425, %v1424
          %v1526 = vpack.c.b16 %v1427, %v1426
          %v1527 = vpack.c.b16 %v1429, %v1428
          %v1528 = vpack.c.b16 %v1431, %v1430
          %v1529 = vpack.c.b16 %v1433, %v1432
          %v1530 = vpack.c.b16 %v1435, %v1434
          %v1531 = vpack.c.b16 %v1437, %v1436
          %v1532 = vpack.c.b16 %v1439, %v1438
          %v1533 = vpack.c.b16 %v1441, %v1440
          %v1534 = vpack.c.b16 %v1443, %v1442
          %v1535 = vpack.c.b16 %v1445, %v1444
          %v1536 = vpack.c.b16 %v1447, %v1446
          %v1537 = vpack.c.b16 %v1449, %v1448
          %v1538 = vpack.c.b16 %v1451, %v1450
          %v1539 = vpack.c.b16 %v1453, %v1452
          %v1540 = vpack.c.b16 %v1455, %v1454
          %v1541 = vpack.c.b16 %v1457, %v1456
          %v1542 = vpack.c.b16 %v1459, %v1458
          %v1543 = vpack.c.b16 %v1461, %v1460
          %v1544 = vpack.c.b16 %v1463, %v1462
          %v1545 = vpack.c.b16 %v1465, %v1464
          %v1546 = vpack.c.b16 %v1467, %v1466
          %v1547 = vpack.c.b16 %v1469, %v1468
          %v1548 = vpack.c.b16 %v1471, %v1470
          %v1549 = vpack.c.b16 %v1473, %v1472
          %v1550 = vpack.c.b16 %v1475, %v1474
          %v1551 = vpack.c.b16 %v1477, %v1476
          %v1552 = vpack.c.b16 %v1479, %v1478
          %v1553 = vpack.c.b16 %v1481, %v1480
          %v1554 = vpack.c.b16 %v1483, %v1482
          %v1555 = vpack.c.b16 %v1485, %v1484
          %v1556 = vpack.c.b16 %v1487, %v1486
          %v1557 = vpack.c.b16 %v1489, %v1488
          %v1558 = vpack.c.b16 %v1491, %v1490
          %v1559 = vpack.c.b16 %v1493, %v1492
          %v1560 = vpack.c.b16 %v1495, %v1494
          %v1561 = vpack.c.b16 %v1497, %v1496
          %s1626 = scalar_lea.vmem [#allocation2], 16
          %vm1627 = vcmask 1043456
          %vm1628 = vcmask 523268
          %vm1629 = vmor %vm1628, %vm1627
          %1630 = vst.msk [vmem:[%s1626] sm:$0xff] %vm1629, %v1498
          %1631 = vst.msk [vmem:[%s1626 + $0x8] sm:$0xff] %vm1629, %v1499
          %1632 = vst.msk [vmem:[%s1626 + $0x10] sm:$0xff] %vm1629, %v1500
          %1633 = vst.msk [vmem:[%s1626 + $0x18] sm:$0xff] %vm1629, %v1501
          %1634 = vst.msk [vmem:[%s1626 + $0x20] sm:$0xff] %vm1629, %v1502
          %1635 = vst.msk [vmem:[%s1626 + $0x28] sm:$0xff] %vm1629, %v1503
          %1636 = vst.msk [vmem:[%s1626 + $0x30] sm:$0xff] %vm1629, %v1504
          %1637 = vst.msk [vmem:[%s1626 + $0x38] sm:$0xff] %vm1629, %v1505
          %1638 = vst.msk [vmem:[%s1626 + $0x40] sm:$0xff] %vm1629, %v1506
          %1639 = vst.msk [vmem:[%s1626 + $0x48] sm:$0xff] %vm1629, %v1507
          %1640 = vst.msk [vmem:[%s1626 + $0x50] sm:$0xff] %vm1629, %v1508
          %1641 = vst.msk [vmem:[%s1626 + $0x58] sm:$0xff] %vm1629, %v1509
          %1642 = vst.msk [vmem:[%s1626 + $0x60] sm:$0xff] %vm1629, %v1510
          %1643 = vst.msk [vmem:[%s1626 + $0x68] sm:$0xff] %vm1629, %v1511
          %1644 = vst.msk [vmem:[%s1626 + $0x70] sm:$0xff] %vm1629, %v1512
          %1645 = vst.msk [vmem:[%s1626 + $0x78] sm:$0xff] %vm1629, %v1513
          %1646 = vst.msk [vmem:[%s1626 + $0x80] sm:$0xff] %vm1629, %v1514
          %1647 = vst.msk [vmem:[%s1626 + $0x88] sm:$0xff] %vm1629, %v1515
          %1648 = vst.msk [vmem:[%s1626 + $0x90] sm:$0xff] %vm1629, %v1516
          %1649 = vst.msk [vmem:[%s1626 + $0x98] sm:$0xff] %vm1629, %v1517
          %1650 = vst.msk [vmem:[%s1626 + $0xa0] sm:$0xff] %vm1629, %v1518
          %1651 = vst.msk [vmem:[%s1626 + $0xa8] sm:$0xff] %vm1629, %v1519
          %1652 = vst.msk [vmem:[%s1626 + $0xb0] sm:$0xff] %vm1629, %v1520
          %1653 = vst.msk [vmem:[%s1626 + $0xb8] sm:$0xff] %vm1629, %v1521
          %1654 = vst.msk [vmem:[%s1626 + $0xc0] sm:$0xff] %vm1629, %v1522
          %1655 = vst.msk [vmem:[%s1626 + $0xc8] sm:$0xff] %vm1629, %v1523
          %1656 = vst.msk [vmem:[%s1626 + $0xd0] sm:$0xff] %vm1629, %v1524
          %1657 = vst.msk [vmem:[%s1626 + $0xd8] sm:$0xff] %vm1629, %v1525
          %1658 = vst.msk [vmem:[%s1626 + $0xe0] sm:$0xff] %vm1629, %v1526
          %1659 = vst.msk [vmem:[%s1626 + $0xe8] sm:$0xff] %vm1629, %v1527
          %1660 = vst.msk [vmem:[%s1626 + $0xf0] sm:$0xff] %vm1629, %v1528
          %1661 = vst.msk [vmem:[%s1626 + $0xf8] sm:$0xff] %vm1629, %v1529
          %1662 = vst.msk [vmem:[%s1626 + $0x120] sm:$0xff] %vm1629, %v1530
          %1663 = vst.msk [vmem:[%s1626 + $0x128] sm:$0xff] %vm1629, %v1531
          %1664 = vst.msk [vmem:[%s1626 + $0x130] sm:$0xff] %vm1629, %v1532
          %1665 = vst.msk [vmem:[%s1626 + $0x138] sm:$0xff] %vm1629, %v1533
          %1666 = vst.msk [vmem:[%s1626 + $0x140] sm:$0xff] %vm1629, %v1534
          %1667 = vst.msk [vmem:[%s1626 + $0x148] sm:$0xff] %vm1629, %v1535
          %1668 = vst.msk [vmem:[%s1626 + $0x150] sm:$0xff] %vm1629, %v1536
          %1669 = vst.msk [vmem:[%s1626 + $0x158] sm:$0xff] %vm1629, %v1537
          %1670 = vst.msk [vmem:[%s1626 + $0x160] sm:$0xff] %vm1629, %v1538
          %1671 = vst.msk [vmem:[%s1626 + $0x168] sm:$0xff] %vm1629, %v1539
          %1672 = vst.msk [vmem:[%s1626 + $0x170] sm:$0xff] %vm1629, %v1540
          %1673 = vst.msk [vmem:[%s1626 + $0x178] sm:$0xff] %vm1629, %v1541
          %1674 = vst.msk [vmem:[%s1626 + $0x180] sm:$0xff] %vm1629, %v1542
          %1675 = vst.msk [vmem:[%s1626 + $0x188] sm:$0xff] %vm1629, %v1543
          %1676 = vst.msk [vmem:[%s1626 + $0x190] sm:$0xff] %vm1629, %v1544
          %1677 = vst.msk [vmem:[%s1626 + $0x198] sm:$0xff] %vm1629, %v1545
          %1678 = vst.msk [vmem:[%s1626 + $0x1a0] sm:$0xff] %vm1629, %v1546
          %1679 = vst.msk [vmem:[%s1626 + $0x1a8] sm:$0xff] %vm1629, %v1547
          %1680 = vst.msk [vmem:[%s1626 + $0x1b0] sm:$0xff] %vm1629, %v1548
          %1681 = vst.msk [vmem:[%s1626 + $0x1b8] sm:$0xff] %vm1629, %v1549
          %1682 = vst.msk [vmem:[%s1626 + $0x1c0] sm:$0xff] %vm1629, %v1550
          %1683 = vst.msk [vmem:[%s1626 + $0x1c8] sm:$0xff] %vm1629, %v1551
          %1684 = vst.msk [vmem:[%s1626 + $0x1d0] sm:$0xff] %vm1629, %v1552
          %1685 = vst.msk [vmem:[%s1626 + $0x1d8] sm:$0xff] %vm1629, %v1553
          %1686 = vst.msk [vmem:[%s1626 + $0x1e0] sm:$0xff] %vm1629, %v1554
          %1687 = vst.msk [vmem:[%s1626 + $0x1e8] sm:$0xff] %vm1629, %v1555
          %1688 = vst.msk [vmem:[%s1626 + $0x1f0] sm:$0xff] %vm1629, %v1556
          %1689 = vst.msk [vmem:[%s1626 + $0x1f8] sm:$0xff] %vm1629, %v1557
          %1690 = vst.msk [vmem:[%s1626 + $0x200] sm:$0xff] %vm1629, %v1558
          %1691 = vst.msk [vmem:[%s1626 + $0x208] sm:$0xff] %vm1629, %v1559
          %1692 = vst.msk [vmem:[%s1626 + $0x210] sm:$0xff] %vm1629, %v1560
          %1693 = vst.msk [vmem:[%s1626 + $0x218] sm:$0xff] %vm1629, %v1561
          %1694 = vst.msk [vmem:[#allocation2] sm:$0xff] %vm1629, 0
          %1695 = vst.msk [vmem:[#allocation2 + $0x8] sm:$0xff] %vm1629, 0
          %1696 = vst.msk [vmem:[#allocation2 + $0x120] sm:$0xff] %vm1629, 0
          %1697 = vst.msk [vmem:[#allocation2 + $0x128] sm:$0xff] %vm1629, 0
          %s1698 = scalar_lea.vmem [#allocation2], 272
          %1699 = vst.msk [vmem:[%s1698] sm:$0xff] %vm1629, 0
          %1700 = vst.msk [vmem:[%s1698 + $0x8] sm:$0xff] %vm1629, 0
          %1701 = vst.msk [vmem:[%s1698 + $0x120] sm:$0xff] %vm1629, 0
          %1702 = vst.msk [vmem:[%s1698 + $0x128] sm:$0xff] %vm1629, 0
          %1703 = vst.msk [vmem:[#allocation4] sm:$0xff] %vm1209, 0.0
          %1704 = vst.msk [vmem:[#allocation4 + $0x8] sm:$0xff] %vm1209, 0.0
          %1705 = vst.msk [vmem:[#allocation4 + $0x10] sm:$0xff] %vm1209, 0.0
          %1706 = vst.msk [vmem:[#allocation4 + $0x18] sm:$0xff] %vm1209, 0.0
          %1707 = vst.msk [vmem:[#allocation4 + $0x20] sm:$0xff] %vm1209, 0.0
          %1708 = vst.msk [vmem:[#allocation4 + $0x28] sm:$0xff] %vm1209, 0.0
          %1709 = vst.msk [vmem:[#allocation4 + $0x30] sm:$0xff] %vm1209, 0.0
          %1710 = vst.msk [vmem:[#allocation4 + $0x38] sm:$0xff] %vm1209, 0.0
          %1711 = vst.msk [vmem:[#allocation4 + $0x40] sm:$0xff] %vm1209, 0.0
          %1712 = vst.msk [vmem:[#allocation4 + $0x48] sm:$0xff] %vm1209, 0.0
          %1713 = vst.msk [vmem:[#allocation4 + $0x50] sm:$0xff] %vm1209, 0.0
          %1714 = vst.msk [vmem:[#allocation4 + $0x58] sm:$0xff] %vm1209, 0.0
          %1715 = vst.msk [vmem:[#allocation4 + $0x60] sm:$0xff] %vm1209, 0.0
          %1716 = vst.msk [vmem:[#allocation4 + $0x68] sm:$0xff] %vm1209, 0.0
          %1717 = vst.msk [vmem:[#allocation4 + $0x70] sm:$0xff] %vm1209, 0.0
          %1718 = vst.msk [vmem:[#allocation4 + $0x78] sm:$0xff] %vm1209, 0.0
          %1719 = vst.msk [vmem:[#allocation4 + $0x80] sm:$0xff] %vm1209, 0.0
          %1720 = vst.msk [vmem:[#allocation4 + $0x88] sm:$0xff] %vm1209, 0.0
          %1721 = vst.msk [vmem:[#allocation4 + $0x90] sm:$0xff] %vm1209, 0.0
          %1722 = vst.msk [vmem:[#allocation4 + $0x98] sm:$0xff] %vm1209, 0.0
          %1723 = vst.msk [vmem:[#allocation4 + $0xa0] sm:$0xff] %vm1209, 0.0
          %1724 = vst.msk [vmem:[#allocation4 + $0xa8] sm:$0xff] %vm1209, 0.0
          %1725 = vst.msk [vmem:[#allocation4 + $0xb0] sm:$0xff] %vm1209, 0.0
          %1726 = vst.msk [vmem:[#allocation4 + $0xb8] sm:$0xff] %vm1209, 0.0
          %1727 = vst.msk [vmem:[#allocation4 + $0xc0] sm:$0xff] %vm1209, 0.0
          %1728 = vst.msk [vmem:[#allocation4 + $0xc8] sm:$0xff] %vm1209, 0.0
          %1729 = vst.msk [vmem:[#allocation4 + $0xd0] sm:$0xff] %vm1209, 0.0
          %1730 = vst.msk [vmem:[#allocation4 + $0xd8] sm:$0xff] %vm1209, 0.0
          %1731 = vst.msk [vmem:[#allocation4 + $0xe0] sm:$0xff] %vm1209, 0.0
          %1732 = vst.msk [vmem:[#allocation4 + $0xe8] sm:$0xff] %vm1209, 0.0
          %1733 = vst.msk [vmem:[#allocation4 + $0xf0] sm:$0xff] %vm1209, 0.0
          %1734 = vst.msk [vmem:[#allocation4 + $0xf8] sm:$0xff] %vm1209, 0.0
          %1735 = vst.msk [vmem:[#allocation4 + $0x100] sm:$0xff] %vm1209, 0.0
          %1736 = vst.msk [vmem:[#allocation4 + $0x108] sm:$0xff] %vm1209, 0.0
          %1737 = vst.msk [vmem:[#allocation4 + $0x110] sm:$0xff] %vm1209, 0.0
          %1738 = vst.msk [vmem:[#allocation4 + $0x118] sm:$0xff] %vm1209, 0.0
          %1739 = vst.msk [vmem:[#allocation4 + $0x120] sm:$0xff] %vm1209, 0.0
          %1740 = vst.msk [vmem:[#allocation4 + $0x128] sm:$0xff] %vm1209, 0.0
          %1741 = vst.msk [vmem:[#allocation4 + $0x130] sm:$0xff] %vm1209, 0.0
          %1742 = vst.msk [vmem:[#allocation4 + $0x138] sm:$0xff] %vm1209, 0.0
          %1743 = vst.msk [vmem:[#allocation4 + $0x140] sm:$0xff] %vm1209, 0.0
          %1744 = vst.msk [vmem:[#allocation4 + $0x148] sm:$0xff] %vm1209, 0.0
          %1745 = vst.msk [vmem:[#allocation4 + $0x150] sm:$0xff] %vm1209, 0.0
          %1746 = vst.msk [vmem:[#allocation4 + $0x158] sm:$0xff] %vm1209, 0.0
          %1747 = vst.msk [vmem:[#allocation4 + $0x160] sm:$0xff] %vm1209, 0.0
          %1748 = vst.msk [vmem:[#allocation4 + $0x168] sm:$0xff] %vm1209, 0.0
          %1749 = vst.msk [vmem:[#allocation4 + $0x170] sm:$0xff] %vm1209, 0.0
          %1750 = vst.msk [vmem:[#allocation4 + $0x178] sm:$0xff] %vm1209, 0.0
          %1751 = vst.msk [vmem:[#allocation4 + $0x180] sm:$0xff] %vm1209, 0.0
          %1752 = vst.msk [vmem:[#allocation4 + $0x188] sm:$0xff] %vm1209, 0.0
          %1753 = vst.msk [vmem:[#allocation4 + $0x190] sm:$0xff] %vm1209, 0.0
          %1754 = vst.msk [vmem:[#allocation4 + $0x198] sm:$0xff] %vm1209, 0.0
          %1755 = vst.msk [vmem:[#allocation4 + $0x1a0] sm:$0xff] %vm1209, 0.0
          %1756 = vst.msk [vmem:[#allocation4 + $0x1a8] sm:$0xff] %vm1209, 0.0
          %1757 = vst.msk [vmem:[#allocation4 + $0x1b0] sm:$0xff] %vm1209, 0.0
          %1758 = vst.msk [vmem:[#allocation4 + $0x1b8] sm:$0xff] %vm1209, 0.0
          %1759 = vst.msk [vmem:[#allocation4 + $0x1c0] sm:$0xff] %vm1209, 0.0
          %1760 = vst.msk [vmem:[#allocation4 + $0x1c8] sm:$0xff] %vm1209, 0.0
          %1761 = vst.msk [vmem:[#allocation4 + $0x1d0] sm:$0xff] %vm1209, 0.0
          %1762 = vst.msk [vmem:[#allocation4 + $0x1d8] sm:$0xff] %vm1209, 0.0
          %1763 = vst.msk [vmem:[#allocation4 + $0x1e0] sm:$0xff] %vm1209, 0.0
          %1764 = vst.msk [vmem:[#allocation4 + $0x1e8] sm:$0xff] %vm1209, 0.0
          %1765 = vst.msk [vmem:[#allocation4 + $0x1f0] sm:$0xff] %vm1209, 0.0
          %1766 = vst.msk [vmem:[#allocation4 + $0x1f8] sm:$0xff] %vm1209, 0.0
          %1767 = vst.msk [vmem:[#allocation5] sm:$0xff] %vm1209, %v389
          %1768 = vst.msk [vmem:[#allocation5 + $0x8] sm:$0xff] %vm1209, %v390
          %1769 = vst.msk [vmem:[#allocation5 + $0x10] sm:$0xff] %vm1209, %v391
          %1770 = vst.msk [vmem:[#allocation5 + $0x18] sm:$0xff] %vm1209, %v392
          %1771 = vst.msk [vmem:[#allocation5 + $0x20] sm:$0xff] %vm1209, %v393
          %1772 = vst.msk [vmem:[#allocation5 + $0x28] sm:$0xff] %vm1209, %v394
          %1773 = vst.msk [vmem:[#allocation5 + $0x30] sm:$0xff] %vm1209, %v395
          %1774 = vst.msk [vmem:[#allocation5 + $0x38] sm:$0xff] %vm1209, %v396
          %1775 = vst.msk [vmem:[#allocation5 + $0x40] sm:$0xff] %vm1209, %v397
          %1776 = vst.msk [vmem:[#allocation5 + $0x48] sm:$0xff] %vm1209, %v398
          %1777 = vst.msk [vmem:[#allocation5 + $0x50] sm:$0xff] %vm1209, %v399
          %1778 = vst.msk [vmem:[#allocation5 + $0x58] sm:$0xff] %vm1209, %v400
          %1779 = vst.msk [vmem:[#allocation5 + $0x60] sm:$0xff] %vm1209, %v401
          %1780 = vst.msk [vmem:[#allocation5 + $0x68] sm:$0xff] %vm1209, %v402
          %1781 = vst.msk [vmem:[#allocation5 + $0x70] sm:$0xff] %vm1209, %v403
          %1782 = vst.msk [vmem:[#allocation5 + $0x78] sm:$0xff] %vm1209, %v404
          %1783 = vst.msk [vmem:[#allocation5 + $0x80] sm:$0xff] %vm1209, %v405
          %1784 = vst.msk [vmem:[#allocation5 + $0x88] sm:$0xff] %vm1209, %v406
          %1785 = vst.msk [vmem:[#allocation5 + $0x90] sm:$0xff] %vm1209, %v407
          %1786 = vst.msk [vmem:[#allocation5 + $0x98] sm:$0xff] %vm1209, %v408
          %1787 = vst.msk [vmem:[#allocation5 + $0xa0] sm:$0xff] %vm1209, %v409
          %1788 = vst.msk [vmem:[#allocation5 + $0xa8] sm:$0xff] %vm1209, %v410
          %1789 = vst.msk [vmem:[#allocation5 + $0xb0] sm:$0xff] %vm1209, %v411
          %1790 = vst.msk [vmem:[#allocation5 + $0xb8] sm:$0xff] %vm1209, %v412
          %1791 = vst.msk [vmem:[#allocation5 + $0xc0] sm:$0xff] %vm1209, %v413
          %1792 = vst.msk [vmem:[#allocation5 + $0xc8] sm:$0xff] %vm1209, %v414
          %1793 = vst.msk [vmem:[#allocation5 + $0xd0] sm:$0xff] %vm1209, %v415
          %1794 = vst.msk [vmem:[#allocation5 + $0xd8] sm:$0xff] %vm1209, %v416
          %1795 = vst.msk [vmem:[#allocation5 + $0xe0] sm:$0xff] %vm1209, %v417
          %1796 = vst.msk [vmem:[#allocation5 + $0xe8] sm:$0xff] %vm1209, %v418
          %1797 = vst.msk [vmem:[#allocation5 + $0xf0] sm:$0xff] %vm1209, %v419
          %1798 = vst.msk [vmem:[#allocation5 + $0xf8] sm:$0xff] %vm1209, %v420
          %1799 = vst.msk [vmem:[#allocation5 + $0x100] sm:$0xff] %vm1209, %v421
          %1800 = vst.msk [vmem:[#allocation5 + $0x108] sm:$0xff] %vm1209, %v422
          %1801 = vst.msk [vmem:[#allocation5 + $0x110] sm:$0xff] %vm1209, %v423
          %1802 = vst.msk [vmem:[#allocation5 + $0x118] sm:$0xff] %vm1209, %v424
          %1803 = vst.msk [vmem:[#allocation5 + $0x120] sm:$0xff] %vm1209, %v425
          %1804 = vst.msk [vmem:[#allocation5 + $0x128] sm:$0xff] %vm1209, %v426
          %1805 = vst.msk [vmem:[#allocation5 + $0x130] sm:$0xff] %vm1209, %v427
          %1806 = vst.msk [vmem:[#allocation5 + $0x138] sm:$0xff] %vm1209, %v428
          %1807 = vst.msk [vmem:[#allocation5 + $0x140] sm:$0xff] %vm1209, %v429
          %1808 = vst.msk [vmem:[#allocation5 + $0x148] sm:$0xff] %vm1209, %v430
          %1809 = vst.msk [vmem:[#allocation5 + $0x150] sm:$0xff] %vm1209, %v431
          %1810 = vst.msk [vmem:[#allocation5 + $0x158] sm:$0xff] %vm1209, %v432
          %1811 = vst.msk [vmem:[#allocation5 + $0x160] sm:$0xff] %vm1209, %v433
          %1812 = vst.msk [vmem:[#allocation5 + $0x168] sm:$0xff] %vm1209, %v434
          %1813 = vst.msk [vmem:[#allocation5 + $0x170] sm:$0xff] %vm1209, %v435
          %1814 = vst.msk [vmem:[#allocation5 + $0x178] sm:$0xff] %vm1209, %v436
          %1815 = vst.msk [vmem:[#allocation5 + $0x180] sm:$0xff] %vm1209, %v437
          %1816 = vst.msk [vmem:[#allocation5 + $0x188] sm:$0xff] %vm1209, %v438
          %1817 = vst.msk [vmem:[#allocation5 + $0x190] sm:$0xff] %vm1209, %v439
          %1818 = vst.msk [vmem:[#allocation5 + $0x198] sm:$0xff] %vm1209, %v440
          %1819 = vst.msk [vmem:[#allocation5 + $0x1a0] sm:$0xff] %vm1209, %v441
          %1820 = vst.msk [vmem:[#allocation5 + $0x1a8] sm:$0xff] %vm1209, %v442
          %1821 = vst.msk [vmem:[#allocation5 + $0x1b0] sm:$0xff] %vm1209, %v443
          %1822 = vst.msk [vmem:[#allocation5 + $0x1b8] sm:$0xff] %vm1209, %v444
          %1823 = vst.msk [vmem:[#allocation5 + $0x1c0] sm:$0xff] %vm1209, %v445
          %1824 = vst.msk [vmem:[#allocation5 + $0x1c8] sm:$0xff] %vm1209, %v446
          %1825 = vst.msk [vmem:[#allocation5 + $0x1d0] sm:$0xff] %vm1209, %v447
          %1826 = vst.msk [vmem:[#allocation5 + $0x1d8] sm:$0xff] %vm1209, %v448
          %1827 = vst.msk [vmem:[#allocation5 + $0x1e0] sm:$0xff] %vm1209, %v449
          %1828 = vst.msk [vmem:[#allocation5 + $0x1e8] sm:$0xff] %vm1209, %v450
          %1829 = vst.msk [vmem:[#allocation5 + $0x1f0] sm:$0xff] %vm1209, %v451
          %1830 = vst.msk [vmem:[#allocation5 + $0x1f8] sm:$0xff] %vm1209, %v452
        $region52: #{_lambda_.1} parent=47 // pred_fallthru
          _
        %p1831 = scmp.lt.s32.totalorder %s19, 3
        // Predicated region
        $region53: #{_lambda_.1} parent=47 // pred_check
          %p1832 = pneg %p1831
        $region54: #{_lambda_.1} parent=47 // pred_check_branch
          %1834 = sbr.rel (%p1832) target = $region56
        $region55: #{_lambda_.1} parent=47 // pred_region
          %s1835 = smul.u32 %s19, 4
          %s1836 = smul.addr %s1835, 4
          %s1837 = scalar_lea.vmem [#allocation2], %s1836
          %v1838 = vld [vmem:[%s1837] sm:$0xff]
          %v1839 = vld [vmem:[%s1837 + $0x8] sm:$0xff]
          %v1840 = vld [vmem:[%s1837 + $0x10] sm:$0xff]
          %v1841 = vld [vmem:[%s1837 + $0x18] sm:$0xff]
          %v1842 = vld [vmem:[%s1837 + $0x20] sm:$0xff]
          %v1843 = vld [vmem:[%s1837 + $0x28] sm:$0xff]
          %v1844 = vld [vmem:[%s1837 + $0x30] sm:$0xff]
          %v1845 = vld [vmem:[%s1837 + $0x38] sm:$0xff]
          %v1846 = vld [vmem:[%s1837 + $0x40] sm:$0xff]
          %v1847 = vld [vmem:[%s1837 + $0x48] sm:$0xff]
          %v1848 = vld [vmem:[%s1837 + $0x50] sm:$0xff]
          %v1849 = vld [vmem:[%s1837 + $0x58] sm:$0xff]
          %v1850 = vld [vmem:[%s1837 + $0x60] sm:$0xff]
          %v1851 = vld [vmem:[%s1837 + $0x68] sm:$0xff]
          %v1852 = vld [vmem:[%s1837 + $0x70] sm:$0xff]
          %v1853 = vld [vmem:[%s1837 + $0x78] sm:$0xff]
          %v1854 = vld [vmem:[%s1837 + $0x80] sm:$0xff]
          %v1855 = vld [vmem:[%s1837 + $0x88] sm:$0xff]
          %v1856 = vld [vmem:[%s1837 + $0x90] sm:$0xff]
          %v1857 = vld [vmem:[%s1837 + $0x98] sm:$0xff]
          %v1858 = vld [vmem:[%s1837 + $0xa0] sm:$0xff]
          %v1859 = vld [vmem:[%s1837 + $0xa8] sm:$0xff]
          %v1860 = vld [vmem:[%s1837 + $0xb0] sm:$0xff]
          %v1861 = vld [vmem:[%s1837 + $0xb8] sm:$0xff]
          %v1862 = vld [vmem:[%s1837 + $0xc0] sm:$0xff]
          %v1863 = vld [vmem:[%s1837 + $0xc8] sm:$0xff]
          %v1864 = vld [vmem:[%s1837 + $0xd0] sm:$0xff]
          %v1865 = vld [vmem:[%s1837 + $0xd8] sm:$0xff]
          %v1866 = vld [vmem:[%s1837 + $0xe0] sm:$0xff]
          %v1867 = vld [vmem:[%s1837 + $0xe8] sm:$0xff]
          %v1868 = vld [vmem:[%s1837 + $0xf0] sm:$0xff]
          %v1869 = vld [vmem:[%s1837 + $0xf8] sm:$0xff]
          %v1870 = vld [vmem:[%s1837 + $0x120] sm:$0xff]
          %v1871 = vld [vmem:[%s1837 + $0x128] sm:$0xff]
          %v1872 = vld [vmem:[%s1837 + $0x130] sm:$0xff]
          %v1873 = vld [vmem:[%s1837 + $0x138] sm:$0xff]
          %v1874 = vld [vmem:[%s1837 + $0x140] sm:$0xff]
          %v1875 = vld [vmem:[%s1837 + $0x148] sm:$0xff]
          %v1876 = vld [vmem:[%s1837 + $0x150] sm:$0xff]
          %v1877 = vld [vmem:[%s1837 + $0x158] sm:$0xff]
          %v1878 = vld [vmem:[%s1837 + $0x160] sm:$0xff]
          %v1879 = vld [vmem:[%s1837 + $0x168] sm:$0xff]
          %v1880 = vld [vmem:[%s1837 + $0x170] sm:$0xff]
          %v1881 = vld [vmem:[%s1837 + $0x178] sm:$0xff]
          %v1882 = vld [vmem:[%s1837 + $0x180] sm:$0xff]
          %v1883 = vld [vmem:[%s1837 + $0x188] sm:$0xff]
          %v1884 = vld [vmem:[%s1837 + $0x190] sm:$0xff]
          %v1885 = vld [vmem:[%s1837 + $0x198] sm:$0xff]
          %v1886 = vld [vmem:[%s1837 + $0x1a0] sm:$0xff]
          %v1887 = vld [vmem:[%s1837 + $0x1a8] sm:$0xff]
          %v1888 = vld [vmem:[%s1837 + $0x1b0] sm:$0xff]
          %v1889 = vld [vmem:[%s1837 + $0x1b8] sm:$0xff]
          %v1890 = vld [vmem:[%s1837 + $0x1c0] sm:$0xff]
          %v1891 = vld [vmem:[%s1837 + $0x1c8] sm:$0xff]
          %v1892 = vld [vmem:[%s1837 + $0x1d0] sm:$0xff]
          %v1893 = vld [vmem:[%s1837 + $0x1d8] sm:$0xff]
          %v1894 = vld [vmem:[%s1837 + $0x1e0] sm:$0xff]
          %v1895 = vld [vmem:[%s1837 + $0x1e8] sm:$0xff]
          %v1896 = vld [vmem:[%s1837 + $0x1f0] sm:$0xff]
          %v1897 = vld [vmem:[%s1837 + $0x1f8] sm:$0xff]
          %v1898 = vld [vmem:[%s1837 + $0x200] sm:$0xff]
          %v1899 = vld [vmem:[%s1837 + $0x208] sm:$0xff]
          %v1900 = vld [vmem:[%s1837 + $0x210] sm:$0xff]
          %v1901 = vld [vmem:[%s1837 + $0x218] sm:$0xff]
          %v1902 = vld [vmem:[#allocation4] sm:$0xff]
          %v1903 = vld [vmem:[#allocation4 + $0x8] sm:$0xff]
          %v1904 = vld [vmem:[#allocation4 + $0x10] sm:$0xff]
          %v1905 = vld [vmem:[#allocation4 + $0x18] sm:$0xff]
          %v1906 = vld [vmem:[#allocation4 + $0x20] sm:$0xff]
          %v1907 = vld [vmem:[#allocation4 + $0x28] sm:$0xff]
          %v1908 = vld [vmem:[#allocation4 + $0x30] sm:$0xff]
          %v1909 = vld [vmem:[#allocation4 + $0x38] sm:$0xff]
          %v1910 = vld [vmem:[#allocation4 + $0x40] sm:$0xff]
          %v1911 = vld [vmem:[#allocation4 + $0x48] sm:$0xff]
          %v1912 = vld [vmem:[#allocation4 + $0x50] sm:$0xff]
          %v1913 = vld [vmem:[#allocation4 + $0x58] sm:$0xff]
          %v1914 = vld [vmem:[#allocation4 + $0x60] sm:$0xff]
          %v1915 = vld [vmem:[#allocation4 + $0x68] sm:$0xff]
          %v1916 = vld [vmem:[#allocation4 + $0x70] sm:$0xff]
          %v1917 = vld [vmem:[#allocation4 + $0x78] sm:$0xff]
          %v1918 = vld [vmem:[#allocation4 + $0x80] sm:$0xff]
          %v1919 = vld [vmem:[#allocation4 + $0x88] sm:$0xff]
          %v1920 = vld [vmem:[#allocation4 + $0x90] sm:$0xff]
          %v1921 = vld [vmem:[#allocation4 + $0x98] sm:$0xff]
          %v1922 = vld [vmem:[#allocation4 + $0xa0] sm:$0xff]
          %v1923 = vld [vmem:[#allocation4 + $0xa8] sm:$0xff]
          %v1924 = vld [vmem:[#allocation4 + $0xb0] sm:$0xff]
          %v1925 = vld [vmem:[#allocation4 + $0xb8] sm:$0xff]
          %v1926 = vld [vmem:[#allocation4 + $0xc0] sm:$0xff]
          %v1927 = vld [vmem:[#allocation4 + $0xc8] sm:$0xff]
          %v1928 = vld [vmem:[#allocation4 + $0xd0] sm:$0xff]
          %v1929 = vld [vmem:[#allocation4 + $0xd8] sm:$0xff]
          %v1930 = vld [vmem:[#allocation4 + $0xe0] sm:$0xff]
          %v1931 = vld [vmem:[#allocation4 + $0xe8] sm:$0xff]
          %v1932 = vld [vmem:[#allocation4 + $0xf0] sm:$0xff]
          %v1933 = vld [vmem:[#allocation4 + $0xf8] sm:$0xff]
          %v1934 = vld [vmem:[#allocation4 + $0x100] sm:$0xff]
          %v1935 = vld [vmem:[#allocation4 + $0x108] sm:$0xff]
          %v1936 = vld [vmem:[#allocation4 + $0x110] sm:$0xff]
          %v1937 = vld [vmem:[#allocation4 + $0x118] sm:$0xff]
          %v1938 = vld [vmem:[#allocation4 + $0x120] sm:$0xff]
          %v1939 = vld [vmem:[#allocation4 + $0x128] sm:$0xff]
          %v1940 = vld [vmem:[#allocation4 + $0x130] sm:$0xff]
          %v1941 = vld [vmem:[#allocation4 + $0x138] sm:$0xff]
          %v1942 = vld [vmem:[#allocation4 + $0x140] sm:$0xff]
          %v1943 = vld [vmem:[#allocation4 + $0x148] sm:$0xff]
          %v1944 = vld [vmem:[#allocation4 + $0x150] sm:$0xff]
          %v1945 = vld [vmem:[#allocation4 + $0x158] sm:$0xff]
          %v1946 = vld [vmem:[#allocation4 + $0x160] sm:$0xff]
          %v1947 = vld [vmem:[#allocation4 + $0x168] sm:$0xff]
          %v1948 = vld [vmem:[#allocation4 + $0x170] sm:$0xff]
          %v1949 = vld [vmem:[#allocation4 + $0x178] sm:$0xff]
          %v1950 = vld [vmem:[#allocation4 + $0x180] sm:$0xff]
          %v1951 = vld [vmem:[#allocation4 + $0x188] sm:$0xff]
          %v1952 = vld [vmem:[#allocation4 + $0x190] sm:$0xff]
          %v1953 = vld [vmem:[#allocation4 + $0x198] sm:$0xff]
          %v1954 = vld [vmem:[#allocation4 + $0x1a0] sm:$0xff]
          %v1955 = vld [vmem:[#allocation4 + $0x1a8] sm:$0xff]
          %v1956 = vld [vmem:[#allocation4 + $0x1b0] sm:$0xff]
          %v1957 = vld [vmem:[#allocation4 + $0x1b8] sm:$0xff]
          %v1958 = vld [vmem:[#allocation4 + $0x1c0] sm:$0xff]
          %v1959 = vld [vmem:[#allocation4 + $0x1c8] sm:$0xff]
          %v1960 = vld [vmem:[#allocation4 + $0x1d0] sm:$0xff]
          %v1961 = vld [vmem:[#allocation4 + $0x1d8] sm:$0xff]
          %v1962 = vld [vmem:[#allocation4 + $0x1e0] sm:$0xff]
          %v1963 = vld [vmem:[#allocation4 + $0x1e8] sm:$0xff]
          %v1964 = vld [vmem:[#allocation4 + $0x1f0] sm:$0xff]
          %v1965 = vld [vmem:[#allocation4 + $0x1f8] sm:$0xff]
          %v1966 = vld [vmem:[%s306] sm:$0xf]
          %v1967 = vld [vmem:[%s306 + $0x4] sm:$0xf]
          %v1968 = vld [vmem:[%s306 + $0x8] sm:$0xf]
          %v1969 = vld [vmem:[%s306 + $0xc] sm:$0xf]
          %v1970 = vld [vmem:[%s306 + $0x10] sm:$0xf]
          %v1971 = vld [vmem:[%s306 + $0x14] sm:$0xf]
          %v1972 = vld [vmem:[%s306 + $0x18] sm:$0xf]
          %v1973 = vld [vmem:[%s306 + $0x1c] sm:$0xf]
          %v1974 = vld [vmem:[%s306 + $0x20] sm:$0xf]
          %v1975 = vld [vmem:[%s306 + $0x24] sm:$0xf]
          %v1976 = vld [vmem:[%s306 + $0x28] sm:$0xf]
          %v1977 = vld [vmem:[%s306 + $0x2c] sm:$0xf]
          %v1978 = vld [vmem:[%s306 + $0x30] sm:$0xf]
          %v1979 = vld [vmem:[%s306 + $0x34] sm:$0xf]
          %v1980 = vld [vmem:[%s306 + $0x38] sm:$0xf]
          %v1981 = vld [vmem:[%s306 + $0x3c] sm:$0xf]
          %v1982 = vld [vmem:[%s306 + $0x40] sm:$0xf]
          %v1983 = vld [vmem:[%s306 + $0x44] sm:$0xf]
          %v1984 = vld [vmem:[%s306 + $0x48] sm:$0xf]
          %v1985 = vld [vmem:[%s306 + $0x4c] sm:$0xf]
          %v1986 = vld [vmem:[%s306 + $0x50] sm:$0xf]
          %v1987 = vld [vmem:[%s306 + $0x54] sm:$0xf]
          %v1988 = vld [vmem:[%s306 + $0x58] sm:$0xf]
          %v1989 = vld [vmem:[%s306 + $0x5c] sm:$0xf]
          %v2054 = vunpack.c.l.b16 %v1838
          %v2055 = vunpack.c.h.b16 %v1838
          %v2056 = vunpack.c.l.b16 %v1839
          %v2057 = vunpack.c.h.b16 %v1839
          %v2058 = vunpack.c.l.b16 %v1840
          %v2059 = vunpack.c.h.b16 %v1840
          %v2060 = vunpack.c.l.b16 %v1841
          %v2061 = vunpack.c.h.b16 %v1841
          %v2062 = vunpack.c.l.b16 %v1842
          %v2063 = vunpack.c.h.b16 %v1842
          %v2064 = vunpack.c.l.b16 %v1843
          %v2065 = vunpack.c.h.b16 %v1843
          %v2066 = vunpack.c.l.b16 %v1844
          %v2067 = vunpack.c.h.b16 %v1844
          %v2068 = vunpack.c.l.b16 %v1845
          %v2069 = vunpack.c.h.b16 %v1845
          %v2070 = vunpack.c.l.b16 %v1846
          %v2071 = vunpack.c.h.b16 %v1846
          %v2072 = vunpack.c.l.b16 %v1847
          %v2073 = vunpack.c.h.b16 %v1847
          %v2074 = vunpack.c.l.b16 %v1848
          %v2075 = vunpack.c.h.b16 %v1848
          %v2076 = vunpack.c.l.b16 %v1849
          %v2077 = vunpack.c.h.b16 %v1849
          %v2078 = vunpack.c.l.b16 %v1850
          %v2079 = vunpack.c.h.b16 %v1850
          %v2080 = vunpack.c.l.b16 %v1851
          %v2081 = vunpack.c.h.b16 %v1851
          %v2082 = vunpack.c.l.b16 %v1852
          %v2083 = vunpack.c.h.b16 %v1852
          %v2084 = vunpack.c.l.b16 %v1853
          %v2085 = vunpack.c.h.b16 %v1853
          %v2086 = vunpack.c.l.b16 %v1854
          %v2087 = vunpack.c.h.b16 %v1854
          %v2088 = vunpack.c.l.b16 %v1855
          %v2089 = vunpack.c.h.b16 %v1855
          %v2090 = vunpack.c.l.b16 %v1856
          %v2091 = vunpack.c.h.b16 %v1856
          %v2092 = vunpack.c.l.b16 %v1857
          %v2093 = vunpack.c.h.b16 %v1857
          %v2094 = vunpack.c.l.b16 %v1858
          %v2095 = vunpack.c.h.b16 %v1858
          %v2096 = vunpack.c.l.b16 %v1859
          %v2097 = vunpack.c.h.b16 %v1859
          %v2098 = vunpack.c.l.b16 %v1860
          %v2099 = vunpack.c.h.b16 %v1860
          %v2100 = vunpack.c.l.b16 %v1861
          %v2101 = vunpack.c.h.b16 %v1861
          %v2102 = vunpack.c.l.b16 %v1862
          %v2103 = vunpack.c.h.b16 %v1862
          %v2104 = vunpack.c.l.b16 %v1863
          %v2105 = vunpack.c.h.b16 %v1863
          %v2106 = vunpack.c.l.b16 %v1864
          %v2107 = vunpack.c.h.b16 %v1864
          %v2108 = vunpack.c.l.b16 %v1865
          %v2109 = vunpack.c.h.b16 %v1865
          %v2110 = vunpack.c.l.b16 %v1866
          %v2111 = vunpack.c.h.b16 %v1866
          %v2112 = vunpack.c.l.b16 %v1867
          %v2113 = vunpack.c.h.b16 %v1867
          %v2114 = vunpack.c.l.b16 %v1868
          %v2115 = vunpack.c.h.b16 %v1868
          %v2116 = vunpack.c.l.b16 %v1869
          %v2117 = vunpack.c.h.b16 %v1869
          %v2118 = vunpack.c.l.b16 %v1870
          %v2119 = vunpack.c.h.b16 %v1870
          %v2120 = vunpack.c.l.b16 %v1871
          %v2121 = vunpack.c.h.b16 %v1871
          %v2122 = vunpack.c.l.b16 %v1872
          %v2123 = vunpack.c.h.b16 %v1872
          %v2124 = vunpack.c.l.b16 %v1873
          %v2125 = vunpack.c.h.b16 %v1873
          %v2126 = vunpack.c.l.b16 %v1874
          %v2127 = vunpack.c.h.b16 %v1874
          %v2128 = vunpack.c.l.b16 %v1875
          %v2129 = vunpack.c.h.b16 %v1875
          %v2130 = vunpack.c.l.b16 %v1876
          %v2131 = vunpack.c.h.b16 %v1876
          %v2132 = vunpack.c.l.b16 %v1877
          %v2133 = vunpack.c.h.b16 %v1877
          %v2134 = vunpack.c.l.b16 %v1878
          %v2135 = vunpack.c.h.b16 %v1878
          %v2136 = vunpack.c.l.b16 %v1879
          %v2137 = vunpack.c.h.b16 %v1879
          %v2138 = vunpack.c.l.b16 %v1880
          %v2139 = vunpack.c.h.b16 %v1880
          %v2140 = vunpack.c.l.b16 %v1881
          %v2141 = vunpack.c.h.b16 %v1881
          %v2142 = vunpack.c.l.b16 %v1882
          %v2143 = vunpack.c.h.b16 %v1882
          %v2144 = vunpack.c.l.b16 %v1883
          %v2145 = vunpack.c.h.b16 %v1883
          %v2146 = vunpack.c.l.b16 %v1884
          %v2147 = vunpack.c.h.b16 %v1884
          %v2148 = vunpack.c.l.b16 %v1885
          %v2149 = vunpack.c.h.b16 %v1885
          %v2150 = vunpack.c.l.b16 %v1886
          %v2151 = vunpack.c.h.b16 %v1886
          %v2152 = vunpack.c.l.b16 %v1887
          %v2153 = vunpack.c.h.b16 %v1887
          %v2154 = vunpack.c.l.b16 %v1888
          %v2155 = vunpack.c.h.b16 %v1888
          %v2156 = vunpack.c.l.b16 %v1889
          %v2157 = vunpack.c.h.b16 %v1889
          %v2158 = vunpack.c.l.b16 %v1890
          %v2159 = vunpack.c.h.b16 %v1890
          %v2160 = vunpack.c.l.b16 %v1891
          %v2161 = vunpack.c.h.b16 %v1891
          %v2162 = vunpack.c.l.b16 %v1892
          %v2163 = vunpack.c.h.b16 %v1892
          %v2164 = vunpack.c.l.b16 %v1893
          %v2165 = vunpack.c.h.b16 %v1893
          %v2166 = vunpack.c.l.b16 %v1894
          %v2167 = vunpack.c.h.b16 %v1894
          %v2168 = vunpack.c.l.b16 %v1895
          %v2169 = vunpack.c.h.b16 %v1895
          %v2170 = vunpack.c.l.b16 %v1896
          %v2171 = vunpack.c.h.b16 %v1896
          %v2172 = vunpack.c.l.b16 %v1897
          %v2173 = vunpack.c.h.b16 %v1897
          %v2174 = vunpack.c.l.b16 %v1898
          %v2175 = vunpack.c.h.b16 %v1898
          %v2176 = vunpack.c.l.b16 %v1899
          %v2177 = vunpack.c.h.b16 %v1899
          %v2178 = vunpack.c.l.b16 %v1900
          %v2179 = vunpack.c.h.b16 %v1900
          %v2180 = vunpack.c.l.b16 %v1901
          %v2181 = vunpack.c.h.b16 %v1901
          %v2182 = vpack.c.b16 %v2056, %v2054
          %v2183 = vpack.c.b16 %v2057, %v2055
          %v2184 = vpack.c.b16 %v2060, %v2058
          %v2185 = vpack.c.b16 %v2061, %v2059
          %v2186 = vpack.c.b16 %v2064, %v2062
          %v2187 = vpack.c.b16 %v2065, %v2063
          %v2188 = vpack.c.b16 %v2068, %v2066
          %v2189 = vpack.c.b16 %v2069, %v2067
          %v2190 = vpack.c.b16 %v2072, %v2070
          %v2191 = vpack.c.b16 %v2073, %v2071
          %v2192 = vpack.c.b16 %v2076, %v2074
          %v2193 = vpack.c.b16 %v2077, %v2075
          %v2194 = vpack.c.b16 %v2080, %v2078
          %v2195 = vpack.c.b16 %v2081, %v2079
          %v2196 = vpack.c.b16 %v2084, %v2082
          %v2197 = vpack.c.b16 %v2085, %v2083
          %v2198 = vpack.c.b16 %v2088, %v2086
          %v2199 = vpack.c.b16 %v2089, %v2087
          %v2200 = vpack.c.b16 %v2092, %v2090
          %v2201 = vpack.c.b16 %v2093, %v2091
          %v2202 = vpack.c.b16 %v2096, %v2094
          %v2203 = vpack.c.b16 %v2097, %v2095
          %v2204 = vpack.c.b16 %v2100, %v2098
          %v2205 = vpack.c.b16 %v2101, %v2099
          %v2206 = vpack.c.b16 %v2104, %v2102
          %v2207 = vpack.c.b16 %v2105, %v2103
          %v2208 = vpack.c.b16 %v2108, %v2106
          %v2209 = vpack.c.b16 %v2109, %v2107
          %v2210 = vpack.c.b16 %v2112, %v2110
          %v2211 = vpack.c.b16 %v2113, %v2111
          %v2212 = vpack.c.b16 %v2116, %v2114
          %v2213 = vpack.c.b16 %v2117, %v2115
          %v2214 = vpack.c.b16 %v2120, %v2118
          %v2215 = vpack.c.b16 %v2121, %v2119
          %v2216 = vpack.c.b16 %v2124, %v2122
          %v2217 = vpack.c.b16 %v2125, %v2123
          %v2218 = vpack.c.b16 %v2128, %v2126
          %v2219 = vpack.c.b16 %v2129, %v2127
          %v2220 = vpack.c.b16 %v2132, %v2130
          %v2221 = vpack.c.b16 %v2133, %v2131
          %v2222 = vpack.c.b16 %v2136, %v2134
          %v2223 = vpack.c.b16 %v2137, %v2135
          %v2224 = vpack.c.b16 %v2140, %v2138
          %v2225 = vpack.c.b16 %v2141, %v2139
          %v2226 = vpack.c.b16 %v2144, %v2142
          %v2227 = vpack.c.b16 %v2145, %v2143
          %v2228 = vpack.c.b16 %v2148, %v2146
          %v2229 = vpack.c.b16 %v2149, %v2147
          %v2230 = vpack.c.b16 %v2152, %v2150
          %v2231 = vpack.c.b16 %v2153, %v2151
          %v2232 = vpack.c.b16 %v2156, %v2154
          %v2233 = vpack.c.b16 %v2157, %v2155
          %v2234 = vpack.c.b16 %v2160, %v2158
          %v2235 = vpack.c.b16 %v2161, %v2159
          %v2236 = vpack.c.b16 %v2164, %v2162
          %v2237 = vpack.c.b16 %v2165, %v2163
          %v2238 = vpack.c.b16 %v2168, %v2166
          %v2239 = vpack.c.b16 %v2169, %v2167
          %v2240 = vpack.c.b16 %v2172, %v2170
          %v2241 = vpack.c.b16 %v2173, %v2171
          %v2242 = vpack.c.b16 %v2176, %v2174
          %v2243 = vpack.c.b16 %v2177, %v2175
          %v2244 = vpack.c.b16 %v2180, %v2178
          %v2245 = vpack.c.b16 %v2181, %v2179
          %v2302 = vunpack.c.l.b16 %v1966
          %v2303 = vunpack.c.l.b16 %v1967
          %v2304 = vunpack.c.l.b16 %v1968
          %v2305 = vunpack.c.l.b16 %v1969
          %v2306 = vunpack.c.l.b16 %v1970
          %v2307 = vunpack.c.l.b16 %v1971
          %v2308 = vunpack.c.l.b16 %v1972
          %v2309 = vunpack.c.l.b16 %v1973
          %v2310 = vunpack.c.l.b16 %v1974
          %v2311 = vunpack.c.l.b16 %v1975
          %v2312 = vunpack.c.l.b16 %v1976
          %v2313 = vunpack.c.l.b16 %v1977
          %v2314 = vunpack.c.l.b16 %v1978
          %v2315 = vunpack.c.l.b16 %v1979
          %v2316 = vunpack.c.l.b16 %v1980
          %v2317 = vunpack.c.l.b16 %v1981
          %v2318 = vunpack.c.l.b16 %v1982
          %v2319 = vunpack.c.l.b16 %v1983
          %v2320 = vunpack.c.l.b16 %v1984
          %v2321 = vunpack.c.l.b16 %v1985
          %v2322 = vunpack.c.l.b16 %v1986
          %v2323 = vunpack.c.l.b16 %v1987
          %v2324 = vunpack.c.l.b16 %v1988
          %v2325 = vunpack.c.l.b16 %v1989
          %v2326 = vpack.c.b16 %v2303, %v2302
          %v2327 = vpack.c.b16 %v2305, %v2304
          %v2328 = vpack.c.b16 %v2307, %v2306
          %v2329 = vpack.c.b16 %v2309, %v2308
          %v2330 = vpack.c.b16 %v2311, %v2310
          %v2331 = vpack.c.b16 %v2313, %v2312
          %v2332 = vpack.c.b16 %v2315, %v2314
          %v2333 = vpack.c.b16 %v2317, %v2316
          %v2334 = vpack.c.b16 %v2319, %v2318
          %v2335 = vpack.c.b16 %v2321, %v2320
          %v2336 = vpack.c.b16 %v2323, %v2322
          %v2337 = vpack.c.b16 %v2325, %v2324
          %vm2350 = vcmask 523264
          %v2352 = vsel %vm2350, %v2183, 0
          %v2355 = vsel %vm2350, %v2185, 0
          %v2358 = vsel %vm2350, %v2187, 0
          %v2361 = vsel %vm2350, %v2189, 0
          %v2364 = vsel %vm2350, %v2191, 0
          %v2367 = vsel %vm2350, %v2193, 0
          %v2370 = vsel %vm2350, %v2195, 0
          %v2373 = vsel %vm2350, %v2197, 0
          %v2376 = vsel %vm2350, %v2199, 0
          %v2379 = vsel %vm2350, %v2201, 0
          %v2382 = vsel %vm2350, %v2203, 0
          %v2385 = vsel %vm2350, %v2205, 0
          %v2388 = vsel %vm2350, %v2207, 0
          %v2391 = vsel %vm2350, %v2209, 0
          %v2394 = vsel %vm2350, %v2211, 0
          %v2397 = vsel %vm2350, %v2213, 0
          %v2400 = vsel %vm2350, %v2215, 0
          %v2403 = vsel %vm2350, %v2217, 0
          %v2406 = vsel %vm2350, %v2219, 0
          %v2409 = vsel %vm2350, %v2221, 0
          %v2412 = vsel %vm2350, %v2223, 0
          %v2415 = vsel %vm2350, %v2225, 0
          %v2418 = vsel %vm2350, %v2227, 0
          %v2421 = vsel %vm2350, %v2229, 0
          %v2424 = vsel %vm2350, %v2231, 0
          %v2427 = vsel %vm2350, %v2233, 0
          %v2430 = vsel %vm2350, %v2235, 0
          %v2433 = vsel %vm2350, %v2237, 0
          %v2436 = vsel %vm2350, %v2239, 0
          %v2439 = vsel %vm2350, %v2241, 0
          %v2442 = vsel %vm2350, %v2243, 0
          %v2445 = vsel %vm2350, %v2245, 0
          %2447 = vmatprep.subr.bf16.mxu0 0
          %2448 = vmatpush1.bf16.msra.mxu0 %v2333
          %2449 = vmatprep.subr.bf16.mxu0 0
          %2450 = vmatpush1.bf16.msra.mxu0 %v2332
          %2451 = vmatprep.subr.bf16.mxu0 0
          %2452 = vmatpush1.bf16.msra.mxu0 %v2331
          %2453 = vmatprep.subr.bf16.mxu0 0
          %2454 = vmatpush1.bf16.msra.mxu0 %v2330
          %2455 = vmatprep.subr.bf16.mxu0 0
          %2456 = vmatpush1.bf16.msra.mxu0 %v2329
          %2457 = vmatprep.subr.bf16.mxu0 0
          %2458 = vmatpush1.bf16.msra.mxu0 %v2328
          %2459 = vmatprep.subr.bf16.mxu0 0
          %2460 = vmatpush1.bf16.msra.mxu0 %v2327
          %2461 = vmatprep.subr.bf16.mxu0 0
          %2462 = vmatpush1.bf16.msra.mxu0 %v2326
          %2463 = vmatprep.subr.bf16.mxu0 0
          %2464 = vmatpush2.bf16.msra.mxu0 0
          %2465 = vmatprep.subr.bf16.mxu0 0
          %2466 = vmatpush2.bf16.msra.mxu0 0
          %2467 = vmatprep.subr.bf16.mxu0 0
          %2468 = vmatpush2.bf16.msra.mxu0 0
          %2469 = vmatprep.subr.bf16.mxu0 0
          %2470 = vmatpush2.bf16.msra.mxu0 0
          %2471 = vmatprep.subr.bf16.mxu0 0
          %2472 = vmatpush2.bf16.msra.mxu0 %v2337
          %2473 = vmatprep.subr.bf16.mxu0 0
          %2474 = vmatpush2.bf16.msra.mxu0 %v2336
          %2475 = vmatprep.subr.bf16.mxu0 0
          %2476 = vmatpush2.bf16.msra.mxu0 %v2335
          %2477 = vmatprep.subr.bf16.mxu0 0
          %2478 = vmatpush2.bf16.msra.mxu0 %v2334
          %2479 = vmatprep.mubr.bf16.mxu0 %v2352
          %2480 = vmatmul.mubr.bf16.gmra.mxu0 %v2182
          %v2481 = vpop.f32.mrf.mxu0
          %v2482 = vadd.f32 0.0, %v2481
          %v2483 = vpop.f32.mrf.mxu0
          %v2484 = vpop.f32.mrf.mxu0
          %v2485 = vadd.f32 0.0, %v2484
          %v2486 = vpop.f32.mrf.mxu0
          %2487 = vmatprep.mubr.bf16.mxu0 %v2355
          %2488 = vmatmul.mubr.bf16.gmra.mxu0 %v2184
          %v2489 = vpop.f32.mrf.mxu0
          %v2490 = vadd.f32 0.0, %v2489
          %v2491 = vpop.f32.mrf.mxu0
          %v2492 = vpop.f32.mrf.mxu0
          %v2493 = vadd.f32 0.0, %v2492
          %v2494 = vpop.f32.mrf.mxu0
          %2495 = vmatprep.mubr.bf16.mxu0 %v2358
          %2496 = vmatmul.mubr.bf16.gmra.mxu0 %v2186
          %v2497 = vpop.f32.mrf.mxu0
          %v2498 = vadd.f32 0.0, %v2497
          %v2499 = vpop.f32.mrf.mxu0
          %v2500 = vpop.f32.mrf.mxu0
          %v2501 = vadd.f32 0.0, %v2500
          %v2502 = vpop.f32.mrf.mxu0
          %2503 = vmatprep.mubr.bf16.mxu0 %v2361
          %2504 = vmatmul.mubr.bf16.gmra.mxu0 %v2188
          %v2505 = vpop.f32.mrf.mxu0
          %v2506 = vadd.f32 0.0, %v2505
          %v2507 = vpop.f32.mrf.mxu0
          %v2508 = vpop.f32.mrf.mxu0
          %v2509 = vadd.f32 0.0, %v2508
          %v2510 = vpop.f32.mrf.mxu0
          %2511 = vmatprep.mubr.bf16.mxu0 %v2364
          %2512 = vmatmul.mubr.bf16.gmra.mxu0 %v2190
          %v2513 = vpop.f32.mrf.mxu0
          %v2514 = vadd.f32 0.0, %v2513
          %v2515 = vpop.f32.mrf.mxu0
          %v2516 = vpop.f32.mrf.mxu0
          %v2517 = vadd.f32 0.0, %v2516
          %v2518 = vpop.f32.mrf.mxu0
          %2519 = vmatprep.mubr.bf16.mxu0 %v2367
          %2520 = vmatmul.mubr.bf16.gmra.mxu0 %v2192
          %v2521 = vpop.f32.mrf.mxu0
          %v2522 = vadd.f32 0.0, %v2521
          %v2523 = vpop.f32.mrf.mxu0
          %v2524 = vpop.f32.mrf.mxu0
          %v2525 = vadd.f32 0.0, %v2524
          %v2526 = vpop.f32.mrf.mxu0
          %2527 = vmatprep.mubr.bf16.mxu0 %v2370
          %2528 = vmatmul.mubr.bf16.gmra.mxu0 %v2194
          %v2529 = vpop.f32.mrf.mxu0
          %v2530 = vadd.f32 0.0, %v2529
          %v2531 = vpop.f32.mrf.mxu0
          %v2532 = vpop.f32.mrf.mxu0
          %v2533 = vadd.f32 0.0, %v2532
          %v2534 = vpop.f32.mrf.mxu0
          %2535 = vmatprep.mubr.bf16.mxu0 %v2373
          %2536 = vmatmul.mubr.bf16.gmra.mxu0 %v2196
          %v2537 = vpop.f32.mrf.mxu0
          %v2538 = vadd.f32 0.0, %v2537
          %v2539 = vpop.f32.mrf.mxu0
          %v2540 = vpop.f32.mrf.mxu0
          %v2541 = vadd.f32 0.0, %v2540
          %v2542 = vpop.f32.mrf.mxu0
          %2543 = vmatprep.mubr.bf16.mxu0 %v2376
          %2544 = vmatmul.mubr.bf16.gmra.mxu0 %v2198
          %v2545 = vpop.f32.mrf.mxu0
          %v2546 = vadd.f32 0.0, %v2545
          %v2547 = vpop.f32.mrf.mxu0
          %v2548 = vpop.f32.mrf.mxu0
          %v2549 = vadd.f32 0.0, %v2548
          %v2550 = vpop.f32.mrf.mxu0
          %2551 = vmatprep.mubr.bf16.mxu0 %v2379
          %2552 = vmatmul.mubr.bf16.gmra.mxu0 %v2200
          %v2553 = vpop.f32.mrf.mxu0
          %v2554 = vadd.f32 0.0, %v2553
          %v2555 = vpop.f32.mrf.mxu0
          %v2556 = vpop.f32.mrf.mxu0
          %v2557 = vadd.f32 0.0, %v2556
          %v2558 = vpop.f32.mrf.mxu0
          %2559 = vmatprep.mubr.bf16.mxu0 %v2382
          %2560 = vmatmul.mubr.bf16.gmra.mxu0 %v2202
          %v2561 = vpop.f32.mrf.mxu0
          %v2562 = vadd.f32 0.0, %v2561
          %v2563 = vpop.f32.mrf.mxu0
          %v2564 = vpop.f32.mrf.mxu0
          %v2565 = vadd.f32 0.0, %v2564
          %v2566 = vpop.f32.mrf.mxu0
          %2567 = vmatprep.mubr.bf16.mxu0 %v2385
          %2568 = vmatmul.mubr.bf16.gmra.mxu0 %v2204
          %v2569 = vpop.f32.mrf.mxu0
          %v2570 = vadd.f32 0.0, %v2569
          %v2571 = vpop.f32.mrf.mxu0
          %v2572 = vpop.f32.mrf.mxu0
          %v2573 = vadd.f32 0.0, %v2572
          %v2574 = vpop.f32.mrf.mxu0
          %2575 = vmatprep.mubr.bf16.mxu0 %v2388
          %2576 = vmatmul.mubr.bf16.gmra.mxu0 %v2206
          %v2577 = vpop.f32.mrf.mxu0
          %v2578 = vadd.f32 0.0, %v2577
          %v2579 = vpop.f32.mrf.mxu0
          %v2580 = vpop.f32.mrf.mxu0
          %v2581 = vadd.f32 0.0, %v2580
          %v2582 = vpop.f32.mrf.mxu0
          %2583 = vmatprep.mubr.bf16.mxu0 %v2391
          %2584 = vmatmul.mubr.bf16.gmra.mxu0 %v2208
          %v2585 = vpop.f32.mrf.mxu0
          %v2586 = vadd.f32 0.0, %v2585
          %v2587 = vpop.f32.mrf.mxu0
          %v2588 = vpop.f32.mrf.mxu0
          %v2589 = vadd.f32 0.0, %v2588
          %v2590 = vpop.f32.mrf.mxu0
          %2591 = vmatprep.mubr.bf16.mxu0 %v2394
          %2592 = vmatmul.mubr.bf16.gmra.mxu0 %v2210
          %v2593 = vpop.f32.mrf.mxu0
          %v2594 = vadd.f32 0.0, %v2593
          %v2595 = vpop.f32.mrf.mxu0
          %v2596 = vpop.f32.mrf.mxu0
          %v2597 = vadd.f32 0.0, %v2596
          %v2598 = vpop.f32.mrf.mxu0
          %2599 = vmatprep.mubr.bf16.mxu0 %v2397
          %2600 = vmatmul.mubr.bf16.gmra.mxu0 %v2212
          %v2601 = vpop.f32.mrf.mxu0
          %v2602 = vadd.f32 0.0, %v2601
          %v2603 = vpop.f32.mrf.mxu0
          %v2604 = vpop.f32.mrf.mxu0
          %v2605 = vadd.f32 0.0, %v2604
          %v2606 = vpop.f32.mrf.mxu0
          %2607 = vmatprep.mubr.bf16.mxu0 %v2400
          %2608 = vmatmul.mubr.bf16.gmra.mxu0 %v2214
          %v2609 = vpop.f32.mrf.mxu0
          %v2610 = vadd.f32 0.0, %v2609
          %v2611 = vpop.f32.mrf.mxu0
          %v2612 = vpop.f32.mrf.mxu0
          %v2613 = vadd.f32 0.0, %v2612
          %v2614 = vpop.f32.mrf.mxu0
          %2615 = vmatprep.mubr.bf16.mxu0 %v2403
          %2616 = vmatmul.mubr.bf16.gmra.mxu0 %v2216
          %v2617 = vpop.f32.mrf.mxu0
          %v2618 = vadd.f32 0.0, %v2617
          %v2619 = vpop.f32.mrf.mxu0
          %v2620 = vpop.f32.mrf.mxu0
          %v2621 = vadd.f32 0.0, %v2620
          %v2622 = vpop.f32.mrf.mxu0
          %2623 = vmatprep.mubr.bf16.mxu0 %v2406
          %2624 = vmatmul.mubr.bf16.gmra.mxu0 %v2218
          %v2625 = vpop.f32.mrf.mxu0
          %v2626 = vadd.f32 0.0, %v2625
          %v2627 = vpop.f32.mrf.mxu0
          %v2628 = vpop.f32.mrf.mxu0
          %v2629 = vadd.f32 0.0, %v2628
          %v2630 = vpop.f32.mrf.mxu0
          %2631 = vmatprep.mubr.bf16.mxu0 %v2409
          %2632 = vmatmul.mubr.bf16.gmra.mxu0 %v2220
          %v2633 = vpop.f32.mrf.mxu0
          %v2634 = vadd.f32 0.0, %v2633
          %v2635 = vpop.f32.mrf.mxu0
          %v2636 = vpop.f32.mrf.mxu0
          %v2637 = vadd.f32 0.0, %v2636
          %v2638 = vpop.f32.mrf.mxu0
          %2639 = vmatprep.mubr.bf16.mxu0 %v2412
          %2640 = vmatmul.mubr.bf16.gmra.mxu0 %v2222
          %v2641 = vpop.f32.mrf.mxu0
          %v2642 = vadd.f32 0.0, %v2641
          %v2643 = vpop.f32.mrf.mxu0
          %v2644 = vpop.f32.mrf.mxu0
          %v2645 = vadd.f32 0.0, %v2644
          %v2646 = vpop.f32.mrf.mxu0
          %2647 = vmatprep.mubr.bf16.mxu0 %v2415
          %2648 = vmatmul.mubr.bf16.gmra.mxu0 %v2224
          %v2649 = vpop.f32.mrf.mxu0
          %v2650 = vadd.f32 0.0, %v2649
          %v2651 = vpop.f32.mrf.mxu0
          %v2652 = vpop.f32.mrf.mxu0
          %v2653 = vadd.f32 0.0, %v2652
          %v2654 = vpop.f32.mrf.mxu0
          %2655 = vmatprep.mubr.bf16.mxu0 %v2418
          %2656 = vmatmul.mubr.bf16.gmra.mxu0 %v2226
          %v2657 = vpop.f32.mrf.mxu0
          %v2658 = vadd.f32 0.0, %v2657
          %v2659 = vpop.f32.mrf.mxu0
          %v2660 = vpop.f32.mrf.mxu0
          %v2661 = vadd.f32 0.0, %v2660
          %v2662 = vpop.f32.mrf.mxu0
          %2663 = vmatprep.mubr.bf16.mxu0 %v2421
          %2664 = vmatmul.mubr.bf16.gmra.mxu0 %v2228
          %v2665 = vpop.f32.mrf.mxu0
          %v2666 = vadd.f32 0.0, %v2665
          %v2667 = vpop.f32.mrf.mxu0
          %v2668 = vpop.f32.mrf.mxu0
          %v2669 = vadd.f32 0.0, %v2668
          %v2670 = vpop.f32.mrf.mxu0
          %2671 = vmatprep.mubr.bf16.mxu0 %v2424
          %2672 = vmatmul.mubr.bf16.gmra.mxu0 %v2230
          %v2673 = vpop.f32.mrf.mxu0
          %v2674 = vadd.f32 0.0, %v2673
          %v2675 = vpop.f32.mrf.mxu0
          %v2676 = vpop.f32.mrf.mxu0
          %v2677 = vadd.f32 0.0, %v2676
          %v2678 = vpop.f32.mrf.mxu0
          %2679 = vmatprep.mubr.bf16.mxu0 %v2427
          %2680 = vmatmul.mubr.bf16.gmra.mxu0 %v2232
          %v2681 = vpop.f32.mrf.mxu0
          %v2682 = vadd.f32 0.0, %v2681
          %v2683 = vpop.f32.mrf.mxu0
          %v2684 = vpop.f32.mrf.mxu0
          %v2685 = vadd.f32 0.0, %v2684
          %v2686 = vpop.f32.mrf.mxu0
          %2687 = vmatprep.mubr.bf16.mxu0 %v2430
          %2688 = vmatmul.mubr.bf16.gmra.mxu0 %v2234
          %v2689 = vpop.f32.mrf.mxu0
          %v2690 = vadd.f32 0.0, %v2689
          %v2691 = vpop.f32.mrf.mxu0
          %v2692 = vpop.f32.mrf.mxu0
          %v2693 = vadd.f32 0.0, %v2692
          %v2694 = vpop.f32.mrf.mxu0
          %2695 = vmatprep.mubr.bf16.mxu0 %v2433
          %2696 = vmatmul.mubr.bf16.gmra.mxu0 %v2236
          %v2697 = vpop.f32.mrf.mxu0
          %v2698 = vadd.f32 0.0, %v2697
          %v2699 = vpop.f32.mrf.mxu0
          %v2700 = vpop.f32.mrf.mxu0
          %v2701 = vadd.f32 0.0, %v2700
          %v2702 = vpop.f32.mrf.mxu0
          %2703 = vmatprep.mubr.bf16.mxu0 %v2436
          %2704 = vmatmul.mubr.bf16.gmra.mxu0 %v2238
          %v2705 = vpop.f32.mrf.mxu0
          %v2706 = vadd.f32 0.0, %v2705
          %v2707 = vpop.f32.mrf.mxu0
          %v2708 = vpop.f32.mrf.mxu0
          %v2709 = vadd.f32 0.0, %v2708
          %v2710 = vpop.f32.mrf.mxu0
          %2711 = vmatprep.mubr.bf16.mxu0 %v2439
          %2712 = vmatmul.mubr.bf16.gmra.mxu0 %v2240
          %v2713 = vpop.f32.mrf.mxu0
          %v2714 = vadd.f32 0.0, %v2713
          %v2715 = vpop.f32.mrf.mxu0
          %v2716 = vpop.f32.mrf.mxu0
          %v2717 = vadd.f32 0.0, %v2716
          %v2718 = vpop.f32.mrf.mxu0
          %2719 = vmatprep.mubr.bf16.mxu0 %v2442
          %2720 = vmatmul.mubr.bf16.gmra.mxu0 %v2242
          %v2721 = vpop.f32.mrf.mxu0
          %v2722 = vadd.f32 0.0, %v2721
          %v2723 = vpop.f32.mrf.mxu0
          %v2724 = vpop.f32.mrf.mxu0
          %v2725 = vadd.f32 0.0, %v2724
          %v2726 = vpop.f32.mrf.mxu0
          %2727 = vmatprep.mubr.bf16.mxu0 %v2445
          %2728 = vmatmul.mubr.bf16.gmra.mxu0 %v2244
          %v2729 = vpop.f32.mrf.mxu0
          %v2730 = vadd.f32 0.0, %v2729
          %v2731 = vpop.f32.mrf.mxu0
          %v2732 = vpop.f32.mrf.mxu0
          %v2733 = vadd.f32 0.0, %v2732
          %v2734 = vpop.f32.mrf.mxu0
          %2735 = vdwg.mxu0
          %v2736 = vadd.f32 %v1902, %v2482
          %v2737 = vadd.f32 %v1903, %v2485
          %v2738 = vadd.f32 %v1904, %v2490
          %v2739 = vadd.f32 %v1905, %v2493
          %v2740 = vadd.f32 %v1906, %v2498
          %v2741 = vadd.f32 %v1907, %v2501
          %v2742 = vadd.f32 %v1908, %v2506
          %v2743 = vadd.f32 %v1909, %v2509
          %v2744 = vadd.f32 %v1910, %v2514
          %v2745 = vadd.f32 %v1911, %v2517
          %v2746 = vadd.f32 %v1912, %v2522
          %v2747 = vadd.f32 %v1913, %v2525
          %v2748 = vadd.f32 %v1914, %v2530
          %v2749 = vadd.f32 %v1915, %v2533
          %v2750 = vadd.f32 %v1916, %v2538
          %v2751 = vadd.f32 %v1917, %v2541
          %v2752 = vadd.f32 %v1918, %v2546
          %v2753 = vadd.f32 %v1919, %v2549
          %v2754 = vadd.f32 %v1920, %v2554
          %v2755 = vadd.f32 %v1921, %v2557
          %v2756 = vadd.f32 %v1922, %v2562
          %v2757 = vadd.f32 %v1923, %v2565
          %v2758 = vadd.f32 %v1924, %v2570
          %v2759 = vadd.f32 %v1925, %v2573
          %v2760 = vadd.f32 %v1926, %v2578
          %v2761 = vadd.f32 %v1927, %v2581
          %v2762 = vadd.f32 %v1928, %v2586
          %v2763 = vadd.f32 %v1929, %v2589
          %v2764 = vadd.f32 %v1930, %v2594
          %v2765 = vadd.f32 %v1931, %v2597
          %v2766 = vadd.f32 %v1932, %v2602
          %v2767 = vadd.f32 %v1933, %v2605
          %v2768 = vadd.f32 %v1934, %v2610
          %v2769 = vadd.f32 %v1935, %v2613
          %v2770 = vadd.f32 %v1936, %v2618
          %v2771 = vadd.f32 %v1937, %v2621
          %v2772 = vadd.f32 %v1938, %v2626
          %v2773 = vadd.f32 %v1939, %v2629
          %v2774 = vadd.f32 %v1940, %v2634
          %v2775 = vadd.f32 %v1941, %v2637
          %v2776 = vadd.f32 %v1942, %v2642
          %v2777 = vadd.f32 %v1943, %v2645
          %v2778 = vadd.f32 %v1944, %v2650
          %v2779 = vadd.f32 %v1945, %v2653
          %v2780 = vadd.f32 %v1946, %v2658
          %v2781 = vadd.f32 %v1947, %v2661
          %v2782 = vadd.f32 %v1948, %v2666
          %v2783 = vadd.f32 %v1949, %v2669
          %v2784 = vadd.f32 %v1950, %v2674
          %v2785 = vadd.f32 %v1951, %v2677
          %v2786 = vadd.f32 %v1952, %v2682
          %v2787 = vadd.f32 %v1953, %v2685
          %v2788 = vadd.f32 %v1954, %v2690
          %v2789 = vadd.f32 %v1955, %v2693
          %v2790 = vadd.f32 %v1956, %v2698
          %v2791 = vadd.f32 %v1957, %v2701
          %v2792 = vadd.f32 %v1958, %v2706
          %v2793 = vadd.f32 %v1959, %v2709
          %v2794 = vadd.f32 %v1960, %v2714
          %v2795 = vadd.f32 %v1961, %v2717
          %v2796 = vadd.f32 %v1962, %v2722
          %v2797 = vadd.f32 %v1963, %v2725
          %v2798 = vadd.f32 %v1964, %v2730
          %v2799 = vadd.f32 %v1965, %v2733
          %2800 = vst.msk [vmem:[#allocation4] sm:$0xff] %vm2350, %v2736
          %2801 = vst.msk [vmem:[#allocation4 + $0x8] sm:$0xff] %vm2350, %v2737
          %2802 = vst.msk [vmem:[#allocation4 + $0x10] sm:$0xff] %vm2350, %v2738
          %2803 = vst.msk [vmem:[#allocation4 + $0x18] sm:$0xff] %vm2350, %v2739
          %2804 = vst.msk [vmem:[#allocation4 + $0x20] sm:$0xff] %vm2350, %v2740
          %2805 = vst.msk [vmem:[#allocation4 + $0x28] sm:$0xff] %vm2350, %v2741
          %2806 = vst.msk [vmem:[#allocation4 + $0x30] sm:$0xff] %vm2350, %v2742
          %2807 = vst.msk [vmem:[#allocation4 + $0x38] sm:$0xff] %vm2350, %v2743
          %2808 = vst.msk [vmem:[#allocation4 + $0x40] sm:$0xff] %vm2350, %v2744
          %2809 = vst.msk [vmem:[#allocation4 + $0x48] sm:$0xff] %vm2350, %v2745
          %2810 = vst.msk [vmem:[#allocation4 + $0x50] sm:$0xff] %vm2350, %v2746
          %2811 = vst.msk [vmem:[#allocation4 + $0x58] sm:$0xff] %vm2350, %v2747
          %2812 = vst.msk [vmem:[#allocation4 + $0x60] sm:$0xff] %vm2350, %v2748
          %2813 = vst.msk [vmem:[#allocation4 + $0x68] sm:$0xff] %vm2350, %v2749
          %2814 = vst.msk [vmem:[#allocation4 + $0x70] sm:$0xff] %vm2350, %v2750
          %2815 = vst.msk [vmem:[#allocation4 + $0x78] sm:$0xff] %vm2350, %v2751
          %2816 = vst.msk [vmem:[#allocation4 + $0x80] sm:$0xff] %vm2350, %v2752
          %2817 = vst.msk [vmem:[#allocation4 + $0x88] sm:$0xff] %vm2350, %v2753
          %2818 = vst.msk [vmem:[#allocation4 + $0x90] sm:$0xff] %vm2350, %v2754
          %2819 = vst.msk [vmem:[#allocation4 + $0x98] sm:$0xff] %vm2350, %v2755
          %2820 = vst.msk [vmem:[#allocation4 + $0xa0] sm:$0xff] %vm2350, %v2756
          %2821 = vst.msk [vmem:[#allocation4 + $0xa8] sm:$0xff] %vm2350, %v2757
          %2822 = vst.msk [vmem:[#allocation4 + $0xb0] sm:$0xff] %vm2350, %v2758
          %2823 = vst.msk [vmem:[#allocation4 + $0xb8] sm:$0xff] %vm2350, %v2759
          %2824 = vst.msk [vmem:[#allocation4 + $0xc0] sm:$0xff] %vm2350, %v2760
          %2825 = vst.msk [vmem:[#allocation4 + $0xc8] sm:$0xff] %vm2350, %v2761
          %2826 = vst.msk [vmem:[#allocation4 + $0xd0] sm:$0xff] %vm2350, %v2762
          %2827 = vst.msk [vmem:[#allocation4 + $0xd8] sm:$0xff] %vm2350, %v2763
          %2828 = vst.msk [vmem:[#allocation4 + $0xe0] sm:$0xff] %vm2350, %v2764
          %2829 = vst.msk [vmem:[#allocation4 + $0xe8] sm:$0xff] %vm2350, %v2765
          %2830 = vst.msk [vmem:[#allocation4 + $0xf0] sm:$0xff] %vm2350, %v2766
          %2831 = vst.msk [vmem:[#allocation4 + $0xf8] sm:$0xff] %vm2350, %v2767
          %2832 = vst.msk [vmem:[#allocation4 + $0x100] sm:$0xff] %vm2350, %v2768
          %2833 = vst.msk [vmem:[#allocation4 + $0x108] sm:$0xff] %vm2350, %v2769
          %2834 = vst.msk [vmem:[#allocation4 + $0x110] sm:$0xff] %vm2350, %v2770
          %2835 = vst.msk [vmem:[#allocation4 + $0x118] sm:$0xff] %vm2350, %v2771
          %2836 = vst.msk [vmem:[#allocation4 + $0x120] sm:$0xff] %vm2350, %v2772
          %2837 = vst.msk [vmem:[#allocation4 + $0x128] sm:$0xff] %vm2350, %v2773
          %2838 = vst.msk [vmem:[#allocation4 + $0x130] sm:$0xff] %vm2350, %v2774
          %2839 = vst.msk [vmem:[#allocation4 + $0x138] sm:$0xff] %vm2350, %v2775
          %2840 = vst.msk [vmem:[#allocation4 + $0x140] sm:$0xff] %vm2350, %v2776
          %2841 = vst.msk [vmem:[#allocation4 + $0x148] sm:$0xff] %vm2350, %v2777
          %2842 = vst.msk [vmem:[#allocation4 + $0x150] sm:$0xff] %vm2350, %v2778
          %2843 = vst.msk [vmem:[#allocation4 + $0x158] sm:$0xff] %vm2350, %v2779
          %2844 = vst.msk [vmem:[#allocation4 + $0x160] sm:$0xff] %vm2350, %v2780
          %2845 = vst.msk [vmem:[#allocation4 + $0x168] sm:$0xff] %vm2350, %v2781
          %2846 = vst.msk [vmem:[#allocation4 + $0x170] sm:$0xff] %vm2350, %v2782
          %2847 = vst.msk [vmem:[#allocation4 + $0x178] sm:$0xff] %vm2350, %v2783
          %2848 = vst.msk [vmem:[#allocation4 + $0x180] sm:$0xff] %vm2350, %v2784
          %2849 = vst.msk [vmem:[#allocation4 + $0x188] sm:$0xff] %vm2350, %v2785
          %2850 = vst.msk [vmem:[#allocation4 + $0x190] sm:$0xff] %vm2350, %v2786
          %2851 = vst.msk [vmem:[#allocation4 + $0x198] sm:$0xff] %vm2350, %v2787
          %2852 = vst.msk [vmem:[#allocation4 + $0x1a0] sm:$0xff] %vm2350, %v2788
          %2853 = vst.msk [vmem:[#allocation4 + $0x1a8] sm:$0xff] %vm2350, %v2789
          %2854 = vst.msk [vmem:[#allocation4 + $0x1b0] sm:$0xff] %vm2350, %v2790
          %2855 = vst.msk [vmem:[#allocation4 + $0x1b8] sm:$0xff] %vm2350, %v2791
          %2856 = vst.msk [vmem:[#allocation4 + $0x1c0] sm:$0xff] %vm2350, %v2792
          %2857 = vst.msk [vmem:[#allocation4 + $0x1c8] sm:$0xff] %vm2350, %v2793
          %2858 = vst.msk [vmem:[#allocation4 + $0x1d0] sm:$0xff] %vm2350, %v2794
          %2859 = vst.msk [vmem:[#allocation4 + $0x1d8] sm:$0xff] %vm2350, %v2795
          %2860 = vst.msk [vmem:[#allocation4 + $0x1e0] sm:$0xff] %vm2350, %v2796
          %2861 = vst.msk [vmem:[#allocation4 + $0x1e8] sm:$0xff] %vm2350, %v2797
          %2862 = vst.msk [vmem:[#allocation4 + $0x1f0] sm:$0xff] %vm2350, %v2798
          %2863 = vst.msk [vmem:[#allocation4 + $0x1f8] sm:$0xff] %vm2350, %v2799
        $region56: #{_lambda_.1} parent=47 // pred_fallthru
          _
        %p2864 = scmp.eq.s32.totalorder %s19, 3
        // Predicated region
        $region57: #{_lambda_.1} parent=47 // pred_check
          %p2865 = pneg %p2864
        $region58: #{_lambda_.1} parent=47 // pred_check_branch
          %2867 = sbr.rel (%p2865) target = $region60
        $region59: #{_lambda_.1} parent=47 // pred_region
          %v2868 = vld [vmem:[#allocation4] sm:$0xff]
          %v2869 = vld [vmem:[#allocation4 + $0x8] sm:$0xff]
          %v2870 = vld [vmem:[#allocation4 + $0x10] sm:$0xff]
          %v2871 = vld [vmem:[#allocation4 + $0x18] sm:$0xff]
          %v2872 = vld [vmem:[#allocation4 + $0x20] sm:$0xff]
          %v2873 = vld [vmem:[#allocation4 + $0x28] sm:$0xff]
          %v2874 = vld [vmem:[#allocation4 + $0x30] sm:$0xff]
          %v2875 = vld [vmem:[#allocation4 + $0x38] sm:$0xff]
          %v2876 = vld [vmem:[#allocation4 + $0x40] sm:$0xff]
          %v2877 = vld [vmem:[#allocation4 + $0x48] sm:$0xff]
          %v2878 = vld [vmem:[#allocation4 + $0x50] sm:$0xff]
          %v2879 = vld [vmem:[#allocation4 + $0x58] sm:$0xff]
          %v2880 = vld [vmem:[#allocation4 + $0x60] sm:$0xff]
          %v2881 = vld [vmem:[#allocation4 + $0x68] sm:$0xff]
          %v2882 = vld [vmem:[#allocation4 + $0x70] sm:$0xff]
          %v2883 = vld [vmem:[#allocation4 + $0x78] sm:$0xff]
          %v2884 = vld [vmem:[#allocation4 + $0x80] sm:$0xff]
          %v2885 = vld [vmem:[#allocation4 + $0x88] sm:$0xff]
          %v2886 = vld [vmem:[#allocation4 + $0x90] sm:$0xff]
          %v2887 = vld [vmem:[#allocation4 + $0x98] sm:$0xff]
          %v2888 = vld [vmem:[#allocation4 + $0xa0] sm:$0xff]
          %v2889 = vld [vmem:[#allocation4 + $0xa8] sm:$0xff]
          %v2890 = vld [vmem:[#allocation4 + $0xb0] sm:$0xff]
          %v2891 = vld [vmem:[#allocation4 + $0xb8] sm:$0xff]
          %v2892 = vld [vmem:[#allocation4 + $0xc0] sm:$0xff]
          %v2893 = vld [vmem:[#allocation4 + $0xc8] sm:$0xff]
          %v2894 = vld [vmem:[#allocation4 + $0xd0] sm:$0xff]
          %v2895 = vld [vmem:[#allocation4 + $0xd8] sm:$0xff]
          %v2896 = vld [vmem:[#allocation4 + $0xe0] sm:$0xff]
          %v2897 = vld [vmem:[#allocation4 + $0xe8] sm:$0xff]
          %v2898 = vld [vmem:[#allocation4 + $0xf0] sm:$0xff]
          %v2899 = vld [vmem:[#allocation4 + $0xf8] sm:$0xff]
          %v2900 = vld [vmem:[#allocation4 + $0x100] sm:$0xff]
          %v2901 = vld [vmem:[#allocation4 + $0x108] sm:$0xff]
          %v2902 = vld [vmem:[#allocation4 + $0x110] sm:$0xff]
          %v2903 = vld [vmem:[#allocation4 + $0x118] sm:$0xff]
          %v2904 = vld [vmem:[#allocation4 + $0x120] sm:$0xff]
          %v2905 = vld [vmem:[#allocation4 + $0x128] sm:$0xff]
          %v2906 = vld [vmem:[#allocation4 + $0x130] sm:$0xff]
          %v2907 = vld [vmem:[#allocation4 + $0x138] sm:$0xff]
          %v2908 = vld [vmem:[#allocation4 + $0x140] sm:$0xff]
          %v2909 = vld [vmem:[#allocation4 + $0x148] sm:$0xff]
          %v2910 = vld [vmem:[#allocation4 + $0x150] sm:$0xff]
          %v2911 = vld [vmem:[#allocation4 + $0x158] sm:$0xff]
          %v2912 = vld [vmem:[#allocation4 + $0x160] sm:$0xff]
          %v2913 = vld [vmem:[#allocation4 + $0x168] sm:$0xff]
          %v2914 = vld [vmem:[#allocation4 + $0x170] sm:$0xff]
          %v2915 = vld [vmem:[#allocation4 + $0x178] sm:$0xff]
          %v2916 = vld [vmem:[#allocation4 + $0x180] sm:$0xff]
          %v2917 = vld [vmem:[#allocation4 + $0x188] sm:$0xff]
          %v2918 = vld [vmem:[#allocation4 + $0x190] sm:$0xff]
          %v2919 = vld [vmem:[#allocation4 + $0x198] sm:$0xff]
          %v2920 = vld [vmem:[#allocation4 + $0x1a0] sm:$0xff]
          %v2921 = vld [vmem:[#allocation4 + $0x1a8] sm:$0xff]
          %v2922 = vld [vmem:[#allocation4 + $0x1b0] sm:$0xff]
          %v2923 = vld [vmem:[#allocation4 + $0x1b8] sm:$0xff]
          %v2924 = vld [vmem:[#allocation4 + $0x1c0] sm:$0xff]
          %v2925 = vld [vmem:[#allocation4 + $0x1c8] sm:$0xff]
          %v2926 = vld [vmem:[#allocation4 + $0x1d0] sm:$0xff]
          %v2927 = vld [vmem:[#allocation4 + $0x1d8] sm:$0xff]
          %v2928 = vld [vmem:[#allocation4 + $0x1e0] sm:$0xff]
          %v2929 = vld [vmem:[#allocation4 + $0x1e8] sm:$0xff]
          %v2930 = vld [vmem:[#allocation4 + $0x1f0] sm:$0xff]
          %v2931 = vld [vmem:[#allocation4 + $0x1f8] sm:$0xff]
          %v2932 = vld [vmem:[%s4] sm:$0x1]
          %v2934 = vlaneseq
          %v2935 = vshrl.u32 %v2934, 7
          %v2936 = vsub.s32 0, %v2935
          %v2937 = vrot.slane %v2932, %v2936
          %v2939 = vmul.f32 %v2868, %v2937
          %v2940 = vmul.f32 %v2869, %v2937
          %v2941 = vmul.f32 %v2870, %v2937
          %v2942 = vmul.f32 %v2871, %v2937
          %v2943 = vmul.f32 %v2872, %v2937
          %v2944 = vmul.f32 %v2873, %v2937
          %v2945 = vmul.f32 %v2874, %v2937
          %v2946 = vmul.f32 %v2875, %v2937
          %v2947 = vmul.f32 %v2876, %v2937
          %v2948 = vmul.f32 %v2877, %v2937
          %v2949 = vmul.f32 %v2878, %v2937
          %v2950 = vmul.f32 %v2879, %v2937
          %v2951 = vmul.f32 %v2880, %v2937
          %v2952 = vmul.f32 %v2881, %v2937
          %v2953 = vmul.f32 %v2882, %v2937
          %v2954 = vmul.f32 %v2883, %v2937
          %v2955 = vmul.f32 %v2884, %v2937
          %v2956 = vmul.f32 %v2885, %v2937
          %v2957 = vmul.f32 %v2886, %v2937
          %v2958 = vmul.f32 %v2887, %v2937
          %v2959 = vmul.f32 %v2888, %v2937
          %v2960 = vmul.f32 %v2889, %v2937
          %v2961 = vmul.f32 %v2890, %v2937
          %v2962 = vmul.f32 %v2891, %v2937
          %v2963 = vmul.f32 %v2892, %v2937
          %v2964 = vmul.f32 %v2893, %v2937
          %v2965 = vmul.f32 %v2894, %v2937
          %v2966 = vmul.f32 %v2895, %v2937
          %v2967 = vmul.f32 %v2896, %v2937
          %v2968 = vmul.f32 %v2897, %v2937
          %v2969 = vmul.f32 %v2898, %v2937
          %v2970 = vmul.f32 %v2899, %v2937
          %v2971 = vmul.f32 %v2900, %v2937
          %v2972 = vmul.f32 %v2901, %v2937
          %v2973 = vmul.f32 %v2902, %v2937
          %v2974 = vmul.f32 %v2903, %v2937
          %v2975 = vmul.f32 %v2904, %v2937
          %v2976 = vmul.f32 %v2905, %v2937
          %v2977 = vmul.f32 %v2906, %v2937
          %v2978 = vmul.f32 %v2907, %v2937
          %v2979 = vmul.f32 %v2908, %v2937
          %v2980 = vmul.f32 %v2909, %v2937
          %v2981 = vmul.f32 %v2910, %v2937
          %v2982 = vmul.f32 %v2911, %v2937
          %v2983 = vmul.f32 %v2912, %v2937
          %v2984 = vmul.f32 %v2913, %v2937
          %v2985 = vmul.f32 %v2914, %v2937
          %v2986 = vmul.f32 %v2915, %v2937
          %v2987 = vmul.f32 %v2916, %v2937
          %v2988 = vmul.f32 %v2917, %v2937
          %v2989 = vmul.f32 %v2918, %v2937
          %v2990 = vmul.f32 %v2919, %v2937
          %v2991 = vmul.f32 %v2920, %v2937
          %v2992 = vmul.f32 %v2921, %v2937
          %v2993 = vmul.f32 %v2922, %v2937
          %v2994 = vmul.f32 %v2923, %v2937
          %v2995 = vmul.f32 %v2924, %v2937
          %v2996 = vmul.f32 %v2925, %v2937
          %v2997 = vmul.f32 %v2926, %v2937
          %v2998 = vmul.f32 %v2927, %v2937
          %v2999 = vmul.f32 %v2928, %v2937
          %v3000 = vmul.f32 %v2929, %v2937
          %v3001 = vmul.f32 %v2930, %v2937
          %v3002 = vmul.f32 %v2931, %v2937
          %v3003 = vld [vmem:[%s5] sm:$0x1]
          %v3005 = vlaneseq
          %v3006 = vshrl.u32 %v3005, 7
          %v3007 = vsub.s32 0, %v3006
          %v3008 = vrot.slane %v3003, %v3007
          %v3010 = vadd.f32 %v2939, %v3008
          %v3011 = vadd.f32 %v2940, %v3008
          %v3012 = vadd.f32 %v2941, %v3008
          %v3013 = vadd.f32 %v2942, %v3008
          %v3014 = vadd.f32 %v2943, %v3008
          %v3015 = vadd.f32 %v2944, %v3008
          %v3016 = vadd.f32 %v2945, %v3008
          %v3017 = vadd.f32 %v2946, %v3008
          %v3018 = vadd.f32 %v2947, %v3008
          %v3019 = vadd.f32 %v2948, %v3008
          %v3020 = vadd.f32 %v2949, %v3008
          %v3021 = vadd.f32 %v2950, %v3008
          %v3022 = vadd.f32 %v2951, %v3008
          %v3023 = vadd.f32 %v2952, %v3008
          %v3024 = vadd.f32 %v2953, %v3008
          %v3025 = vadd.f32 %v2954, %v3008
          %v3026 = vadd.f32 %v2955, %v3008
          %v3027 = vadd.f32 %v2956, %v3008
          %v3028 = vadd.f32 %v2957, %v3008
          %v3029 = vadd.f32 %v2958, %v3008
          %v3030 = vadd.f32 %v2959, %v3008
          %v3031 = vadd.f32 %v2960, %v3008
          %v3032 = vadd.f32 %v2961, %v3008
          %v3033 = vadd.f32 %v2962, %v3008
          %v3034 = vadd.f32 %v2963, %v3008
          %v3035 = vadd.f32 %v2964, %v3008
          %v3036 = vadd.f32 %v2965, %v3008
          %v3037 = vadd.f32 %v2966, %v3008
          %v3038 = vadd.f32 %v2967, %v3008
          %v3039 = vadd.f32 %v2968, %v3008
          %v3040 = vadd.f32 %v2969, %v3008
          %v3041 = vadd.f32 %v2970, %v3008
          %v3042 = vadd.f32 %v2971, %v3008
          %v3043 = vadd.f32 %v2972, %v3008
          %v3044 = vadd.f32 %v2973, %v3008
          %v3045 = vadd.f32 %v2974, %v3008
          %v3046 = vadd.f32 %v2975, %v3008
          %v3047 = vadd.f32 %v2976, %v3008
          %v3048 = vadd.f32 %v2977, %v3008
          %v3049 = vadd.f32 %v2978, %v3008
          %v3050 = vadd.f32 %v2979, %v3008
          %v3051 = vadd.f32 %v2980, %v3008
          %v3052 = vadd.f32 %v2981, %v3008
          %v3053 = vadd.f32 %v2982, %v3008
          %v3054 = vadd.f32 %v2983, %v3008
          %v3055 = vadd.f32 %v2984, %v3008
          %v3056 = vadd.f32 %v2985, %v3008
          %v3057 = vadd.f32 %v2986, %v3008
          %v3058 = vadd.f32 %v2987, %v3008
          %v3059 = vadd.f32 %v2988, %v3008
          %v3060 = vadd.f32 %v2989, %v3008
          %v3061 = vadd.f32 %v2990, %v3008
          %v3062 = vadd.f32 %v2991, %v3008
          %v3063 = vadd.f32 %v2992, %v3008
          %v3064 = vadd.f32 %v2993, %v3008
          %v3065 = vadd.f32 %v2994, %v3008
          %v3066 = vadd.f32 %v2995, %v3008
          %v3067 = vadd.f32 %v2996, %v3008
          %v3068 = vadd.f32 %v2997, %v3008
          %v3069 = vadd.f32 %v2998, %v3008
          %v3070 = vadd.f32 %v2999, %v3008
          %v3071 = vadd.f32 %v3000, %v3008
          %v3072 = vadd.f32 %v3001, %v3008
          %v3073 = vadd.f32 %v3002, %v3008
          %v3074 = vmax.f32 %v3010, 0.0
          %v3075 = vmax.f32 %v3011, 0.0
          %v3076 = vmax.f32 %v3012, 0.0
          %v3077 = vmax.f32 %v3013, 0.0
          %v3078 = vmax.f32 %v3014, 0.0
          %v3079 = vmax.f32 %v3015, 0.0
          %v3080 = vmax.f32 %v3016, 0.0
          %v3081 = vmax.f32 %v3017, 0.0
          %v3082 = vmax.f32 %v3018, 0.0
          %v3083 = vmax.f32 %v3019, 0.0
          %v3084 = vmax.f32 %v3020, 0.0
          %v3085 = vmax.f32 %v3021, 0.0
          %v3086 = vmax.f32 %v3022, 0.0
          %v3087 = vmax.f32 %v3023, 0.0
          %v3088 = vmax.f32 %v3024, 0.0
          %v3089 = vmax.f32 %v3025, 0.0
          %v3090 = vmax.f32 %v3026, 0.0
          %v3091 = vmax.f32 %v3027, 0.0
          %v3092 = vmax.f32 %v3028, 0.0
          %v3093 = vmax.f32 %v3029, 0.0
          %v3094 = vmax.f32 %v3030, 0.0
          %v3095 = vmax.f32 %v3031, 0.0
          %v3096 = vmax.f32 %v3032, 0.0
          %v3097 = vmax.f32 %v3033, 0.0
          %v3098 = vmax.f32 %v3034, 0.0
          %v3099 = vmax.f32 %v3035, 0.0
          %v3100 = vmax.f32 %v3036, 0.0
          %v3101 = vmax.f32 %v3037, 0.0
          %v3102 = vmax.f32 %v3038, 0.0
          %v3103 = vmax.f32 %v3039, 0.0
          %v3104 = vmax.f32 %v3040, 0.0
          %v3105 = vmax.f32 %v3041, 0.0
          %v3106 = vmax.f32 %v3042, 0.0
          %v3107 = vmax.f32 %v3043, 0.0
          %v3108 = vmax.f32 %v3044, 0.0
          %v3109 = vmax.f32 %v3045, 0.0
          %v3110 = vmax.f32 %v3046, 0.0
          %v3111 = vmax.f32 %v3047, 0.0
          %v3112 = vmax.f32 %v3048, 0.0
          %v3113 = vmax.f32 %v3049, 0.0
          %v3114 = vmax.f32 %v3050, 0.0
          %v3115 = vmax.f32 %v3051, 0.0
          %v3116 = vmax.f32 %v3052, 0.0
          %v3117 = vmax.f32 %v3053, 0.0
          %v3118 = vmax.f32 %v3054, 0.0
          %v3119 = vmax.f32 %v3055, 0.0
          %v3120 = vmax.f32 %v3056, 0.0
          %v3121 = vmax.f32 %v3057, 0.0
          %v3122 = vmax.f32 %v3058, 0.0
          %v3123 = vmax.f32 %v3059, 0.0
          %v3124 = vmax.f32 %v3060, 0.0
          %v3125 = vmax.f32 %v3061, 0.0
          %v3126 = vmax.f32 %v3062, 0.0
          %v3127 = vmax.f32 %v3063, 0.0
          %v3128 = vmax.f32 %v3064, 0.0
          %v3129 = vmax.f32 %v3065, 0.0
          %v3130 = vmax.f32 %v3066, 0.0
          %v3131 = vmax.f32 %v3067, 0.0
          %v3132 = vmax.f32 %v3068, 0.0
          %v3133 = vmax.f32 %v3069, 0.0
          %v3134 = vmax.f32 %v3070, 0.0
          %v3135 = vmax.f32 %v3071, 0.0
          %v3136 = vmax.f32 %v3072, 0.0
          %v3137 = vmax.f32 %v3073, 0.0
          %v3138 = vpack.c.bf16 %v3075, %v3074
          %v3139 = vpack.c.bf16 %v3077, %v3076
          %v3140 = vpack.c.bf16 %v3079, %v3078
          %v3141 = vpack.c.bf16 %v3081, %v3080
          %v3142 = vpack.c.bf16 %v3083, %v3082
          %v3143 = vpack.c.bf16 %v3085, %v3084
          %v3144 = vpack.c.bf16 %v3087, %v3086
          %v3145 = vpack.c.bf16 %v3089, %v3088
          %v3146 = vpack.c.bf16 %v3091, %v3090
          %v3147 = vpack.c.bf16 %v3093, %v3092
          %v3148 = vpack.c.bf16 %v3095, %v3094
          %v3149 = vpack.c.bf16 %v3097, %v3096
          %v3150 = vpack.c.bf16 %v3099, %v3098
          %v3151 = vpack.c.bf16 %v3101, %v3100
          %v3152 = vpack.c.bf16 %v3103, %v3102
          %v3153 = vpack.c.bf16 %v3105, %v3104
          %v3154 = vpack.c.bf16 %v3107, %v3106
          %v3155 = vpack.c.bf16 %v3109, %v3108
          %v3156 = vpack.c.bf16 %v3111, %v3110
          %v3157 = vpack.c.bf16 %v3113, %v3112
          %v3158 = vpack.c.bf16 %v3115, %v3114
          %v3159 = vpack.c.bf16 %v3117, %v3116
          %v3160 = vpack.c.bf16 %v3119, %v3118
          %v3161 = vpack.c.bf16 %v3121, %v3120
          %v3162 = vpack.c.bf16 %v3123, %v3122
          %v3163 = vpack.c.bf16 %v3125, %v3124
          %v3164 = vpack.c.bf16 %v3127, %v3126
          %v3165 = vpack.c.bf16 %v3129, %v3128
          %v3166 = vpack.c.bf16 %v3131, %v3130
          %v3167 = vpack.c.bf16 %v3133, %v3132
          %v3168 = vpack.c.bf16 %v3135, %v3134
          %v3169 = vpack.c.bf16 %v3137, %v3136
          %v3171 = vshrl.u32 %v3138, 16
          %v3173 = vrot.slane %v3171, 7
          %v3174 = vshll.u32 %v3138, 16
          %v3176 = vor.u32 %v3173, %v3174
          %v3178 = vshrl.u32 %v3139, 16
          %v3180 = vrot.slane %v3178, 7
          %v3181 = vshll.u32 %v3139, 16
          %v3183 = vor.u32 %v3180, %v3181
          %v3185 = vshrl.u32 %v3140, 16
          %v3187 = vrot.slane %v3185, 7
          %v3188 = vshll.u32 %v3140, 16
          %v3190 = vor.u32 %v3187, %v3188
          %v3192 = vshrl.u32 %v3141, 16
          %v3194 = vrot.slane %v3192, 7
          %v3195 = vshll.u32 %v3141, 16
          %v3197 = vor.u32 %v3194, %v3195
          %v3199 = vshrl.u32 %v3142, 16
          %v3201 = vrot.slane %v3199, 7
          %v3202 = vshll.u32 %v3142, 16
          %v3204 = vor.u32 %v3201, %v3202
          %v3206 = vshrl.u32 %v3143, 16
          %v3208 = vrot.slane %v3206, 7
          %v3209 = vshll.u32 %v3143, 16
          %v3211 = vor.u32 %v3208, %v3209
          %v3213 = vshrl.u32 %v3144, 16
          %v3215 = vrot.slane %v3213, 7
          %v3216 = vshll.u32 %v3144, 16
          %v3218 = vor.u32 %v3215, %v3216
          %v3220 = vshrl.u32 %v3145, 16
          %v3222 = vrot.slane %v3220, 7
          %v3223 = vshll.u32 %v3145, 16
          %v3225 = vor.u32 %v3222, %v3223
          %v3227 = vshrl.u32 %v3146, 16
          %v3229 = vrot.slane %v3227, 7
          %v3230 = vshll.u32 %v3146, 16
          %v3232 = vor.u32 %v3229, %v3230
          %v3234 = vshrl.u32 %v3147, 16
          %v3236 = vrot.slane %v3234, 7
          %v3237 = vshll.u32 %v3147, 16
          %v3239 = vor.u32 %v3236, %v3237
          %v3241 = vshrl.u32 %v3148, 16
          %v3243 = vrot.slane %v3241, 7
          %v3244 = vshll.u32 %v3148, 16
          %v3246 = vor.u32 %v3243, %v3244
          %v3248 = vshrl.u32 %v3149, 16
          %v3250 = vrot.slane %v3248, 7
          %v3251 = vshll.u32 %v3149, 16
          %v3253 = vor.u32 %v3250, %v3251
          %v3255 = vshrl.u32 %v3150, 16
          %v3257 = vrot.slane %v3255, 7
          %v3258 = vshll.u32 %v3150, 16
          %v3260 = vor.u32 %v3257, %v3258
          %v3262 = vshrl.u32 %v3151, 16
          %v3264 = vrot.slane %v3262, 7
          %v3265 = vshll.u32 %v3151, 16
          %v3267 = vor.u32 %v3264, %v3265
          %v3269 = vshrl.u32 %v3152, 16
          %v3271 = vrot.slane %v3269, 7
          %v3272 = vshll.u32 %v3152, 16
          %v3274 = vor.u32 %v3271, %v3272
          %v3276 = vshrl.u32 %v3153, 16
          %v3278 = vrot.slane %v3276, 7
          %v3279 = vshll.u32 %v3153, 16
          %v3281 = vor.u32 %v3278, %v3279
          %v3283 = vshrl.u32 %v3154, 16
          %v3285 = vrot.slane %v3283, 7
          %v3286 = vshll.u32 %v3154, 16
          %v3288 = vor.u32 %v3285, %v3286
          %v3290 = vshrl.u32 %v3155, 16
          %v3292 = vrot.slane %v3290, 7
          %v3293 = vshll.u32 %v3155, 16
          %v3295 = vor.u32 %v3292, %v3293
          %v3297 = vshrl.u32 %v3156, 16
          %v3299 = vrot.slane %v3297, 7
          %v3300 = vshll.u32 %v3156, 16
          %v3302 = vor.u32 %v3299, %v3300
          %v3304 = vshrl.u32 %v3157, 16
          %v3306 = vrot.slane %v3304, 7
          %v3307 = vshll.u32 %v3157, 16
          %v3309 = vor.u32 %v3306, %v3307
          %v3311 = vshrl.u32 %v3158, 16
          %v3313 = vrot.slane %v3311, 7
          %v3314 = vshll.u32 %v3158, 16
          %v3316 = vor.u32 %v3313, %v3314
          %v3318 = vshrl.u32 %v3159, 16
          %v3320 = vrot.slane %v3318, 7
          %v3321 = vshll.u32 %v3159, 16
          %v3323 = vor.u32 %v3320, %v3321
          %v3325 = vshrl.u32 %v3160, 16
          %v3327 = vrot.slane %v3325, 7
          %v3328 = vshll.u32 %v3160, 16
          %v3330 = vor.u32 %v3327, %v3328
          %v3332 = vshrl.u32 %v3161, 16
          %v3334 = vrot.slane %v3332, 7
          %v3335 = vshll.u32 %v3161, 16
          %v3337 = vor.u32 %v3334, %v3335
          %v3339 = vshrl.u32 %v3162, 16
          %v3341 = vrot.slane %v3339, 7
          %v3342 = vshll.u32 %v3162, 16
          %v3344 = vor.u32 %v3341, %v3342
          %v3346 = vshrl.u32 %v3163, 16
          %v3348 = vrot.slane %v3346, 7
          %v3349 = vshll.u32 %v3163, 16
          %v3351 = vor.u32 %v3348, %v3349
          %v3353 = vshrl.u32 %v3164, 16
          %v3355 = vrot.slane %v3353, 7
          %v3356 = vshll.u32 %v3164, 16
          %v3358 = vor.u32 %v3355, %v3356
          %v3360 = vshrl.u32 %v3165, 16
          %v3362 = vrot.slane %v3360, 7
          %v3363 = vshll.u32 %v3165, 16
          %v3365 = vor.u32 %v3362, %v3363
          %v3367 = vshrl.u32 %v3166, 16
          %v3369 = vrot.slane %v3367, 7
          %v3370 = vshll.u32 %v3166, 16
          %v3372 = vor.u32 %v3369, %v3370
          %v3374 = vshrl.u32 %v3167, 16
          %v3376 = vrot.slane %v3374, 7
          %v3377 = vshll.u32 %v3167, 16
          %v3379 = vor.u32 %v3376, %v3377
          %v3381 = vshrl.u32 %v3168, 16
          %v3383 = vrot.slane %v3381, 7
          %v3384 = vshll.u32 %v3168, 16
          %v3386 = vor.u32 %v3383, %v3384
          %v3388 = vshrl.u32 %v3169, 16
          %v3390 = vrot.slane %v3388, 7
          %v3391 = vshll.u32 %v3169, 16
          %v3393 = vor.u32 %v3390, %v3391
          %vm3426 = vcmask 1040384
          %vm3427 = vsmask.f32 256
          %vm3428 = vmand %vm3426, %vm3427
          %v3429 = vsel %vm3428, 0, %v3176
          %v3430 = vsel %vm3428, 0, %v3183
          %v3431 = vsel %vm3428, 0, %v3190
          %v3432 = vsel %vm3428, 0, %v3197
          %v3433 = vsel %vm3428, 0, %v3204
          %v3434 = vsel %vm3428, 0, %v3211
          %v3435 = vsel %vm3428, 0, %v3218
          %v3436 = vsel %vm3428, 0, %v3225
          %v3437 = vsel %vm3428, 0, %v3232
          %v3438 = vsel %vm3428, 0, %v3239
          %v3439 = vsel %vm3428, 0, %v3246
          %v3440 = vsel %vm3428, 0, %v3253
          %v3441 = vsel %vm3428, 0, %v3260
          %v3442 = vsel %vm3428, 0, %v3267
          %v3443 = vsel %vm3428, 0, %v3274
          %v3444 = vsel %vm3428, 0, %v3281
          %v3445 = vsel %vm3428, 0, %v3288
          %v3446 = vsel %vm3428, 0, %v3295
          %v3447 = vsel %vm3428, 0, %v3302
          %v3448 = vsel %vm3428, 0, %v3309
          %v3449 = vsel %vm3428, 0, %v3316
          %v3450 = vsel %vm3428, 0, %v3323
          %v3451 = vsel %vm3428, 0, %v3330
          %v3452 = vsel %vm3428, 0, %v3337
          %v3453 = vsel %vm3428, 0, %v3344
          %v3454 = vsel %vm3428, 0, %v3351
          %v3455 = vsel %vm3428, 0, %v3358
          %v3456 = vsel %vm3428, 0, %v3365
          %v3457 = vsel %vm3428, 0, %v3372
          %v3458 = vsel %vm3428, 0, %v3379
          %v3459 = vsel %vm3428, 0, %v3386
          %v3460 = vsel %vm3428, 0, %v3393
          %v3461 = vrot.slane %v3174, 1
          %v3462 = vor.u32 %v3171, %v3461
          %v3463 = vrot.slane %v3181, 1
          %v3464 = vor.u32 %v3178, %v3463
          %v3465 = vrot.slane %v3188, 1
          %v3466 = vor.u32 %v3185, %v3465
          %v3467 = vrot.slane %v3195, 1
          %v3468 = vor.u32 %v3192, %v3467
          %v3469 = vrot.slane %v3202, 1
          %v3470 = vor.u32 %v3199, %v3469
          %v3471 = vrot.slane %v3209, 1
          %v3472 = vor.u32 %v3206, %v3471
          %v3473 = vrot.slane %v3216, 1
          %v3474 = vor.u32 %v3213, %v3473
          %v3475 = vrot.slane %v3223, 1
          %v3476 = vor.u32 %v3220, %v3475
          %v3477 = vrot.slane %v3230, 1
          %v3478 = vor.u32 %v3227, %v3477
          %v3479 = vrot.slane %v3237, 1
          %v3480 = vor.u32 %v3234, %v3479
          %v3481 = vrot.slane %v3244, 1
          %v3482 = vor.u32 %v3241, %v3481
          %v3483 = vrot.slane %v3251, 1
          %v3484 = vor.u32 %v3248, %v3483
          %v3485 = vrot.slane %v3258, 1
          %v3486 = vor.u32 %v3255, %v3485
          %v3487 = vrot.slane %v3265, 1
          %v3488 = vor.u32 %v3262, %v3487
          %v3489 = vrot.slane %v3272, 1
          %v3490 = vor.u32 %v3269, %v3489
          %v3491 = vrot.slane %v3279, 1
          %v3492 = vor.u32 %v3276, %v3491
          %v3493 = vrot.slane %v3286, 1
          %v3494 = vor.u32 %v3283, %v3493
          %v3495 = vrot.slane %v3293, 1
          %v3496 = vor.u32 %v3290, %v3495
          %v3497 = vrot.slane %v3300, 1
          %v3498 = vor.u32 %v3297, %v3497
          %v3499 = vrot.slane %v3307, 1
          %v3500 = vor.u32 %v3304, %v3499
          %v3501 = vrot.slane %v3314, 1
          %v3502 = vor.u32 %v3311, %v3501
          %v3503 = vrot.slane %v3321, 1
          %v3504 = vor.u32 %v3318, %v3503
          %v3505 = vrot.slane %v3328, 1
          %v3506 = vor.u32 %v3325, %v3505
          %v3507 = vrot.slane %v3335, 1
          %v3508 = vor.u32 %v3332, %v3507
          %v3509 = vrot.slane %v3342, 1
          %v3510 = vor.u32 %v3339, %v3509
          %v3511 = vrot.slane %v3349, 1
          %v3512 = vor.u32 %v3346, %v3511
          %v3513 = vrot.slane %v3356, 1
          %v3514 = vor.u32 %v3353, %v3513
          %v3515 = vrot.slane %v3363, 1
          %v3516 = vor.u32 %v3360, %v3515
          %v3517 = vrot.slane %v3370, 1
          %v3518 = vor.u32 %v3367, %v3517
          %v3519 = vrot.slane %v3377, 1
          %v3520 = vor.u32 %v3374, %v3519
          %v3521 = vrot.slane %v3384, 1
          %v3522 = vor.u32 %v3381, %v3521
          %v3523 = vrot.slane %v3391, 1
          %v3524 = vor.u32 %v3388, %v3523
          %vm3557 = vcmask 1047552
          %vm3558 = vsmask.f32 7424
          %vm3559 = vmand %vm3557, %vm3558
          %v3560 = vsel %vm3559, %v3462, 0
          %v3561 = vsel %vm3559, %v3464, 0
          %v3562 = vsel %vm3559, %v3466, 0
          %v3563 = vsel %vm3559, %v3468, 0
          %v3564 = vsel %vm3559, %v3470, 0
          %v3565 = vsel %vm3559, %v3472, 0
          %v3566 = vsel %vm3559, %v3474, 0
          %v3567 = vsel %vm3559, %v3476, 0
          %v3568 = vsel %vm3559, %v3478, 0
          %v3569 = vsel %vm3559, %v3480, 0
          %v3570 = vsel %vm3559, %v3482, 0
          %v3571 = vsel %vm3559, %v3484, 0
          %v3572 = vsel %vm3559, %v3486, 0
          %v3573 = vsel %vm3559, %v3488, 0
          %v3574 = vsel %vm3559, %v3490, 0
          %v3575 = vsel %vm3559, %v3492, 0
          %v3576 = vsel %vm3559, %v3494, 0
          %v3577 = vsel %vm3559, %v3496, 0
          %v3578 = vsel %vm3559, %v3498, 0
          %v3579 = vsel %vm3559, %v3500, 0
          %v3580 = vsel %vm3559, %v3502, 0
          %v3581 = vsel %vm3559, %v3504, 0
          %v3582 = vsel %vm3559, %v3506, 0
          %v3583 = vsel %vm3559, %v3508, 0
          %v3584 = vsel %vm3559, %v3510, 0
          %v3585 = vsel %vm3559, %v3512, 0
          %v3586 = vsel %vm3559, %v3514, 0
          %v3587 = vsel %vm3559, %v3516, 0
          %v3588 = vsel %vm3559, %v3518, 0
          %v3589 = vsel %vm3559, %v3520, 0
          %v3590 = vsel %vm3559, %v3522, 0
          %v3591 = vsel %vm3559, %v3524, 0
          %3624 = vrot.lane.b32.xlu0 %v3138, 64
          %v3625 = vpop.permute.xlu0 %3624
          %3626 = vrot.lane.b32.xlu0 %v3139, 64
          %v3627 = vpop.permute.xlu0 %3626
          %3628 = vrot.lane.b32.xlu0 %v3140, 64
          %v3629 = vpop.permute.xlu0 %3628
          %3630 = vrot.lane.b32.xlu0 %v3141, 64
          %v3631 = vpop.permute.xlu0 %3630
          %3632 = vrot.lane.b32.xlu0 %v3142, 64
          %v3633 = vpop.permute.xlu0 %3632
          %3634 = vrot.lane.b32.xlu0 %v3143, 64
          %v3635 = vpop.permute.xlu0 %3634
          %3636 = vrot.lane.b32.xlu0 %v3144, 64
          %v3637 = vpop.permute.xlu0 %3636
          %3638 = vrot.lane.b32.xlu0 %v3145, 64
          %v3639 = vpop.permute.xlu0 %3638
          %3640 = vrot.lane.b32.xlu0 %v3146, 64
          %v3641 = vpop.permute.xlu0 %3640
          %3642 = vrot.lane.b32.xlu0 %v3147, 64
          %v3643 = vpop.permute.xlu0 %3642
          %3644 = vrot.lane.b32.xlu0 %v3148, 64
          %v3645 = vpop.permute.xlu0 %3644
          %3646 = vrot.lane.b32.xlu0 %v3149, 64
          %v3647 = vpop.permute.xlu0 %3646
          %3648 = vrot.lane.b32.xlu0 %v3150, 64
          %v3649 = vpop.permute.xlu0 %3648
          %3650 = vrot.lane.b32.xlu0 %v3151, 64
          %v3651 = vpop.permute.xlu0 %3650
          %3652 = vrot.lane.b32.xlu0 %v3152, 64
          %v3653 = vpop.permute.xlu0 %3652
          %3654 = vrot.lane.b32.xlu0 %v3153, 64
          %v3655 = vpop.permute.xlu0 %3654
          %3656 = vrot.lane.b32.xlu0 %v3154, 64
          %v3657 = vpop.permute.xlu0 %3656
          %3658 = vrot.lane.b32.xlu0 %v3155, 64
          %v3659 = vpop.permute.xlu0 %3658
          %3660 = vrot.lane.b32.xlu0 %v3156, 64
          %v3661 = vpop.permute.xlu0 %3660
          %3662 = vrot.lane.b32.xlu0 %v3157, 64
          %v3663 = vpop.permute.xlu0 %3662
          %3664 = vrot.lane.b32.xlu0 %v3158, 64
          %v3665 = vpop.permute.xlu0 %3664
          %3666 = vrot.lane.b32.xlu0 %v3159, 64
          %v3667 = vpop.permute.xlu0 %3666
          %3668 = vrot.lane.b32.xlu0 %v3160, 64
          %v3669 = vpop.permute.xlu0 %3668
          %3670 = vrot.lane.b32.xlu0 %v3161, 64
          %v3671 = vpop.permute.xlu0 %3670
          %3672 = vrot.lane.b32.xlu0 %v3162, 64
          %v3673 = vpop.permute.xlu0 %3672
          %3674 = vrot.lane.b32.xlu0 %v3163, 64
          %v3675 = vpop.permute.xlu0 %3674
          %3676 = vrot.lane.b32.xlu0 %v3164, 64
          %v3677 = vpop.permute.xlu0 %3676
          %3678 = vrot.lane.b32.xlu0 %v3165, 64
          %v3679 = vpop.permute.xlu0 %3678
          %3680 = vrot.lane.b32.xlu0 %v3166, 64
          %v3681 = vpop.permute.xlu0 %3680
          %3682 = vrot.lane.b32.xlu0 %v3167, 64
          %v3683 = vpop.permute.xlu0 %3682
          %3684 = vrot.lane.b32.xlu0 %v3168, 64
          %v3685 = vpop.permute.xlu0 %3684
          %3686 = vrot.lane.b32.xlu0 %v3169, 64
          %v3687 = vpop.permute.xlu0 %3686
          %vm3688 = vcmask 523264
          %v3691 = vsel %vm3688, %v3429, %v3625
          %v3694 = vsel %vm3688, %v3430, %v3627
          %v3697 = vsel %vm3688, %v3431, %v3629
          %v3700 = vsel %vm3688, %v3432, %v3631
          %v3703 = vsel %vm3688, %v3433, %v3633
          %v3706 = vsel %vm3688, %v3434, %v3635
          %v3709 = vsel %vm3688, %v3435, %v3637
          %v3712 = vsel %vm3688, %v3436, %v3639
          %v3715 = vsel %vm3688, %v3437, %v3641
          %v3718 = vsel %vm3688, %v3438, %v3643
          %v3721 = vsel %vm3688, %v3439, %v3645
          %v3724 = vsel %vm3688, %v3440, %v3647
          %v3727 = vsel %vm3688, %v3441, %v3649
          %v3730 = vsel %vm3688, %v3442, %v3651
          %v3733 = vsel %vm3688, %v3443, %v3653
          %v3736 = vsel %vm3688, %v3444, %v3655
          %v3739 = vsel %vm3688, %v3445, %v3657
          %v3742 = vsel %vm3688, %v3446, %v3659
          %v3745 = vsel %vm3688, %v3447, %v3661
          %v3748 = vsel %vm3688, %v3448, %v3663
          %v3751 = vsel %vm3688, %v3449, %v3665
          %v3754 = vsel %vm3688, %v3450, %v3667
          %v3757 = vsel %vm3688, %v3451, %v3669
          %v3760 = vsel %vm3688, %v3452, %v3671
          %v3763 = vsel %vm3688, %v3453, %v3673
          %v3766 = vsel %vm3688, %v3454, %v3675
          %v3769 = vsel %vm3688, %v3455, %v3677
          %v3772 = vsel %vm3688, %v3456, %v3679
          %v3775 = vsel %vm3688, %v3457, %v3681
          %v3778 = vsel %vm3688, %v3458, %v3683
          %v3781 = vsel %vm3688, %v3459, %v3685
          %v3784 = vsel %vm3688, %v3460, %v3687
          %v3849 = vunpack.c.l.b16 %v3691
          %v3850 = vunpack.c.l.b16 %v3560
          %v3851 = vunpack.c.h.b16 %v3691
          %v3852 = vunpack.c.h.b16 %v3560
          %v3853 = vunpack.c.l.b16 %v3694
          %v3854 = vunpack.c.l.b16 %v3561
          %v3855 = vunpack.c.h.b16 %v3694
          %v3856 = vunpack.c.h.b16 %v3561
          %v3857 = vunpack.c.l.b16 %v3697
          %v3858 = vunpack.c.l.b16 %v3562
          %v3859 = vunpack.c.h.b16 %v3697
          %v3860 = vunpack.c.h.b16 %v3562
          %v3861 = vunpack.c.l.b16 %v3700
          %v3862 = vunpack.c.l.b16 %v3563
          %v3863 = vunpack.c.h.b16 %v3700
          %v3864 = vunpack.c.h.b16 %v3563
          %v3865 = vunpack.c.l.b16 %v3703
          %v3866 = vunpack.c.l.b16 %v3564
          %v3867 = vunpack.c.h.b16 %v3703
          %v3868 = vunpack.c.h.b16 %v3564
          %v3869 = vunpack.c.l.b16 %v3706
          %v3870 = vunpack.c.l.b16 %v3565
          %v3871 = vunpack.c.h.b16 %v3706
          %v3872 = vunpack.c.h.b16 %v3565
          %v3873 = vunpack.c.l.b16 %v3709
          %v3874 = vunpack.c.l.b16 %v3566
          %v3875 = vunpack.c.h.b16 %v3709
          %v3876 = vunpack.c.h.b16 %v3566
          %v3877 = vunpack.c.l.b16 %v3712
          %v3878 = vunpack.c.l.b16 %v3567
          %v3879 = vunpack.c.h.b16 %v3712
          %v3880 = vunpack.c.h.b16 %v3567
          %v3881 = vunpack.c.l.b16 %v3715
          %v3882 = vunpack.c.l.b16 %v3568
          %v3883 = vunpack.c.h.b16 %v3715
          %v3884 = vunpack.c.h.b16 %v3568
          %v3885 = vunpack.c.l.b16 %v3718
          %v3886 = vunpack.c.l.b16 %v3569
          %v3887 = vunpack.c.h.b16 %v3718
          %v3888 = vunpack.c.h.b16 %v3569
          %v3889 = vunpack.c.l.b16 %v3721
          %v3890 = vunpack.c.l.b16 %v3570
          %v3891 = vunpack.c.h.b16 %v3721
          %v3892 = vunpack.c.h.b16 %v3570
          %v3893 = vunpack.c.l.b16 %v3724
          %v3894 = vunpack.c.l.b16 %v3571
          %v3895 = vunpack.c.h.b16 %v3724
          %v3896 = vunpack.c.h.b16 %v3571
          %v3897 = vunpack.c.l.b16 %v3727
          %v3898 = vunpack.c.l.b16 %v3572
          %v3899 = vunpack.c.h.b16 %v3727
          %v3900 = vunpack.c.h.b16 %v3572
          %v3901 = vunpack.c.l.b16 %v3730
          %v3902 = vunpack.c.l.b16 %v3573
          %v3903 = vunpack.c.h.b16 %v3730
          %v3904 = vunpack.c.h.b16 %v3573
          %v3905 = vunpack.c.l.b16 %v3733
          %v3906 = vunpack.c.l.b16 %v3574
          %v3907 = vunpack.c.h.b16 %v3733
          %v3908 = vunpack.c.h.b16 %v3574
          %v3909 = vunpack.c.l.b16 %v3736
          %v3910 = vunpack.c.l.b16 %v3575
          %v3911 = vunpack.c.h.b16 %v3736
          %v3912 = vunpack.c.h.b16 %v3575
          %v3913 = vunpack.c.l.b16 %v3739
          %v3914 = vunpack.c.l.b16 %v3576
          %v3915 = vunpack.c.h.b16 %v3739
          %v3916 = vunpack.c.h.b16 %v3576
          %v3917 = vunpack.c.l.b16 %v3742
          %v3918 = vunpack.c.l.b16 %v3577
          %v3919 = vunpack.c.h.b16 %v3742
          %v3920 = vunpack.c.h.b16 %v3577
          %v3921 = vunpack.c.l.b16 %v3745
          %v3922 = vunpack.c.l.b16 %v3578
          %v3923 = vunpack.c.h.b16 %v3745
          %v3924 = vunpack.c.h.b16 %v3578
          %v3925 = vunpack.c.l.b16 %v3748
          %v3926 = vunpack.c.l.b16 %v3579
          %v3927 = vunpack.c.h.b16 %v3748
          %v3928 = vunpack.c.h.b16 %v3579
          %v3929 = vunpack.c.l.b16 %v3751
          %v3930 = vunpack.c.l.b16 %v3580
          %v3931 = vunpack.c.h.b16 %v3751
          %v3932 = vunpack.c.h.b16 %v3580
          %v3933 = vunpack.c.l.b16 %v3754
          %v3934 = vunpack.c.l.b16 %v3581
          %v3935 = vunpack.c.h.b16 %v3754
          %v3936 = vunpack.c.h.b16 %v3581
          %v3937 = vunpack.c.l.b16 %v3757
          %v3938 = vunpack.c.l.b16 %v3582
          %v3939 = vunpack.c.h.b16 %v3757
          %v3940 = vunpack.c.h.b16 %v3582
          %v3941 = vunpack.c.l.b16 %v3760
          %v3942 = vunpack.c.l.b16 %v3583
          %v3943 = vunpack.c.h.b16 %v3760
          %v3944 = vunpack.c.h.b16 %v3583
          %v3945 = vunpack.c.l.b16 %v3763
          %v3946 = vunpack.c.l.b16 %v3584
          %v3947 = vunpack.c.h.b16 %v3763
          %v3948 = vunpack.c.h.b16 %v3584
          %v3949 = vunpack.c.l.b16 %v3766
          %v3950 = vunpack.c.l.b16 %v3585
          %v3951 = vunpack.c.h.b16 %v3766
          %v3952 = vunpack.c.h.b16 %v3585
          %v3953 = vunpack.c.l.b16 %v3769
          %v3954 = vunpack.c.l.b16 %v3586
          %v3955 = vunpack.c.h.b16 %v3769
          %v3956 = vunpack.c.h.b16 %v3586
          %v3957 = vunpack.c.l.b16 %v3772
          %v3958 = vunpack.c.l.b16 %v3587
          %v3959 = vunpack.c.h.b16 %v3772
          %v3960 = vunpack.c.h.b16 %v3587
          %v3961 = vunpack.c.l.b16 %v3775
          %v3962 = vunpack.c.l.b16 %v3588
          %v3963 = vunpack.c.h.b16 %v3775
          %v3964 = vunpack.c.h.b16 %v3588
          %v3965 = vunpack.c.l.b16 %v3778
          %v3966 = vunpack.c.l.b16 %v3589
          %v3967 = vunpack.c.h.b16 %v3778
          %v3968 = vunpack.c.h.b16 %v3589
          %v3969 = vunpack.c.l.b16 %v3781
          %v3970 = vunpack.c.l.b16 %v3590
          %v3971 = vunpack.c.h.b16 %v3781
          %v3972 = vunpack.c.h.b16 %v3590
          %v3973 = vunpack.c.l.b16 %v3784
          %v3974 = vunpack.c.l.b16 %v3591
          %v3975 = vunpack.c.h.b16 %v3784
          %v3976 = vunpack.c.h.b16 %v3591
          %v3977 = vpack.c.b16 %v3850, %v3849
          %v3978 = vpack.c.b16 %v3852, %v3851
          %v3979 = vpack.c.b16 %v3854, %v3853
          %v3980 = vpack.c.b16 %v3856, %v3855
          %v3981 = vpack.c.b16 %v3858, %v3857
          %v3982 = vpack.c.b16 %v3860, %v3859
          %v3983 = vpack.c.b16 %v3862, %v3861
          %v3984 = vpack.c.b16 %v3864, %v3863
          %v3985 = vpack.c.b16 %v3866, %v3865
          %v3986 = vpack.c.b16 %v3868, %v3867
          %v3987 = vpack.c.b16 %v3870, %v3869
          %v3988 = vpack.c.b16 %v3872, %v3871
          %v3989 = vpack.c.b16 %v3874, %v3873
          %v3990 = vpack.c.b16 %v3876, %v3875
          %v3991 = vpack.c.b16 %v3878, %v3877
          %v3992 = vpack.c.b16 %v3880, %v3879
          %v3993 = vpack.c.b16 %v3882, %v3881
          %v3994 = vpack.c.b16 %v3884, %v3883
          %v3995 = vpack.c.b16 %v3886, %v3885
          %v3996 = vpack.c.b16 %v3888, %v3887
          %v3997 = vpack.c.b16 %v3890, %v3889
          %v3998 = vpack.c.b16 %v3892, %v3891
          %v3999 = vpack.c.b16 %v3894, %v3893
          %v4000 = vpack.c.b16 %v3896, %v3895
          %v4001 = vpack.c.b16 %v3898, %v3897
          %v4002 = vpack.c.b16 %v3900, %v3899
          %v4003 = vpack.c.b16 %v3902, %v3901
          %v4004 = vpack.c.b16 %v3904, %v3903
          %v4005 = vpack.c.b16 %v3906, %v3905
          %v4006 = vpack.c.b16 %v3908, %v3907
          %v4007 = vpack.c.b16 %v3910, %v3909
          %v4008 = vpack.c.b16 %v3912, %v3911
          %v4009 = vpack.c.b16 %v3914, %v3913
          %v4010 = vpack.c.b16 %v3916, %v3915
          %v4011 = vpack.c.b16 %v3918, %v3917
          %v4012 = vpack.c.b16 %v3920, %v3919
          %v4013 = vpack.c.b16 %v3922, %v3921
          %v4014 = vpack.c.b16 %v3924, %v3923
          %v4015 = vpack.c.b16 %v3926, %v3925
          %v4016 = vpack.c.b16 %v3928, %v3927
          %v4017 = vpack.c.b16 %v3930, %v3929
          %v4018 = vpack.c.b16 %v3932, %v3931
          %v4019 = vpack.c.b16 %v3934, %v3933
          %v4020 = vpack.c.b16 %v3936, %v3935
          %v4021 = vpack.c.b16 %v3938, %v3937
          %v4022 = vpack.c.b16 %v3940, %v3939
          %v4023 = vpack.c.b16 %v3942, %v3941
          %v4024 = vpack.c.b16 %v3944, %v3943
          %v4025 = vpack.c.b16 %v3946, %v3945
          %v4026 = vpack.c.b16 %v3948, %v3947
          %v4027 = vpack.c.b16 %v3950, %v3949
          %v4028 = vpack.c.b16 %v3952, %v3951
          %v4029 = vpack.c.b16 %v3954, %v3953
          %v4030 = vpack.c.b16 %v3956, %v3955
          %v4031 = vpack.c.b16 %v3958, %v3957
          %v4032 = vpack.c.b16 %v3960, %v3959
          %v4033 = vpack.c.b16 %v3962, %v3961
          %v4034 = vpack.c.b16 %v3964, %v3963
          %v4035 = vpack.c.b16 %v3966, %v3965
          %v4036 = vpack.c.b16 %v3968, %v3967
          %v4037 = vpack.c.b16 %v3970, %v3969
          %v4038 = vpack.c.b16 %v3972, %v3971
          %v4039 = vpack.c.b16 %v3974, %v3973
          %v4040 = vpack.c.b16 %v3976, %v3975
          %s4105 = scalar_lea.vmem [#allocation3], 16
          %vm4106 = vcmask 1043456
          %vm4107 = vcmask 523268
          %vm4108 = vmor %vm4107, %vm4106
          %4109 = vst.msk [vmem:[%s4105] sm:$0xff] %vm4108, %v3977
          %4110 = vst.msk [vmem:[%s4105 + $0x8] sm:$0xff] %vm4108, %v3978
          %4111 = vst.msk [vmem:[%s4105 + $0x10] sm:$0xff] %vm4108, %v3979
          %4112 = vst.msk [vmem:[%s4105 + $0x18] sm:$0xff] %vm4108, %v3980
          %4113 = vst.msk [vmem:[%s4105 + $0x20] sm:$0xff] %vm4108, %v3981
          %4114 = vst.msk [vmem:[%s4105 + $0x28] sm:$0xff] %vm4108, %v3982
          %4115 = vst.msk [vmem:[%s4105 + $0x30] sm:$0xff] %vm4108, %v3983
          %4116 = vst.msk [vmem:[%s4105 + $0x38] sm:$0xff] %vm4108, %v3984
          %4117 = vst.msk [vmem:[%s4105 + $0x40] sm:$0xff] %vm4108, %v3985
          %4118 = vst.msk [vmem:[%s4105 + $0x48] sm:$0xff] %vm4108, %v3986
          %4119 = vst.msk [vmem:[%s4105 + $0x50] sm:$0xff] %vm4108, %v3987
          %4120 = vst.msk [vmem:[%s4105 + $0x58] sm:$0xff] %vm4108, %v3988
          %4121 = vst.msk [vmem:[%s4105 + $0x60] sm:$0xff] %vm4108, %v3989
          %4122 = vst.msk [vmem:[%s4105 + $0x68] sm:$0xff] %vm4108, %v3990
          %4123 = vst.msk [vmem:[%s4105 + $0x70] sm:$0xff] %vm4108, %v3991
          %4124 = vst.msk [vmem:[%s4105 + $0x78] sm:$0xff] %vm4108, %v3992
          %4125 = vst.msk [vmem:[%s4105 + $0x80] sm:$0xff] %vm4108, %v3993
          %4126 = vst.msk [vmem:[%s4105 + $0x88] sm:$0xff] %vm4108, %v3994
          %4127 = vst.msk [vmem:[%s4105 + $0x90] sm:$0xff] %vm4108, %v3995
          %4128 = vst.msk [vmem:[%s4105 + $0x98] sm:$0xff] %vm4108, %v3996
          %4129 = vst.msk [vmem:[%s4105 + $0xa0] sm:$0xff] %vm4108, %v3997
          %4130 = vst.msk [vmem:[%s4105 + $0xa8] sm:$0xff] %vm4108, %v3998
          %4131 = vst.msk [vmem:[%s4105 + $0xb0] sm:$0xff] %vm4108, %v3999
          %4132 = vst.msk [vmem:[%s4105 + $0xb8] sm:$0xff] %vm4108, %v4000
          %4133 = vst.msk [vmem:[%s4105 + $0xc0] sm:$0xff] %vm4108, %v4001
          %4134 = vst.msk [vmem:[%s4105 + $0xc8] sm:$0xff] %vm4108, %v4002
          %4135 = vst.msk [vmem:[%s4105 + $0xd0] sm:$0xff] %vm4108, %v4003
          %4136 = vst.msk [vmem:[%s4105 + $0xd8] sm:$0xff] %vm4108, %v4004
          %4137 = vst.msk [vmem:[%s4105 + $0xe0] sm:$0xff] %vm4108, %v4005
          %4138 = vst.msk [vmem:[%s4105 + $0xe8] sm:$0xff] %vm4108, %v4006
          %4139 = vst.msk [vmem:[%s4105 + $0xf0] sm:$0xff] %vm4108, %v4007
          %4140 = vst.msk [vmem:[%s4105 + $0xf8] sm:$0xff] %vm4108, %v4008
          %4141 = vst.msk [vmem:[%s4105 + $0x120] sm:$0xff] %vm4108, %v4009
          %4142 = vst.msk [vmem:[%s4105 + $0x128] sm:$0xff] %vm4108, %v4010
          %4143 = vst.msk [vmem:[%s4105 + $0x130] sm:$0xff] %vm4108, %v4011
          %4144 = vst.msk [vmem:[%s4105 + $0x138] sm:$0xff] %vm4108, %v4012
          %4145 = vst.msk [vmem:[%s4105 + $0x140] sm:$0xff] %vm4108, %v4013
          %4146 = vst.msk [vmem:[%s4105 + $0x148] sm:$0xff] %vm4108, %v4014
          %4147 = vst.msk [vmem:[%s4105 + $0x150] sm:$0xff] %vm4108, %v4015
          %4148 = vst.msk [vmem:[%s4105 + $0x158] sm:$0xff] %vm4108, %v4016
          %4149 = vst.msk [vmem:[%s4105 + $0x160] sm:$0xff] %vm4108, %v4017
          %4150 = vst.msk [vmem:[%s4105 + $0x168] sm:$0xff] %vm4108, %v4018
          %4151 = vst.msk [vmem:[%s4105 + $0x170] sm:$0xff] %vm4108, %v4019
          %4152 = vst.msk [vmem:[%s4105 + $0x178] sm:$0xff] %vm4108, %v4020
          %4153 = vst.msk [vmem:[%s4105 + $0x180] sm:$0xff] %vm4108, %v4021
          %4154 = vst.msk [vmem:[%s4105 + $0x188] sm:$0xff] %vm4108, %v4022
          %4155 = vst.msk [vmem:[%s4105 + $0x190] sm:$0xff] %vm4108, %v4023
          %4156 = vst.msk [vmem:[%s4105 + $0x198] sm:$0xff] %vm4108, %v4024
          %4157 = vst.msk [vmem:[%s4105 + $0x1a0] sm:$0xff] %vm4108, %v4025
          %4158 = vst.msk [vmem:[%s4105 + $0x1a8] sm:$0xff] %vm4108, %v4026
          %4159 = vst.msk [vmem:[%s4105 + $0x1b0] sm:$0xff] %vm4108, %v4027
          %4160 = vst.msk [vmem:[%s4105 + $0x1b8] sm:$0xff] %vm4108, %v4028
          %4161 = vst.msk [vmem:[%s4105 + $0x1c0] sm:$0xff] %vm4108, %v4029
          %4162 = vst.msk [vmem:[%s4105 + $0x1c8] sm:$0xff] %vm4108, %v4030
          %4163 = vst.msk [vmem:[%s4105 + $0x1d0] sm:$0xff] %vm4108, %v4031
          %4164 = vst.msk [vmem:[%s4105 + $0x1d8] sm:$0xff] %vm4108, %v4032
          %4165 = vst.msk [vmem:[%s4105 + $0x1e0] sm:$0xff] %vm4108, %v4033
          %4166 = vst.msk [vmem:[%s4105 + $0x1e8] sm:$0xff] %vm4108, %v4034
          %4167 = vst.msk [vmem:[%s4105 + $0x1f0] sm:$0xff] %vm4108, %v4035
          %4168 = vst.msk [vmem:[%s4105 + $0x1f8] sm:$0xff] %vm4108, %v4036
          %4169 = vst.msk [vmem:[%s4105 + $0x200] sm:$0xff] %vm4108, %v4037
          %4170 = vst.msk [vmem:[%s4105 + $0x208] sm:$0xff] %vm4108, %v4038
          %4171 = vst.msk [vmem:[%s4105 + $0x210] sm:$0xff] %vm4108, %v4039
          %4172 = vst.msk [vmem:[%s4105 + $0x218] sm:$0xff] %vm4108, %v4040
          %4173 = vst.msk [vmem:[#allocation3] sm:$0xff] %vm4108, 0
          %4174 = vst.msk [vmem:[#allocation3 + $0x8] sm:$0xff] %vm4108, 0
          %4175 = vst.msk [vmem:[#allocation3 + $0x120] sm:$0xff] %vm4108, 0
          %4176 = vst.msk [vmem:[#allocation3 + $0x128] sm:$0xff] %vm4108, 0
          %s4177 = scalar_lea.vmem [#allocation3], 272
          %4178 = vst.msk [vmem:[%s4177] sm:$0xff] %vm4108, 0
          %4179 = vst.msk [vmem:[%s4177 + $0x8] sm:$0xff] %vm4108, 0
          %4180 = vst.msk [vmem:[%s4177 + $0x120] sm:$0xff] %vm4108, 0
          %4181 = vst.msk [vmem:[%s4177 + $0x128] sm:$0xff] %vm4108, 0
        $region60: #{_lambda_.1} parent=47 // pred_fallthru
          _
        %p4182 = scmp.ge.s32.totalorder %s19, 3
        // Predicated region
        $region61: #{_lambda_.1} parent=47 // pred_check
          %p4183 = pneg %p4182
        $region62: #{_lambda_.1} parent=47 // pred_check_branch
          %4185 = sbr.rel (%p4183) target = $region64
        $region63: #{_lambda_.1} parent=47 // pred_region
          %s4186 = ssub.s32 %s19, 3
          %s4187 = smul.u32 %s4186, 4
          %s4188 = smul.addr %s4187, 4
          %s4189 = scalar_lea.vmem [#allocation3], %s4188
          %v4190 = vld [vmem:[%s4189] sm:$0xff]
          %v4191 = vld [vmem:[%s4189 + $0x8] sm:$0xff]
          %v4192 = vld [vmem:[%s4189 + $0x10] sm:$0xff]
          %v4193 = vld [vmem:[%s4189 + $0x18] sm:$0xff]
          %v4194 = vld [vmem:[%s4189 + $0x20] sm:$0xff]
          %v4195 = vld [vmem:[%s4189 + $0x28] sm:$0xff]
          %v4196 = vld [vmem:[%s4189 + $0x30] sm:$0xff]
          %v4197 = vld [vmem:[%s4189 + $0x38] sm:$0xff]
          %v4198 = vld [vmem:[%s4189 + $0x40] sm:$0xff]
          %v4199 = vld [vmem:[%s4189 + $0x48] sm:$0xff]
          %v4200 = vld [vmem:[%s4189 + $0x50] sm:$0xff]
          %v4201 = vld [vmem:[%s4189 + $0x58] sm:$0xff]
          %v4202 = vld [vmem:[%s4189 + $0x60] sm:$0xff]
          %v4203 = vld [vmem:[%s4189 + $0x68] sm:$0xff]
          %v4204 = vld [vmem:[%s4189 + $0x70] sm:$0xff]
          %v4205 = vld [vmem:[%s4189 + $0x78] sm:$0xff]
          %v4206 = vld [vmem:[%s4189 + $0x80] sm:$0xff]
          %v4207 = vld [vmem:[%s4189 + $0x88] sm:$0xff]
          %v4208 = vld [vmem:[%s4189 + $0x90] sm:$0xff]
          %v4209 = vld [vmem:[%s4189 + $0x98] sm:$0xff]
          %v4210 = vld [vmem:[%s4189 + $0xa0] sm:$0xff]
          %v4211 = vld [vmem:[%s4189 + $0xa8] sm:$0xff]
          %v4212 = vld [vmem:[%s4189 + $0xb0] sm:$0xff]
          %v4213 = vld [vmem:[%s4189 + $0xb8] sm:$0xff]
          %v4214 = vld [vmem:[%s4189 + $0xc0] sm:$0xff]
          %v4215 = vld [vmem:[%s4189 + $0xc8] sm:$0xff]
          %v4216 = vld [vmem:[%s4189 + $0xd0] sm:$0xff]
          %v4217 = vld [vmem:[%s4189 + $0xd8] sm:$0xff]
          %v4218 = vld [vmem:[%s4189 + $0xe0] sm:$0xff]
          %v4219 = vld [vmem:[%s4189 + $0xe8] sm:$0xff]
          %v4220 = vld [vmem:[%s4189 + $0xf0] sm:$0xff]
          %v4221 = vld [vmem:[%s4189 + $0xf8] sm:$0xff]
          %v4222 = vld [vmem:[%s4189 + $0x120] sm:$0xff]
          %v4223 = vld [vmem:[%s4189 + $0x128] sm:$0xff]
          %v4224 = vld [vmem:[%s4189 + $0x130] sm:$0xff]
          %v4225 = vld [vmem:[%s4189 + $0x138] sm:$0xff]
          %v4226 = vld [vmem:[%s4189 + $0x140] sm:$0xff]
          %v4227 = vld [vmem:[%s4189 + $0x148] sm:$0xff]
          %v4228 = vld [vmem:[%s4189 + $0x150] sm:$0xff]
          %v4229 = vld [vmem:[%s4189 + $0x158] sm:$0xff]
          %v4230 = vld [vmem:[%s4189 + $0x160] sm:$0xff]
          %v4231 = vld [vmem:[%s4189 + $0x168] sm:$0xff]
          %v4232 = vld [vmem:[%s4189 + $0x170] sm:$0xff]
          %v4233 = vld [vmem:[%s4189 + $0x178] sm:$0xff]
          %v4234 = vld [vmem:[%s4189 + $0x180] sm:$0xff]
          %v4235 = vld [vmem:[%s4189 + $0x188] sm:$0xff]
          %v4236 = vld [vmem:[%s4189 + $0x190] sm:$0xff]
          %v4237 = vld [vmem:[%s4189 + $0x198] sm:$0xff]
          %v4238 = vld [vmem:[%s4189 + $0x1a0] sm:$0xff]
          %v4239 = vld [vmem:[%s4189 + $0x1a8] sm:$0xff]
          %v4240 = vld [vmem:[%s4189 + $0x1b0] sm:$0xff]
          %v4241 = vld [vmem:[%s4189 + $0x1b8] sm:$0xff]
          %v4242 = vld [vmem:[%s4189 + $0x1c0] sm:$0xff]
          %v4243 = vld [vmem:[%s4189 + $0x1c8] sm:$0xff]
          %v4244 = vld [vmem:[%s4189 + $0x1d0] sm:$0xff]
          %v4245 = vld [vmem:[%s4189 + $0x1d8] sm:$0xff]
          %v4246 = vld [vmem:[%s4189 + $0x1e0] sm:$0xff]
          %v4247 = vld [vmem:[%s4189 + $0x1e8] sm:$0xff]
          %v4248 = vld [vmem:[%s4189 + $0x1f0] sm:$0xff]
          %v4249 = vld [vmem:[%s4189 + $0x1f8] sm:$0xff]
          %v4250 = vld [vmem:[%s4189 + $0x200] sm:$0xff]
          %v4251 = vld [vmem:[%s4189 + $0x208] sm:$0xff]
          %v4252 = vld [vmem:[%s4189 + $0x210] sm:$0xff]
          %v4253 = vld [vmem:[%s4189 + $0x218] sm:$0xff]
          %v4254 = vld [vmem:[#allocation5] sm:$0xff]
          %v4255 = vld [vmem:[#allocation5 + $0x8] sm:$0xff]
          %v4256 = vld [vmem:[#allocation5 + $0x10] sm:$0xff]
          %v4257 = vld [vmem:[#allocation5 + $0x18] sm:$0xff]
          %v4258 = vld [vmem:[#allocation5 + $0x20] sm:$0xff]
          %v4259 = vld [vmem:[#allocation5 + $0x28] sm:$0xff]
          %v4260 = vld [vmem:[#allocation5 + $0x30] sm:$0xff]
          %v4261 = vld [vmem:[#allocation5 + $0x38] sm:$0xff]
          %v4262 = vld [vmem:[#allocation5 + $0x40] sm:$0xff]
          %v4263 = vld [vmem:[#allocation5 + $0x48] sm:$0xff]
          %v4264 = vld [vmem:[#allocation5 + $0x50] sm:$0xff]
          %v4265 = vld [vmem:[#allocation5 + $0x58] sm:$0xff]
          %v4266 = vld [vmem:[#allocation5 + $0x60] sm:$0xff]
          %v4267 = vld [vmem:[#allocation5 + $0x68] sm:$0xff]
          %v4268 = vld [vmem:[#allocation5 + $0x70] sm:$0xff]
          %v4269 = vld [vmem:[#allocation5 + $0x78] sm:$0xff]
          %v4270 = vld [vmem:[#allocation5 + $0x80] sm:$0xff]
          %v4271 = vld [vmem:[#allocation5 + $0x88] sm:$0xff]
          %v4272 = vld [vmem:[#allocation5 + $0x90] sm:$0xff]
          %v4273 = vld [vmem:[#allocation5 + $0x98] sm:$0xff]
          %v4274 = vld [vmem:[#allocation5 + $0xa0] sm:$0xff]
          %v4275 = vld [vmem:[#allocation5 + $0xa8] sm:$0xff]
          %v4276 = vld [vmem:[#allocation5 + $0xb0] sm:$0xff]
          %v4277 = vld [vmem:[#allocation5 + $0xb8] sm:$0xff]
          %v4278 = vld [vmem:[#allocation5 + $0xc0] sm:$0xff]
          %v4279 = vld [vmem:[#allocation5 + $0xc8] sm:$0xff]
          %v4280 = vld [vmem:[#allocation5 + $0xd0] sm:$0xff]
          %v4281 = vld [vmem:[#allocation5 + $0xd8] sm:$0xff]
          %v4282 = vld [vmem:[#allocation5 + $0xe0] sm:$0xff]
          %v4283 = vld [vmem:[#allocation5 + $0xe8] sm:$0xff]
          %v4284 = vld [vmem:[#allocation5 + $0xf0] sm:$0xff]
          %v4285 = vld [vmem:[#allocation5 + $0xf8] sm:$0xff]
          %v4286 = vld [vmem:[#allocation5 + $0x100] sm:$0xff]
          %v4287 = vld [vmem:[#allocation5 + $0x108] sm:$0xff]
          %v4288 = vld [vmem:[#allocation5 + $0x110] sm:$0xff]
          %v4289 = vld [vmem:[#allocation5 + $0x118] sm:$0xff]
          %v4290 = vld [vmem:[#allocation5 + $0x120] sm:$0xff]
          %v4291 = vld [vmem:[#allocation5 + $0x128] sm:$0xff]
          %v4292 = vld [vmem:[#allocation5 + $0x130] sm:$0xff]
          %v4293 = vld [vmem:[#allocation5 + $0x138] sm:$0xff]
          %v4294 = vld [vmem:[#allocation5 + $0x140] sm:$0xff]
          %v4295 = vld [vmem:[#allocation5 + $0x148] sm:$0xff]
          %v4296 = vld [vmem:[#allocation5 + $0x150] sm:$0xff]
          %v4297 = vld [vmem:[#allocation5 + $0x158] sm:$0xff]
          %v4298 = vld [vmem:[#allocation5 + $0x160] sm:$0xff]
          %v4299 = vld [vmem:[#allocation5 + $0x168] sm:$0xff]
          %v4300 = vld [vmem:[#allocation5 + $0x170] sm:$0xff]
          %v4301 = vld [vmem:[#allocation5 + $0x178] sm:$0xff]
          %v4302 = vld [vmem:[#allocation5 + $0x180] sm:$0xff]
          %v4303 = vld [vmem:[#allocation5 + $0x188] sm:$0xff]
          %v4304 = vld [vmem:[#allocation5 + $0x190] sm:$0xff]
          %v4305 = vld [vmem:[#allocation5 + $0x198] sm:$0xff]
          %v4306 = vld [vmem:[#allocation5 + $0x1a0] sm:$0xff]
          %v4307 = vld [vmem:[#allocation5 + $0x1a8] sm:$0xff]
          %v4308 = vld [vmem:[#allocation5 + $0x1b0] sm:$0xff]
          %v4309 = vld [vmem:[#allocation5 + $0x1b8] sm:$0xff]
          %v4310 = vld [vmem:[#allocation5 + $0x1c0] sm:$0xff]
          %v4311 = vld [vmem:[#allocation5 + $0x1c8] sm:$0xff]
          %v4312 = vld [vmem:[#allocation5 + $0x1d0] sm:$0xff]
          %v4313 = vld [vmem:[#allocation5 + $0x1d8] sm:$0xff]
          %v4314 = vld [vmem:[#allocation5 + $0x1e0] sm:$0xff]
          %v4315 = vld [vmem:[#allocation5 + $0x1e8] sm:$0xff]
          %v4316 = vld [vmem:[#allocation5 + $0x1f0] sm:$0xff]
          %v4317 = vld [vmem:[#allocation5 + $0x1f8] sm:$0xff]
          %v4318 = vld [vmem:[%s316] sm:$0xf]
          %v4319 = vld [vmem:[%s316 + $0x4] sm:$0xf]
          %v4320 = vld [vmem:[%s316 + $0x8] sm:$0xf]
          %v4321 = vld [vmem:[%s316 + $0xc] sm:$0xf]
          %v4322 = vld [vmem:[%s316 + $0x10] sm:$0xf]
          %v4323 = vld [vmem:[%s316 + $0x14] sm:$0xf]
          %v4324 = vld [vmem:[%s316 + $0x18] sm:$0xf]
          %v4325 = vld [vmem:[%s316 + $0x1c] sm:$0xf]
          %v4326 = vld [vmem:[%s316 + $0x20] sm:$0xf]
          %v4327 = vld [vmem:[%s316 + $0x24] sm:$0xf]
          %v4328 = vld [vmem:[%s316 + $0x28] sm:$0xf]
          %v4329 = vld [vmem:[%s316 + $0x2c] sm:$0xf]
          %v4330 = vld [vmem:[%s316 + $0x30] sm:$0xf]
          %v4331 = vld [vmem:[%s316 + $0x34] sm:$0xf]
          %v4332 = vld [vmem:[%s316 + $0x38] sm:$0xf]
          %v4333 = vld [vmem:[%s316 + $0x3c] sm:$0xf]
          %v4334 = vld [vmem:[%s316 + $0x40] sm:$0xf]
          %v4335 = vld [vmem:[%s316 + $0x44] sm:$0xf]
          %v4336 = vld [vmem:[%s316 + $0x48] sm:$0xf]
          %v4337 = vld [vmem:[%s316 + $0x4c] sm:$0xf]
          %v4338 = vld [vmem:[%s316 + $0x50] sm:$0xf]
          %v4339 = vld [vmem:[%s316 + $0x54] sm:$0xf]
          %v4340 = vld [vmem:[%s316 + $0x58] sm:$0xf]
          %v4341 = vld [vmem:[%s316 + $0x5c] sm:$0xf]
          %v4406 = vunpack.c.l.b16 %v4190
          %v4407 = vunpack.c.h.b16 %v4190
          %v4408 = vunpack.c.l.b16 %v4191
          %v4409 = vunpack.c.h.b16 %v4191
          %v4410 = vunpack.c.l.b16 %v4192
          %v4411 = vunpack.c.h.b16 %v4192
          %v4412 = vunpack.c.l.b16 %v4193
          %v4413 = vunpack.c.h.b16 %v4193
          %v4414 = vunpack.c.l.b16 %v4194
          %v4415 = vunpack.c.h.b16 %v4194
          %v4416 = vunpack.c.l.b16 %v4195
          %v4417 = vunpack.c.h.b16 %v4195
          %v4418 = vunpack.c.l.b16 %v4196
          %v4419 = vunpack.c.h.b16 %v4196
          %v4420 = vunpack.c.l.b16 %v4197
          %v4421 = vunpack.c.h.b16 %v4197
          %v4422 = vunpack.c.l.b16 %v4198
          %v4423 = vunpack.c.h.b16 %v4198
          %v4424 = vunpack.c.l.b16 %v4199
          %v4425 = vunpack.c.h.b16 %v4199
          %v4426 = vunpack.c.l.b16 %v4200
          %v4427 = vunpack.c.h.b16 %v4200
          %v4428 = vunpack.c.l.b16 %v4201
          %v4429 = vunpack.c.h.b16 %v4201
          %v4430 = vunpack.c.l.b16 %v4202
          %v4431 = vunpack.c.h.b16 %v4202
          %v4432 = vunpack.c.l.b16 %v4203
          %v4433 = vunpack.c.h.b16 %v4203
          %v4434 = vunpack.c.l.b16 %v4204
          %v4435 = vunpack.c.h.b16 %v4204
          %v4436 = vunpack.c.l.b16 %v4205
          %v4437 = vunpack.c.h.b16 %v4205
          %v4438 = vunpack.c.l.b16 %v4206
          %v4439 = vunpack.c.h.b16 %v4206
          %v4440 = vunpack.c.l.b16 %v4207
          %v4441 = vunpack.c.h.b16 %v4207
          %v4442 = vunpack.c.l.b16 %v4208
          %v4443 = vunpack.c.h.b16 %v4208
          %v4444 = vunpack.c.l.b16 %v4209
          %v4445 = vunpack.c.h.b16 %v4209
          %v4446 = vunpack.c.l.b16 %v4210
          %v4447 = vunpack.c.h.b16 %v4210
          %v4448 = vunpack.c.l.b16 %v4211
          %v4449 = vunpack.c.h.b16 %v4211
          %v4450 = vunpack.c.l.b16 %v4212
          %v4451 = vunpack.c.h.b16 %v4212
          %v4452 = vunpack.c.l.b16 %v4213
          %v4453 = vunpack.c.h.b16 %v4213
          %v4454 = vunpack.c.l.b16 %v4214
          %v4455 = vunpack.c.h.b16 %v4214
          %v4456 = vunpack.c.l.b16 %v4215
          %v4457 = vunpack.c.h.b16 %v4215
          %v4458 = vunpack.c.l.b16 %v4216
          %v4459 = vunpack.c.h.b16 %v4216
          %v4460 = vunpack.c.l.b16 %v4217
          %v4461 = vunpack.c.h.b16 %v4217
          %v4462 = vunpack.c.l.b16 %v4218
          %v4463 = vunpack.c.h.b16 %v4218
          %v4464 = vunpack.c.l.b16 %v4219
          %v4465 = vunpack.c.h.b16 %v4219
          %v4466 = vunpack.c.l.b16 %v4220
          %v4467 = vunpack.c.h.b16 %v4220
          %v4468 = vunpack.c.l.b16 %v4221
          %v4469 = vunpack.c.h.b16 %v4221
          %v4470 = vunpack.c.l.b16 %v4222
          %v4471 = vunpack.c.h.b16 %v4222
          %v4472 = vunpack.c.l.b16 %v4223
          %v4473 = vunpack.c.h.b16 %v4223
          %v4474 = vunpack.c.l.b16 %v4224
          %v4475 = vunpack.c.h.b16 %v4224
          %v4476 = vunpack.c.l.b16 %v4225
          %v4477 = vunpack.c.h.b16 %v4225
          %v4478 = vunpack.c.l.b16 %v4226
          %v4479 = vunpack.c.h.b16 %v4226
          %v4480 = vunpack.c.l.b16 %v4227
          %v4481 = vunpack.c.h.b16 %v4227
          %v4482 = vunpack.c.l.b16 %v4228
          %v4483 = vunpack.c.h.b16 %v4228
          %v4484 = vunpack.c.l.b16 %v4229
          %v4485 = vunpack.c.h.b16 %v4229
          %v4486 = vunpack.c.l.b16 %v4230
          %v4487 = vunpack.c.h.b16 %v4230
          %v4488 = vunpack.c.l.b16 %v4231
          %v4489 = vunpack.c.h.b16 %v4231
          %v4490 = vunpack.c.l.b16 %v4232
          %v4491 = vunpack.c.h.b16 %v4232
          %v4492 = vunpack.c.l.b16 %v4233
          %v4493 = vunpack.c.h.b16 %v4233
          %v4494 = vunpack.c.l.b16 %v4234
          %v4495 = vunpack.c.h.b16 %v4234
          %v4496 = vunpack.c.l.b16 %v4235
          %v4497 = vunpack.c.h.b16 %v4235
          %v4498 = vunpack.c.l.b16 %v4236
          %v4499 = vunpack.c.h.b16 %v4236
          %v4500 = vunpack.c.l.b16 %v4237
          %v4501 = vunpack.c.h.b16 %v4237
          %v4502 = vunpack.c.l.b16 %v4238
          %v4503 = vunpack.c.h.b16 %v4238
          %v4504 = vunpack.c.l.b16 %v4239
          %v4505 = vunpack.c.h.b16 %v4239
          %v4506 = vunpack.c.l.b16 %v4240
          %v4507 = vunpack.c.h.b16 %v4240
          %v4508 = vunpack.c.l.b16 %v4241
          %v4509 = vunpack.c.h.b16 %v4241
          %v4510 = vunpack.c.l.b16 %v4242
          %v4511 = vunpack.c.h.b16 %v4242
          %v4512 = vunpack.c.l.b16 %v4243
          %v4513 = vunpack.c.h.b16 %v4243
          %v4514 = vunpack.c.l.b16 %v4244
          %v4515 = vunpack.c.h.b16 %v4244
          %v4516 = vunpack.c.l.b16 %v4245
          %v4517 = vunpack.c.h.b16 %v4245
          %v4518 = vunpack.c.l.b16 %v4246
          %v4519 = vunpack.c.h.b16 %v4246
          %v4520 = vunpack.c.l.b16 %v4247
          %v4521 = vunpack.c.h.b16 %v4247
          %v4522 = vunpack.c.l.b16 %v4248
          %v4523 = vunpack.c.h.b16 %v4248
          %v4524 = vunpack.c.l.b16 %v4249
          %v4525 = vunpack.c.h.b16 %v4249
          %v4526 = vunpack.c.l.b16 %v4250
          %v4527 = vunpack.c.h.b16 %v4250
          %v4528 = vunpack.c.l.b16 %v4251
          %v4529 = vunpack.c.h.b16 %v4251
          %v4530 = vunpack.c.l.b16 %v4252
          %v4531 = vunpack.c.h.b16 %v4252
          %v4532 = vunpack.c.l.b16 %v4253
          %v4533 = vunpack.c.h.b16 %v4253
          %v4534 = vpack.c.b16 %v4408, %v4406
          %v4535 = vpack.c.b16 %v4409, %v4407
          %v4536 = vpack.c.b16 %v4412, %v4410
          %v4537 = vpack.c.b16 %v4413, %v4411
          %v4538 = vpack.c.b16 %v4416, %v4414
          %v4539 = vpack.c.b16 %v4417, %v4415
          %v4540 = vpack.c.b16 %v4420, %v4418
          %v4541 = vpack.c.b16 %v4421, %v4419
          %v4542 = vpack.c.b16 %v4424, %v4422
          %v4543 = vpack.c.b16 %v4425, %v4423
          %v4544 = vpack.c.b16 %v4428, %v4426
          %v4545 = vpack.c.b16 %v4429, %v4427
          %v4546 = vpack.c.b16 %v4432, %v4430
          %v4547 = vpack.c.b16 %v4433, %v4431
          %v4548 = vpack.c.b16 %v4436, %v4434
          %v4549 = vpack.c.b16 %v4437, %v4435
          %v4550 = vpack.c.b16 %v4440, %v4438
          %v4551 = vpack.c.b16 %v4441, %v4439
          %v4552 = vpack.c.b16 %v4444, %v4442
          %v4553 = vpack.c.b16 %v4445, %v4443
          %v4554 = vpack.c.b16 %v4448, %v4446
          %v4555 = vpack.c.b16 %v4449, %v4447
          %v4556 = vpack.c.b16 %v4452, %v4450
          %v4557 = vpack.c.b16 %v4453, %v4451
          %v4558 = vpack.c.b16 %v4456, %v4454
          %v4559 = vpack.c.b16 %v4457, %v4455
          %v4560 = vpack.c.b16 %v4460, %v4458
          %v4561 = vpack.c.b16 %v4461, %v4459
          %v4562 = vpack.c.b16 %v4464, %v4462
          %v4563 = vpack.c.b16 %v4465, %v4463
          %v4564 = vpack.c.b16 %v4468, %v4466
          %v4565 = vpack.c.b16 %v4469, %v4467
          %v4566 = vpack.c.b16 %v4472, %v4470
          %v4567 = vpack.c.b16 %v4473, %v4471
          %v4568 = vpack.c.b16 %v4476, %v4474
          %v4569 = vpack.c.b16 %v4477, %v4475
          %v4570 = vpack.c.b16 %v4480, %v4478
          %v4571 = vpack.c.b16 %v4481, %v4479
          %v4572 = vpack.c.b16 %v4484, %v4482
          %v4573 = vpack.c.b16 %v4485, %v4483
          %v4574 = vpack.c.b16 %v4488, %v4486
          %v4575 = vpack.c.b16 %v4489, %v4487
          %v4576 = vpack.c.b16 %v4492, %v4490
          %v4577 = vpack.c.b16 %v4493, %v4491
          %v4578 = vpack.c.b16 %v4496, %v4494
          %v4579 = vpack.c.b16 %v4497, %v4495
          %v4580 = vpack.c.b16 %v4500, %v4498
          %v4581 = vpack.c.b16 %v4501, %v4499
          %v4582 = vpack.c.b16 %v4504, %v4502
          %v4583 = vpack.c.b16 %v4505, %v4503
          %v4584 = vpack.c.b16 %v4508, %v4506
          %v4585 = vpack.c.b16 %v4509, %v4507
          %v4586 = vpack.c.b16 %v4512, %v4510
          %v4587 = vpack.c.b16 %v4513, %v4511
          %v4588 = vpack.c.b16 %v4516, %v4514
          %v4589 = vpack.c.b16 %v4517, %v4515
          %v4590 = vpack.c.b16 %v4520, %v4518
          %v4591 = vpack.c.b16 %v4521, %v4519
          %v4592 = vpack.c.b16 %v4524, %v4522
          %v4593 = vpack.c.b16 %v4525, %v4523
          %v4594 = vpack.c.b16 %v4528, %v4526
          %v4595 = vpack.c.b16 %v4529, %v4527
          %v4596 = vpack.c.b16 %v4532, %v4530
          %v4597 = vpack.c.b16 %v4533, %v4531
          %v4654 = vunpack.c.l.b16 %v4318
          %v4655 = vunpack.c.l.b16 %v4319
          %v4656 = vunpack.c.l.b16 %v4320
          %v4657 = vunpack.c.l.b16 %v4321
          %v4658 = vunpack.c.l.b16 %v4322
          %v4659 = vunpack.c.l.b16 %v4323
          %v4660 = vunpack.c.l.b16 %v4324
          %v4661 = vunpack.c.l.b16 %v4325
          %v4662 = vunpack.c.l.b16 %v4326
          %v4663 = vunpack.c.l.b16 %v4327
          %v4664 = vunpack.c.l.b16 %v4328
          %v4665 = vunpack.c.l.b16 %v4329
          %v4666 = vunpack.c.l.b16 %v4330
          %v4667 = vunpack.c.l.b16 %v4331
          %v4668 = vunpack.c.l.b16 %v4332
          %v4669 = vunpack.c.l.b16 %v4333
          %v4670 = vunpack.c.l.b16 %v4334
          %v4671 = vunpack.c.l.b16 %v4335
          %v4672 = vunpack.c.l.b16 %v4336
          %v4673 = vunpack.c.l.b16 %v4337
          %v4674 = vunpack.c.l.b16 %v4338
          %v4675 = vunpack.c.l.b16 %v4339
          %v4676 = vunpack.c.l.b16 %v4340
          %v4677 = vunpack.c.l.b16 %v4341
          %v4678 = vpack.c.b16 %v4655, %v4654
          %v4679 = vpack.c.b16 %v4657, %v4656
          %v4680 = vpack.c.b16 %v4659, %v4658
          %v4681 = vpack.c.b16 %v4661, %v4660
          %v4682 = vpack.c.b16 %v4663, %v4662
          %v4683 = vpack.c.b16 %v4665, %v4664
          %v4684 = vpack.c.b16 %v4667, %v4666
          %v4685 = vpack.c.b16 %v4669, %v4668
          %v4686 = vpack.c.b16 %v4671, %v4670
          %v4687 = vpack.c.b16 %v4673, %v4672
          %v4688 = vpack.c.b16 %v4675, %v4674
          %v4689 = vpack.c.b16 %v4677, %v4676
          %vm4702 = vcmask 523264
          %v4704 = vsel %vm4702, %v4535, 0
          %v4707 = vsel %vm4702, %v4537, 0
          %v4710 = vsel %vm4702, %v4539, 0
          %v4713 = vsel %vm4702, %v4541, 0
          %v4716 = vsel %vm4702, %v4543, 0
          %v4719 = vsel %vm4702, %v4545, 0
          %v4722 = vsel %vm4702, %v4547, 0
          %v4725 = vsel %vm4702, %v4549, 0
          %v4728 = vsel %vm4702, %v4551, 0
          %v4731 = vsel %vm4702, %v4553, 0
          %v4734 = vsel %vm4702, %v4555, 0
          %v4737 = vsel %vm4702, %v4557, 0
          %v4740 = vsel %vm4702, %v4559, 0
          %v4743 = vsel %vm4702, %v4561, 0
          %v4746 = vsel %vm4702, %v4563, 0
          %v4749 = vsel %vm4702, %v4565, 0
          %v4752 = vsel %vm4702, %v4567, 0
          %v4755 = vsel %vm4702, %v4569, 0
          %v4758 = vsel %vm4702, %v4571, 0
          %v4761 = vsel %vm4702, %v4573, 0
          %v4764 = vsel %vm4702, %v4575, 0
          %v4767 = vsel %vm4702, %v4577, 0
          %v4770 = vsel %vm4702, %v4579, 0
          %v4773 = vsel %vm4702, %v4581, 0
          %v4776 = vsel %vm4702, %v4583, 0
          %v4779 = vsel %vm4702, %v4585, 0
          %v4782 = vsel %vm4702, %v4587, 0
          %v4785 = vsel %vm4702, %v4589, 0
          %v4788 = vsel %vm4702, %v4591, 0
          %v4791 = vsel %vm4702, %v4593, 0
          %v4794 = vsel %vm4702, %v4595, 0
          %v4797 = vsel %vm4702, %v4597, 0
          %4799 = vmatprep.subr.bf16.mxu0 0
          %4800 = vmatpush1.bf16.msra.mxu0 %v4685
          %4801 = vmatprep.subr.bf16.mxu0 0
          %4802 = vmatpush1.bf16.msra.mxu0 %v4684
          %4803 = vmatprep.subr.bf16.mxu0 0
          %4804 = vmatpush1.bf16.msra.mxu0 %v4683
          %4805 = vmatprep.subr.bf16.mxu0 0
          %4806 = vmatpush1.bf16.msra.mxu0 %v4682
          %4807 = vmatprep.subr.bf16.mxu0 0
          %4808 = vmatpush1.bf16.msra.mxu0 %v4681
          %4809 = vmatprep.subr.bf16.mxu0 0
          %4810 = vmatpush1.bf16.msra.mxu0 %v4680
          %4811 = vmatprep.subr.bf16.mxu0 0
          %4812 = vmatpush1.bf16.msra.mxu0 %v4679
          %4813 = vmatprep.subr.bf16.mxu0 0
          %4814 = vmatpush1.bf16.msra.mxu0 %v4678
          %4815 = vmatprep.subr.bf16.mxu0 0
          %4816 = vmatpush2.bf16.msra.mxu0 0
          %4817 = vmatprep.subr.bf16.mxu0 0
          %4818 = vmatpush2.bf16.msra.mxu0 0
          %4819 = vmatprep.subr.bf16.mxu0 0
          %4820 = vmatpush2.bf16.msra.mxu0 0
          %4821 = vmatprep.subr.bf16.mxu0 0
          %4822 = vmatpush2.bf16.msra.mxu0 0
          %4823 = vmatprep.subr.bf16.mxu0 0
          %4824 = vmatpush2.bf16.msra.mxu0 %v4689
          %4825 = vmatprep.subr.bf16.mxu0 0
          %4826 = vmatpush2.bf16.msra.mxu0 %v4688
          %4827 = vmatprep.subr.bf16.mxu0 0
          %4828 = vmatpush2.bf16.msra.mxu0 %v4687
          %4829 = vmatprep.subr.bf16.mxu0 0
          %4830 = vmatpush2.bf16.msra.mxu0 %v4686
          %4831 = vmatprep.mubr.bf16.mxu0 %v4704
          %4832 = vmatmul.mubr.bf16.gmra.mxu0 %v4534
          %v4833 = vpop.f32.mrf.mxu0
          %v4834 = vadd.f32 0.0, %v4833
          %v4835 = vpop.f32.mrf.mxu0
          %v4836 = vpop.f32.mrf.mxu0
          %v4837 = vadd.f32 0.0, %v4836
          %v4838 = vpop.f32.mrf.mxu0
          %4839 = vmatprep.mubr.bf16.mxu0 %v4707
          %4840 = vmatmul.mubr.bf16.gmra.mxu0 %v4536
          %v4841 = vpop.f32.mrf.mxu0
          %v4842 = vadd.f32 0.0, %v4841
          %v4843 = vpop.f32.mrf.mxu0
          %v4844 = vpop.f32.mrf.mxu0
          %v4845 = vadd.f32 0.0, %v4844
          %v4846 = vpop.f32.mrf.mxu0
          %4847 = vmatprep.mubr.bf16.mxu0 %v4710
          %4848 = vmatmul.mubr.bf16.gmra.mxu0 %v4538
          %v4849 = vpop.f32.mrf.mxu0
          %v4850 = vadd.f32 0.0, %v4849
          %v4851 = vpop.f32.mrf.mxu0
          %v4852 = vpop.f32.mrf.mxu0
          %v4853 = vadd.f32 0.0, %v4852
          %v4854 = vpop.f32.mrf.mxu0
          %4855 = vmatprep.mubr.bf16.mxu0 %v4713
          %4856 = vmatmul.mubr.bf16.gmra.mxu0 %v4540
          %v4857 = vpop.f32.mrf.mxu0
          %v4858 = vadd.f32 0.0, %v4857
          %v4859 = vpop.f32.mrf.mxu0
          %v4860 = vpop.f32.mrf.mxu0
          %v4861 = vadd.f32 0.0, %v4860
          %v4862 = vpop.f32.mrf.mxu0
          %4863 = vmatprep.mubr.bf16.mxu0 %v4716
          %4864 = vmatmul.mubr.bf16.gmra.mxu0 %v4542
          %v4865 = vpop.f32.mrf.mxu0
          %v4866 = vadd.f32 0.0, %v4865
          %v4867 = vpop.f32.mrf.mxu0
          %v4868 = vpop.f32.mrf.mxu0
          %v4869 = vadd.f32 0.0, %v4868
          %v4870 = vpop.f32.mrf.mxu0
          %4871 = vmatprep.mubr.bf16.mxu0 %v4719
          %4872 = vmatmul.mubr.bf16.gmra.mxu0 %v4544
          %v4873 = vpop.f32.mrf.mxu0
          %v4874 = vadd.f32 0.0, %v4873
          %v4875 = vpop.f32.mrf.mxu0
          %v4876 = vpop.f32.mrf.mxu0
          %v4877 = vadd.f32 0.0, %v4876
          %v4878 = vpop.f32.mrf.mxu0
          %4879 = vmatprep.mubr.bf16.mxu0 %v4722
          %4880 = vmatmul.mubr.bf16.gmra.mxu0 %v4546
          %v4881 = vpop.f32.mrf.mxu0
          %v4882 = vadd.f32 0.0, %v4881
          %v4883 = vpop.f32.mrf.mxu0
          %v4884 = vpop.f32.mrf.mxu0
          %v4885 = vadd.f32 0.0, %v4884
          %v4886 = vpop.f32.mrf.mxu0
          %4887 = vmatprep.mubr.bf16.mxu0 %v4725
          %4888 = vmatmul.mubr.bf16.gmra.mxu0 %v4548
          %v4889 = vpop.f32.mrf.mxu0
          %v4890 = vadd.f32 0.0, %v4889
          %v4891 = vpop.f32.mrf.mxu0
          %v4892 = vpop.f32.mrf.mxu0
          %v4893 = vadd.f32 0.0, %v4892
          %v4894 = vpop.f32.mrf.mxu0
          %4895 = vmatprep.mubr.bf16.mxu0 %v4728
          %4896 = vmatmul.mubr.bf16.gmra.mxu0 %v4550
          %v4897 = vpop.f32.mrf.mxu0
          %v4898 = vadd.f32 0.0, %v4897
          %v4899 = vpop.f32.mrf.mxu0
          %v4900 = vpop.f32.mrf.mxu0
          %v4901 = vadd.f32 0.0, %v4900
          %v4902 = vpop.f32.mrf.mxu0
          %4903 = vmatprep.mubr.bf16.mxu0 %v4731
          %4904 = vmatmul.mubr.bf16.gmra.mxu0 %v4552
          %v4905 = vpop.f32.mrf.mxu0
          %v4906 = vadd.f32 0.0, %v4905
          %v4907 = vpop.f32.mrf.mxu0
          %v4908 = vpop.f32.mrf.mxu0
          %v4909 = vadd.f32 0.0, %v4908
          %v4910 = vpop.f32.mrf.mxu0
          %4911 = vmatprep.mubr.bf16.mxu0 %v4734
          %4912 = vmatmul.mubr.bf16.gmra.mxu0 %v4554
          %v4913 = vpop.f32.mrf.mxu0
          %v4914 = vadd.f32 0.0, %v4913
          %v4915 = vpop.f32.mrf.mxu0
          %v4916 = vpop.f32.mrf.mxu0
          %v4917 = vadd.f32 0.0, %v4916
          %v4918 = vpop.f32.mrf.mxu0
          %4919 = vmatprep.mubr.bf16.mxu0 %v4737
          %4920 = vmatmul.mubr.bf16.gmra.mxu0 %v4556
          %v4921 = vpop.f32.mrf.mxu0
          %v4922 = vadd.f32 0.0, %v4921
          %v4923 = vpop.f32.mrf.mxu0
          %v4924 = vpop.f32.mrf.mxu0
          %v4925 = vadd.f32 0.0, %v4924
          %v4926 = vpop.f32.mrf.mxu0
          %4927 = vmatprep.mubr.bf16.mxu0 %v4740
          %4928 = vmatmul.mubr.bf16.gmra.mxu0 %v4558
          %v4929 = vpop.f32.mrf.mxu0
          %v4930 = vadd.f32 0.0, %v4929
          %v4931 = vpop.f32.mrf.mxu0
          %v4932 = vpop.f32.mrf.mxu0
          %v4933 = vadd.f32 0.0, %v4932
          %v4934 = vpop.f32.mrf.mxu0
          %4935 = vmatprep.mubr.bf16.mxu0 %v4743
          %4936 = vmatmul.mubr.bf16.gmra.mxu0 %v4560
          %v4937 = vpop.f32.mrf.mxu0
          %v4938 = vadd.f32 0.0, %v4937
          %v4939 = vpop.f32.mrf.mxu0
          %v4940 = vpop.f32.mrf.mxu0
          %v4941 = vadd.f32 0.0, %v4940
          %v4942 = vpop.f32.mrf.mxu0
          %4943 = vmatprep.mubr.bf16.mxu0 %v4746
          %4944 = vmatmul.mubr.bf16.gmra.mxu0 %v4562
          %v4945 = vpop.f32.mrf.mxu0
          %v4946 = vadd.f32 0.0, %v4945
          %v4947 = vpop.f32.mrf.mxu0
          %v4948 = vpop.f32.mrf.mxu0
          %v4949 = vadd.f32 0.0, %v4948
          %v4950 = vpop.f32.mrf.mxu0
          %4951 = vmatprep.mubr.bf16.mxu0 %v4749
          %4952 = vmatmul.mubr.bf16.gmra.mxu0 %v4564
          %v4953 = vpop.f32.mrf.mxu0
          %v4954 = vadd.f32 0.0, %v4953
          %v4955 = vpop.f32.mrf.mxu0
          %v4956 = vpop.f32.mrf.mxu0
          %v4957 = vadd.f32 0.0, %v4956
          %v4958 = vpop.f32.mrf.mxu0
          %4959 = vmatprep.mubr.bf16.mxu0 %v4752
          %4960 = vmatmul.mubr.bf16.gmra.mxu0 %v4566
          %v4961 = vpop.f32.mrf.mxu0
          %v4962 = vadd.f32 0.0, %v4961
          %v4963 = vpop.f32.mrf.mxu0
          %v4964 = vpop.f32.mrf.mxu0
          %v4965 = vadd.f32 0.0, %v4964
          %v4966 = vpop.f32.mrf.mxu0
          %4967 = vmatprep.mubr.bf16.mxu0 %v4755
          %4968 = vmatmul.mubr.bf16.gmra.mxu0 %v4568
          %v4969 = vpop.f32.mrf.mxu0
          %v4970 = vadd.f32 0.0, %v4969
          %v4971 = vpop.f32.mrf.mxu0
          %v4972 = vpop.f32.mrf.mxu0
          %v4973 = vadd.f32 0.0, %v4972
          %v4974 = vpop.f32.mrf.mxu0
          %4975 = vmatprep.mubr.bf16.mxu0 %v4758
          %4976 = vmatmul.mubr.bf16.gmra.mxu0 %v4570
          %v4977 = vpop.f32.mrf.mxu0
          %v4978 = vadd.f32 0.0, %v4977
          %v4979 = vpop.f32.mrf.mxu0
          %v4980 = vpop.f32.mrf.mxu0
          %v4981 = vadd.f32 0.0, %v4980
          %v4982 = vpop.f32.mrf.mxu0
          %4983 = vmatprep.mubr.bf16.mxu0 %v4761
          %4984 = vmatmul.mubr.bf16.gmra.mxu0 %v4572
          %v4985 = vpop.f32.mrf.mxu0
          %v4986 = vadd.f32 0.0, %v4985
          %v4987 = vpop.f32.mrf.mxu0
          %v4988 = vpop.f32.mrf.mxu0
          %v4989 = vadd.f32 0.0, %v4988
          %v4990 = vpop.f32.mrf.mxu0
          %4991 = vmatprep.mubr.bf16.mxu0 %v4764
          %4992 = vmatmul.mubr.bf16.gmra.mxu0 %v4574
          %v4993 = vpop.f32.mrf.mxu0
          %v4994 = vadd.f32 0.0, %v4993
          %v4995 = vpop.f32.mrf.mxu0
          %v4996 = vpop.f32.mrf.mxu0
          %v4997 = vadd.f32 0.0, %v4996
          %v4998 = vpop.f32.mrf.mxu0
          %4999 = vmatprep.mubr.bf16.mxu0 %v4767
          %5000 = vmatmul.mubr.bf16.gmra.mxu0 %v4576
          %v5001 = vpop.f32.mrf.mxu0
          %v5002 = vadd.f32 0.0, %v5001
          %v5003 = vpop.f32.mrf.mxu0
          %v5004 = vpop.f32.mrf.mxu0
          %v5005 = vadd.f32 0.0, %v5004
          %v5006 = vpop.f32.mrf.mxu0
          %5007 = vmatprep.mubr.bf16.mxu0 %v4770
          %5008 = vmatmul.mubr.bf16.gmra.mxu0 %v4578
          %v5009 = vpop.f32.mrf.mxu0
          %v5010 = vadd.f32 0.0, %v5009
          %v5011 = vpop.f32.mrf.mxu0
          %v5012 = vpop.f32.mrf.mxu0
          %v5013 = vadd.f32 0.0, %v5012
          %v5014 = vpop.f32.mrf.mxu0
          %5015 = vmatprep.mubr.bf16.mxu0 %v4773
          %5016 = vmatmul.mubr.bf16.gmra.mxu0 %v4580
          %v5017 = vpop.f32.mrf.mxu0
          %v5018 = vadd.f32 0.0, %v5017
          %v5019 = vpop.f32.mrf.mxu0
          %v5020 = vpop.f32.mrf.mxu0
          %v5021 = vadd.f32 0.0, %v5020
          %v5022 = vpop.f32.mrf.mxu0
          %5023 = vmatprep.mubr.bf16.mxu0 %v4776
          %5024 = vmatmul.mubr.bf16.gmra.mxu0 %v4582
          %v5025 = vpop.f32.mrf.mxu0
          %v5026 = vadd.f32 0.0, %v5025
          %v5027 = vpop.f32.mrf.mxu0
          %v5028 = vpop.f32.mrf.mxu0
          %v5029 = vadd.f32 0.0, %v5028
          %v5030 = vpop.f32.mrf.mxu0
          %5031 = vmatprep.mubr.bf16.mxu0 %v4779
          %5032 = vmatmul.mubr.bf16.gmra.mxu0 %v4584
          %v5033 = vpop.f32.mrf.mxu0
          %v5034 = vadd.f32 0.0, %v5033
          %v5035 = vpop.f32.mrf.mxu0
          %v5036 = vpop.f32.mrf.mxu0
          %v5037 = vadd.f32 0.0, %v5036
          %v5038 = vpop.f32.mrf.mxu0
          %5039 = vmatprep.mubr.bf16.mxu0 %v4782
          %5040 = vmatmul.mubr.bf16.gmra.mxu0 %v4586
          %v5041 = vpop.f32.mrf.mxu0
          %v5042 = vadd.f32 0.0, %v5041
          %v5043 = vpop.f32.mrf.mxu0
          %v5044 = vpop.f32.mrf.mxu0
          %v5045 = vadd.f32 0.0, %v5044
          %v5046 = vpop.f32.mrf.mxu0
          %5047 = vmatprep.mubr.bf16.mxu0 %v4785
          %5048 = vmatmul.mubr.bf16.gmra.mxu0 %v4588
          %v5049 = vpop.f32.mrf.mxu0
          %v5050 = vadd.f32 0.0, %v5049
          %v5051 = vpop.f32.mrf.mxu0
          %v5052 = vpop.f32.mrf.mxu0
          %v5053 = vadd.f32 0.0, %v5052
          %v5054 = vpop.f32.mrf.mxu0
          %5055 = vmatprep.mubr.bf16.mxu0 %v4788
          %5056 = vmatmul.mubr.bf16.gmra.mxu0 %v4590
          %v5057 = vpop.f32.mrf.mxu0
          %v5058 = vadd.f32 0.0, %v5057
          %v5059 = vpop.f32.mrf.mxu0
          %v5060 = vpop.f32.mrf.mxu0
          %v5061 = vadd.f32 0.0, %v5060
          %v5062 = vpop.f32.mrf.mxu0
          %5063 = vmatprep.mubr.bf16.mxu0 %v4791
          %5064 = vmatmul.mubr.bf16.gmra.mxu0 %v4592
          %v5065 = vpop.f32.mrf.mxu0
          %v5066 = vadd.f32 0.0, %v5065
          %v5067 = vpop.f32.mrf.mxu0
          %v5068 = vpop.f32.mrf.mxu0
          %v5069 = vadd.f32 0.0, %v5068
          %v5070 = vpop.f32.mrf.mxu0
          %5071 = vmatprep.mubr.bf16.mxu0 %v4794
          %5072 = vmatmul.mubr.bf16.gmra.mxu0 %v4594
          %v5073 = vpop.f32.mrf.mxu0
          %v5074 = vadd.f32 0.0, %v5073
          %v5075 = vpop.f32.mrf.mxu0
          %v5076 = vpop.f32.mrf.mxu0
          %v5077 = vadd.f32 0.0, %v5076
          %v5078 = vpop.f32.mrf.mxu0
          %5079 = vmatprep.mubr.bf16.mxu0 %v4797
          %5080 = vmatmul.mubr.bf16.gmra.mxu0 %v4596
          %v5081 = vpop.f32.mrf.mxu0
          %v5082 = vadd.f32 0.0, %v5081
          %v5083 = vpop.f32.mrf.mxu0
          %v5084 = vpop.f32.mrf.mxu0
          %v5085 = vadd.f32 0.0, %v5084
          %v5086 = vpop.f32.mrf.mxu0
          %5087 = vdwg.mxu0
          %v5088 = vadd.f32 %v4254, %v4834
          %v5089 = vadd.f32 %v4255, %v4837
          %v5090 = vadd.f32 %v4256, %v4842
          %v5091 = vadd.f32 %v4257, %v4845
          %v5092 = vadd.f32 %v4258, %v4850
          %v5093 = vadd.f32 %v4259, %v4853
          %v5094 = vadd.f32 %v4260, %v4858
          %v5095 = vadd.f32 %v4261, %v4861
          %v5096 = vadd.f32 %v4262, %v4866
          %v5097 = vadd.f32 %v4263, %v4869
          %v5098 = vadd.f32 %v4264, %v4874
          %v5099 = vadd.f32 %v4265, %v4877
          %v5100 = vadd.f32 %v4266, %v4882
          %v5101 = vadd.f32 %v4267, %v4885
          %v5102 = vadd.f32 %v4268, %v4890
          %v5103 = vadd.f32 %v4269, %v4893
          %v5104 = vadd.f32 %v4270, %v4898
          %v5105 = vadd.f32 %v4271, %v4901
          %v5106 = vadd.f32 %v4272, %v4906
          %v5107 = vadd.f32 %v4273, %v4909
          %v5108 = vadd.f32 %v4274, %v4914
          %v5109 = vadd.f32 %v4275, %v4917
          %v5110 = vadd.f32 %v4276, %v4922
          %v5111 = vadd.f32 %v4277, %v4925
          %v5112 = vadd.f32 %v4278, %v4930
          %v5113 = vadd.f32 %v4279, %v4933
          %v5114 = vadd.f32 %v4280, %v4938
          %v5115 = vadd.f32 %v4281, %v4941
          %v5116 = vadd.f32 %v4282, %v4946
          %v5117 = vadd.f32 %v4283, %v4949
          %v5118 = vadd.f32 %v4284, %v4954
          %v5119 = vadd.f32 %v4285, %v4957
          %v5120 = vadd.f32 %v4286, %v4962
          %v5121 = vadd.f32 %v4287, %v4965
          %v5122 = vadd.f32 %v4288, %v4970
          %v5123 = vadd.f32 %v4289, %v4973
          %v5124 = vadd.f32 %v4290, %v4978
          %v5125 = vadd.f32 %v4291, %v4981
          %v5126 = vadd.f32 %v4292, %v4986
          %v5127 = vadd.f32 %v4293, %v4989
          %v5128 = vadd.f32 %v4294, %v4994
          %v5129 = vadd.f32 %v4295, %v4997
          %v5130 = vadd.f32 %v4296, %v5002
          %v5131 = vadd.f32 %v4297, %v5005
          %v5132 = vadd.f32 %v4298, %v5010
          %v5133 = vadd.f32 %v4299, %v5013
          %v5134 = vadd.f32 %v4300, %v5018
          %v5135 = vadd.f32 %v4301, %v5021
          %v5136 = vadd.f32 %v4302, %v5026
          %v5137 = vadd.f32 %v4303, %v5029
          %v5138 = vadd.f32 %v4304, %v5034
          %v5139 = vadd.f32 %v4305, %v5037
          %v5140 = vadd.f32 %v4306, %v5042
          %v5141 = vadd.f32 %v4307, %v5045
          %v5142 = vadd.f32 %v4308, %v5050
          %v5143 = vadd.f32 %v4309, %v5053
          %v5144 = vadd.f32 %v4310, %v5058
          %v5145 = vadd.f32 %v4311, %v5061
          %v5146 = vadd.f32 %v4312, %v5066
          %v5147 = vadd.f32 %v4313, %v5069
          %v5148 = vadd.f32 %v4314, %v5074
          %v5149 = vadd.f32 %v4315, %v5077
          %v5150 = vadd.f32 %v4316, %v5082
          %v5151 = vadd.f32 %v4317, %v5085
          %5152 = vst.msk [vmem:[#allocation5] sm:$0xff] %vm4702, %v5088
          %5153 = vst.msk [vmem:[#allocation5 + $0x8] sm:$0xff] %vm4702, %v5089
          %5154 = vst.msk [vmem:[#allocation5 + $0x10] sm:$0xff] %vm4702, %v5090
          %5155 = vst.msk [vmem:[#allocation5 + $0x18] sm:$0xff] %vm4702, %v5091
          %5156 = vst.msk [vmem:[#allocation5 + $0x20] sm:$0xff] %vm4702, %v5092
          %5157 = vst.msk [vmem:[#allocation5 + $0x28] sm:$0xff] %vm4702, %v5093
          %5158 = vst.msk [vmem:[#allocation5 + $0x30] sm:$0xff] %vm4702, %v5094
          %5159 = vst.msk [vmem:[#allocation5 + $0x38] sm:$0xff] %vm4702, %v5095
          %5160 = vst.msk [vmem:[#allocation5 + $0x40] sm:$0xff] %vm4702, %v5096
          %5161 = vst.msk [vmem:[#allocation5 + $0x48] sm:$0xff] %vm4702, %v5097
          %5162 = vst.msk [vmem:[#allocation5 + $0x50] sm:$0xff] %vm4702, %v5098
          %5163 = vst.msk [vmem:[#allocation5 + $0x58] sm:$0xff] %vm4702, %v5099
          %5164 = vst.msk [vmem:[#allocation5 + $0x60] sm:$0xff] %vm4702, %v5100
          %5165 = vst.msk [vmem:[#allocation5 + $0x68] sm:$0xff] %vm4702, %v5101
          %5166 = vst.msk [vmem:[#allocation5 + $0x70] sm:$0xff] %vm4702, %v5102
          %5167 = vst.msk [vmem:[#allocation5 + $0x78] sm:$0xff] %vm4702, %v5103
          %5168 = vst.msk [vmem:[#allocation5 + $0x80] sm:$0xff] %vm4702, %v5104
          %5169 = vst.msk [vmem:[#allocation5 + $0x88] sm:$0xff] %vm4702, %v5105
          %5170 = vst.msk [vmem:[#allocation5 + $0x90] sm:$0xff] %vm4702, %v5106
          %5171 = vst.msk [vmem:[#allocation5 + $0x98] sm:$0xff] %vm4702, %v5107
          %5172 = vst.msk [vmem:[#allocation5 + $0xa0] sm:$0xff] %vm4702, %v5108
          %5173 = vst.msk [vmem:[#allocation5 + $0xa8] sm:$0xff] %vm4702, %v5109
          %5174 = vst.msk [vmem:[#allocation5 + $0xb0] sm:$0xff] %vm4702, %v5110
          %5175 = vst.msk [vmem:[#allocation5 + $0xb8] sm:$0xff] %vm4702, %v5111
          %5176 = vst.msk [vmem:[#allocation5 + $0xc0] sm:$0xff] %vm4702, %v5112
          %5177 = vst.msk [vmem:[#allocation5 + $0xc8] sm:$0xff] %vm4702, %v5113
          %5178 = vst.msk [vmem:[#allocation5 + $0xd0] sm:$0xff] %vm4702, %v5114
          %5179 = vst.msk [vmem:[#allocation5 + $0xd8] sm:$0xff] %vm4702, %v5115
          %5180 = vst.msk [vmem:[#allocation5 + $0xe0] sm:$0xff] %vm4702, %v5116
          %5181 = vst.msk [vmem:[#allocation5 + $0xe8] sm:$0xff] %vm4702, %v5117
          %5182 = vst.msk [vmem:[#allocation5 + $0xf0] sm:$0xff] %vm4702, %v5118
          %5183 = vst.msk [vmem:[#allocation5 + $0xf8] sm:$0xff] %vm4702, %v5119
          %5184 = vst.msk [vmem:[#allocation5 + $0x100] sm:$0xff] %vm4702, %v5120
          %5185 = vst.msk [vmem:[#allocation5 + $0x108] sm:$0xff] %vm4702, %v5121
          %5186 = vst.msk [vmem:[#allocation5 + $0x110] sm:$0xff] %vm4702, %v5122
          %5187 = vst.msk [vmem:[#allocation5 + $0x118] sm:$0xff] %vm4702, %v5123
          %5188 = vst.msk [vmem:[#allocation5 + $0x120] sm:$0xff] %vm4702, %v5124
          %5189 = vst.msk [vmem:[#allocation5 + $0x128] sm:$0xff] %vm4702, %v5125
          %5190 = vst.msk [vmem:[#allocation5 + $0x130] sm:$0xff] %vm4702, %v5126
          %5191 = vst.msk [vmem:[#allocation5 + $0x138] sm:$0xff] %vm4702, %v5127
          %5192 = vst.msk [vmem:[#allocation5 + $0x140] sm:$0xff] %vm4702, %v5128
          %5193 = vst.msk [vmem:[#allocation5 + $0x148] sm:$0xff] %vm4702, %v5129
          %5194 = vst.msk [vmem:[#allocation5 + $0x150] sm:$0xff] %vm4702, %v5130
          %5195 = vst.msk [vmem:[#allocation5 + $0x158] sm:$0xff] %vm4702, %v5131
          %5196 = vst.msk [vmem:[#allocation5 + $0x160] sm:$0xff] %vm4702, %v5132
          %5197 = vst.msk [vmem:[#allocation5 + $0x168] sm:$0xff] %vm4702, %v5133
          %5198 = vst.msk [vmem:[#allocation5 + $0x170] sm:$0xff] %vm4702, %v5134
          %5199 = vst.msk [vmem:[#allocation5 + $0x178] sm:$0xff] %vm4702, %v5135
          %5200 = vst.msk [vmem:[#allocation5 + $0x180] sm:$0xff] %vm4702, %v5136
          %5201 = vst.msk [vmem:[#allocation5 + $0x188] sm:$0xff] %vm4702, %v5137
          %5202 = vst.msk [vmem:[#allocation5 + $0x190] sm:$0xff] %vm4702, %v5138
          %5203 = vst.msk [vmem:[#allocation5 + $0x198] sm:$0xff] %vm4702, %v5139
          %5204 = vst.msk [vmem:[#allocation5 + $0x1a0] sm:$0xff] %vm4702, %v5140
          %5205 = vst.msk [vmem:[#allocation5 + $0x1a8] sm:$0xff] %vm4702, %v5141
          %5206 = vst.msk [vmem:[#allocation5 + $0x1b0] sm:$0xff] %vm4702, %v5142
          %5207 = vst.msk [vmem:[#allocation5 + $0x1b8] sm:$0xff] %vm4702, %v5143
          %5208 = vst.msk [vmem:[#allocation5 + $0x1c0] sm:$0xff] %vm4702, %v5144
          %5209 = vst.msk [vmem:[#allocation5 + $0x1c8] sm:$0xff] %vm4702, %v5145
          %5210 = vst.msk [vmem:[#allocation5 + $0x1d0] sm:$0xff] %vm4702, %v5146
          %5211 = vst.msk [vmem:[#allocation5 + $0x1d8] sm:$0xff] %vm4702, %v5147
          %5212 = vst.msk [vmem:[#allocation5 + $0x1e0] sm:$0xff] %vm4702, %v5148
          %5213 = vst.msk [vmem:[#allocation5 + $0x1e8] sm:$0xff] %vm4702, %v5149
          %5214 = vst.msk [vmem:[#allocation5 + $0x1f0] sm:$0xff] %vm4702, %v5150
          %5215 = vst.msk [vmem:[#allocation5 + $0x1f8] sm:$0xff] %vm4702, %v5151
        $region64: #{_lambda_.1} parent=47 // pred_fallthru
          _
        %p5216 = scmp.eq.s32.totalorder %s19, 5
        // Predicated region
        $region65: #{_lambda_.1} parent=47 // pred_check
          %p5217 = pneg %p5216
        $region66: #{_lambda_.1} parent=47 // pred_check_branch
          %5219 = sbr.rel (%p5217) target = $region68
        $region67: #{_lambda_.1} parent=47 // pred_region
          %v5220 = vld [vmem:[#allocation5] sm:$0xff]
          %v5221 = vld [vmem:[#allocation5 + $0x8] sm:$0xff]
          %v5222 = vld [vmem:[#allocation5 + $0x10] sm:$0xff]
          %v5223 = vld [vmem:[#allocation5 + $0x18] sm:$0xff]
          %v5224 = vld [vmem:[#allocation5 + $0x20] sm:$0xff]
          %v5225 = vld [vmem:[#allocation5 + $0x28] sm:$0xff]
          %v5226 = vld [vmem:[#allocation5 + $0x30] sm:$0xff]
          %v5227 = vld [vmem:[#allocation5 + $0x38] sm:$0xff]
          %v5228 = vld [vmem:[#allocation5 + $0x40] sm:$0xff]
          %v5229 = vld [vmem:[#allocation5 + $0x48] sm:$0xff]
          %v5230 = vld [vmem:[#allocation5 + $0x50] sm:$0xff]
          %v5231 = vld [vmem:[#allocation5 + $0x58] sm:$0xff]
          %v5232 = vld [vmem:[#allocation5 + $0x60] sm:$0xff]
          %v5233 = vld [vmem:[#allocation5 + $0x68] sm:$0xff]
          %v5234 = vld [vmem:[#allocation5 + $0x70] sm:$0xff]
          %v5235 = vld [vmem:[#allocation5 + $0x78] sm:$0xff]
          %v5236 = vld [vmem:[#allocation5 + $0x80] sm:$0xff]
          %v5237 = vld [vmem:[#allocation5 + $0x88] sm:$0xff]
          %v5238 = vld [vmem:[#allocation5 + $0x90] sm:$0xff]
          %v5239 = vld [vmem:[#allocation5 + $0x98] sm:$0xff]
          %v5240 = vld [vmem:[#allocation5 + $0xa0] sm:$0xff]
          %v5241 = vld [vmem:[#allocation5 + $0xa8] sm:$0xff]
          %v5242 = vld [vmem:[#allocation5 + $0xb0] sm:$0xff]
          %v5243 = vld [vmem:[#allocation5 + $0xb8] sm:$0xff]
          %v5244 = vld [vmem:[#allocation5 + $0xc0] sm:$0xff]
          %v5245 = vld [vmem:[#allocation5 + $0xc8] sm:$0xff]
          %v5246 = vld [vmem:[#allocation5 + $0xd0] sm:$0xff]
          %v5247 = vld [vmem:[#allocation5 + $0xd8] sm:$0xff]
          %v5248 = vld [vmem:[#allocation5 + $0xe0] sm:$0xff]
          %v5249 = vld [vmem:[#allocation5 + $0xe8] sm:$0xff]
          %v5250 = vld [vmem:[#allocation5 + $0xf0] sm:$0xff]
          %v5251 = vld [vmem:[#allocation5 + $0xf8] sm:$0xff]
          %v5252 = vld [vmem:[#allocation5 + $0x100] sm:$0xff]
          %v5253 = vld [vmem:[#allocation5 + $0x108] sm:$0xff]
          %v5254 = vld [vmem:[#allocation5 + $0x110] sm:$0xff]
          %v5255 = vld [vmem:[#allocation5 + $0x118] sm:$0xff]
          %v5256 = vld [vmem:[#allocation5 + $0x120] sm:$0xff]
          %v5257 = vld [vmem:[#allocation5 + $0x128] sm:$0xff]
          %v5258 = vld [vmem:[#allocation5 + $0x130] sm:$0xff]
          %v5259 = vld [vmem:[#allocation5 + $0x138] sm:$0xff]
          %v5260 = vld [vmem:[#allocation5 + $0x140] sm:$0xff]
          %v5261 = vld [vmem:[#allocation5 + $0x148] sm:$0xff]
          %v5262 = vld [vmem:[#allocation5 + $0x150] sm:$0xff]
          %v5263 = vld [vmem:[#allocation5 + $0x158] sm:$0xff]
          %v5264 = vld [vmem:[#allocation5 + $0x160] sm:$0xff]
          %v5265 = vld [vmem:[#allocation5 + $0x168] sm:$0xff]
          %v5266 = vld [vmem:[#allocation5 + $0x170] sm:$0xff]
          %v5267 = vld [vmem:[#allocation5 + $0x178] sm:$0xff]
          %v5268 = vld [vmem:[#allocation5 + $0x180] sm:$0xff]
          %v5269 = vld [vmem:[#allocation5 + $0x188] sm:$0xff]
          %v5270 = vld [vmem:[#allocation5 + $0x190] sm:$0xff]
          %v5271 = vld [vmem:[#allocation5 + $0x198] sm:$0xff]
          %v5272 = vld [vmem:[#allocation5 + $0x1a0] sm:$0xff]
          %v5273 = vld [vmem:[#allocation5 + $0x1a8] sm:$0xff]
          %v5274 = vld [vmem:[#allocation5 + $0x1b0] sm:$0xff]
          %v5275 = vld [vmem:[#allocation5 + $0x1b8] sm:$0xff]
          %v5276 = vld [vmem:[#allocation5 + $0x1c0] sm:$0xff]
          %v5277 = vld [vmem:[#allocation5 + $0x1c8] sm:$0xff]
          %v5278 = vld [vmem:[#allocation5 + $0x1d0] sm:$0xff]
          %v5279 = vld [vmem:[#allocation5 + $0x1d8] sm:$0xff]
          %v5280 = vld [vmem:[#allocation5 + $0x1e0] sm:$0xff]
          %v5281 = vld [vmem:[#allocation5 + $0x1e8] sm:$0xff]
          %v5282 = vld [vmem:[#allocation5 + $0x1f0] sm:$0xff]
          %v5283 = vld [vmem:[#allocation5 + $0x1f8] sm:$0xff]
          %v5284 = vpack.c.bf16 %v5221, %v5220
          %v5285 = vpack.c.bf16 %v5223, %v5222
          %v5286 = vpack.c.bf16 %v5225, %v5224
          %v5287 = vpack.c.bf16 %v5227, %v5226
          %v5288 = vpack.c.bf16 %v5229, %v5228
          %v5289 = vpack.c.bf16 %v5231, %v5230
          %v5290 = vpack.c.bf16 %v5233, %v5232
          %v5291 = vpack.c.bf16 %v5235, %v5234
          %v5292 = vpack.c.bf16 %v5237, %v5236
          %v5293 = vpack.c.bf16 %v5239, %v5238
          %v5294 = vpack.c.bf16 %v5241, %v5240
          %v5295 = vpack.c.bf16 %v5243, %v5242
          %v5296 = vpack.c.bf16 %v5245, %v5244
          %v5297 = vpack.c.bf16 %v5247, %v5246
          %v5298 = vpack.c.bf16 %v5249, %v5248
          %v5299 = vpack.c.bf16 %v5251, %v5250
          %v5300 = vpack.c.bf16 %v5253, %v5252
          %v5301 = vpack.c.bf16 %v5255, %v5254
          %v5302 = vpack.c.bf16 %v5257, %v5256
          %v5303 = vpack.c.bf16 %v5259, %v5258
          %v5304 = vpack.c.bf16 %v5261, %v5260
          %v5305 = vpack.c.bf16 %v5263, %v5262
          %v5306 = vpack.c.bf16 %v5265, %v5264
          %v5307 = vpack.c.bf16 %v5267, %v5266
          %v5308 = vpack.c.bf16 %v5269, %v5268
          %v5309 = vpack.c.bf16 %v5271, %v5270
          %v5310 = vpack.c.bf16 %v5273, %v5272
          %v5311 = vpack.c.bf16 %v5275, %v5274
          %v5312 = vpack.c.bf16 %v5277, %v5276
          %v5313 = vpack.c.bf16 %v5279, %v5278
          %v5314 = vpack.c.bf16 %v5281, %v5280
          %v5315 = vpack.c.bf16 %v5283, %v5282
          %v5348 = vunpack.c.l.b16 %v5284
          %v5349 = vunpack.c.h.b16 %v5284
          %v5350 = vunpack.c.l.b16 %v5285
          %v5351 = vunpack.c.h.b16 %v5285
          %v5352 = vunpack.c.l.b16 %v5286
          %v5353 = vunpack.c.h.b16 %v5286
          %v5354 = vunpack.c.l.b16 %v5287
          %v5355 = vunpack.c.h.b16 %v5287
          %v5356 = vunpack.c.l.b16 %v5288
          %v5357 = vunpack.c.h.b16 %v5288
          %v5358 = vunpack.c.l.b16 %v5289
          %v5359 = vunpack.c.h.b16 %v5289
          %v5360 = vunpack.c.l.b16 %v5290
          %v5361 = vunpack.c.h.b16 %v5290
          %v5362 = vunpack.c.l.b16 %v5291
          %v5363 = vunpack.c.h.b16 %v5291
          %v5364 = vunpack.c.l.b16 %v5292
          %v5365 = vunpack.c.h.b16 %v5292
          %v5366 = vunpack.c.l.b16 %v5293
          %v5367 = vunpack.c.h.b16 %v5293
          %v5368 = vunpack.c.l.b16 %v5294
          %v5369 = vunpack.c.h.b16 %v5294
          %v5370 = vunpack.c.l.b16 %v5295
          %v5371 = vunpack.c.h.b16 %v5295
          %v5372 = vunpack.c.l.b16 %v5296
          %v5373 = vunpack.c.h.b16 %v5296
          %v5374 = vunpack.c.l.b16 %v5297
          %v5375 = vunpack.c.h.b16 %v5297
          %v5376 = vunpack.c.l.b16 %v5298
          %v5377 = vunpack.c.h.b16 %v5298
          %v5378 = vunpack.c.l.b16 %v5299
          %v5379 = vunpack.c.h.b16 %v5299
          %v5380 = vunpack.c.l.b16 %v5300
          %v5381 = vunpack.c.h.b16 %v5300
          %v5382 = vunpack.c.l.b16 %v5301
          %v5383 = vunpack.c.h.b16 %v5301
          %v5384 = vunpack.c.l.b16 %v5302
          %v5385 = vunpack.c.h.b16 %v5302
          %v5386 = vunpack.c.l.b16 %v5303
          %v5387 = vunpack.c.h.b16 %v5303
          %v5388 = vunpack.c.l.b16 %v5304
          %v5389 = vunpack.c.h.b16 %v5304
          %v5390 = vunpack.c.l.b16 %v5305
          %v5391 = vunpack.c.h.b16 %v5305
          %v5392 = vunpack.c.l.b16 %v5306
          %v5393 = vunpack.c.h.b16 %v5306
          %v5394 = vunpack.c.l.b16 %v5307
          %v5395 = vunpack.c.h.b16 %v5307
          %v5396 = vunpack.c.l.b16 %v5308
          %v5397 = vunpack.c.h.b16 %v5308
          %v5398 = vunpack.c.l.b16 %v5309
          %v5399 = vunpack.c.h.b16 %v5309
          %v5400 = vunpack.c.l.b16 %v5310
          %v5401 = vunpack.c.h.b16 %v5310
          %v5402 = vunpack.c.l.b16 %v5311
          %v5403 = vunpack.c.h.b16 %v5311
          %v5404 = vunpack.c.l.b16 %v5312
          %v5405 = vunpack.c.h.b16 %v5312
          %v5406 = vunpack.c.l.b16 %v5313
          %v5407 = vunpack.c.h.b16 %v5313
          %v5408 = vunpack.c.l.b16 %v5314
          %v5409 = vunpack.c.h.b16 %v5314
          %v5410 = vunpack.c.l.b16 %v5315
          %v5411 = vunpack.c.h.b16 %v5315
          %v5412 = vpack.c.b16 %v5348, %v5348
          %v5413 = vpack.c.b16 %v5349, %v5349
          %v5414 = vpack.c.b16 %v5350, %v5350
          %v5415 = vpack.c.b16 %v5351, %v5351
          %v5416 = vpack.c.b16 %v5352, %v5352
          %v5417 = vpack.c.b16 %v5353, %v5353
          %v5418 = vpack.c.b16 %v5354, %v5354
          %v5419 = vpack.c.b16 %v5355, %v5355
          %v5420 = vpack.c.b16 %v5356, %v5356
          %v5421 = vpack.c.b16 %v5357, %v5357
          %v5422 = vpack.c.b16 %v5358, %v5358
          %v5423 = vpack.c.b16 %v5359, %v5359
          %v5424 = vpack.c.b16 %v5360, %v5360
          %v5425 = vpack.c.b16 %v5361, %v5361
          %v5426 = vpack.c.b16 %v5362, %v5362
          %v5427 = vpack.c.b16 %v5363, %v5363
          %v5428 = vpack.c.b16 %v5364, %v5364
          %v5429 = vpack.c.b16 %v5365, %v5365
          %v5430 = vpack.c.b16 %v5366, %v5366
          %v5431 = vpack.c.b16 %v5367, %v5367
          %v5432 = vpack.c.b16 %v5368, %v5368
          %v5433 = vpack.c.b16 %v5369, %v5369
          %v5434 = vpack.c.b16 %v5370, %v5370
          %v5435 = vpack.c.b16 %v5371, %v5371
          %v5436 = vpack.c.b16 %v5372, %v5372
          %v5437 = vpack.c.b16 %v5373, %v5373
          %v5438 = vpack.c.b16 %v5374, %v5374
          %v5439 = vpack.c.b16 %v5375, %v5375
          %v5440 = vpack.c.b16 %v5376, %v5376
          %v5441 = vpack.c.b16 %v5377, %v5377
          %v5442 = vpack.c.b16 %v5378, %v5378
          %v5443 = vpack.c.b16 %v5379, %v5379
          %v5444 = vpack.c.b16 %v5380, %v5380
          %v5445 = vpack.c.b16 %v5381, %v5381
          %v5446 = vpack.c.b16 %v5382, %v5382
          %v5447 = vpack.c.b16 %v5383, %v5383
          %v5448 = vpack.c.b16 %v5384, %v5384
          %v5449 = vpack.c.b16 %v5385, %v5385
          %v5450 = vpack.c.b16 %v5386, %v5386
          %v5451 = vpack.c.b16 %v5387, %v5387
          %v5452 = vpack.c.b16 %v5388, %v5388
          %v5453 = vpack.c.b16 %v5389, %v5389
          %v5454 = vpack.c.b16 %v5390, %v5390
          %v5455 = vpack.c.b16 %v5391, %v5391
          %v5456 = vpack.c.b16 %v5392, %v5392
          %v5457 = vpack.c.b16 %v5393, %v5393
          %v5458 = vpack.c.b16 %v5394, %v5394
          %v5459 = vpack.c.b16 %v5395, %v5395
          %v5460 = vpack.c.b16 %v5396, %v5396
          %v5461 = vpack.c.b16 %v5397, %v5397
          %v5462 = vpack.c.b16 %v5398, %v5398
          %v5463 = vpack.c.b16 %v5399, %v5399
          %v5464 = vpack.c.b16 %v5400, %v5400
          %v5465 = vpack.c.b16 %v5401, %v5401
          %v5466 = vpack.c.b16 %v5402, %v5402
          %v5467 = vpack.c.b16 %v5403, %v5403
          %v5468 = vpack.c.b16 %v5404, %v5404
          %v5469 = vpack.c.b16 %v5405, %v5405
          %v5470 = vpack.c.b16 %v5406, %v5406
          %v5471 = vpack.c.b16 %v5407, %v5407
          %v5472 = vpack.c.b16 %v5408, %v5408
          %v5473 = vpack.c.b16 %v5409, %v5409
          %v5474 = vpack.c.b16 %v5410, %v5410
          %v5475 = vpack.c.b16 %v5411, %v5411
          %vm5540 = vcmask 519168
          %5541 = vst.msk [vmem:[#allocation6] sm:$0xf] %vm5540, %v5412
          %5542 = vst.msk [vmem:[#allocation6 + $0x4] sm:$0xf] %vm5540, %v5413
          %5543 = vst.msk [vmem:[#allocation6 + $0x8] sm:$0xf] %vm5540, %v5414
          %5544 = vst.msk [vmem:[#allocation6 + $0xc] sm:$0xf] %vm5540, %v5415
          %5545 = vst.msk [vmem:[#allocation6 + $0x10] sm:$0xf] %vm5540, %v5416
          %5546 = vst.msk [vmem:[#allocation6 + $0x14] sm:$0xf] %vm5540, %v5417
          %5547 = vst.msk [vmem:[#allocation6 + $0x18] sm:$0xf] %vm5540, %v5418
          %5548 = vst.msk [vmem:[#allocation6 + $0x1c] sm:$0xf] %vm5540, %v5419
          %5549 = vst.msk [vmem:[#allocation6 + $0x20] sm:$0xf] %vm5540, %v5420
          %5550 = vst.msk [vmem:[#allocation6 + $0x24] sm:$0xf] %vm5540, %v5421
          %5551 = vst.msk [vmem:[#allocation6 + $0x28] sm:$0xf] %vm5540, %v5422
          %5552 = vst.msk [vmem:[#allocation6 + $0x2c] sm:$0xf] %vm5540, %v5423
          %5553 = vst.msk [vmem:[#allocation6 + $0x30] sm:$0xf] %vm5540, %v5424
          %5554 = vst.msk [vmem:[#allocation6 + $0x34] sm:$0xf] %vm5540, %v5425
          %5555 = vst.msk [vmem:[#allocation6 + $0x38] sm:$0xf] %vm5540, %v5426
          %5556 = vst.msk [vmem:[#allocation6 + $0x3c] sm:$0xf] %vm5540, %v5427
          %5557 = vst.msk [vmem:[#allocation6 + $0x40] sm:$0xf] %vm5540, %v5428
          %5558 = vst.msk [vmem:[#allocation6 + $0x44] sm:$0xf] %vm5540, %v5429
          %5559 = vst.msk [vmem:[#allocation6 + $0x48] sm:$0xf] %vm5540, %v5430
          %5560 = vst.msk [vmem:[#allocation6 + $0x4c] sm:$0xf] %vm5540, %v5431
          %5561 = vst.msk [vmem:[#allocation6 + $0x50] sm:$0xf] %vm5540, %v5432
          %5562 = vst.msk [vmem:[#allocation6 + $0x54] sm:$0xf] %vm5540, %v5433
          %5563 = vst.msk [vmem:[#allocation6 + $0x58] sm:$0xf] %vm5540, %v5434
          %5564 = vst.msk [vmem:[#allocation6 + $0x5c] sm:$0xf] %vm5540, %v5435
          %5565 = vst.msk [vmem:[#allocation6 + $0x60] sm:$0xf] %vm5540, %v5436
          %5566 = vst.msk [vmem:[#allocation6 + $0x64] sm:$0xf] %vm5540, %v5437
          %5567 = vst.msk [vmem:[#allocation6 + $0x68] sm:$0xf] %vm5540, %v5438
          %5568 = vst.msk [vmem:[#allocation6 + $0x6c] sm:$0xf] %vm5540, %v5439
          %5569 = vst.msk [vmem:[#allocation6 + $0x70] sm:$0xf] %vm5540, %v5440
          %5570 = vst.msk [vmem:[#allocation6 + $0x74] sm:$0xf] %vm5540, %v5441
          %5571 = vst.msk [vmem:[#allocation6 + $0x78] sm:$0xf] %vm5540, %v5442
          %5572 = vst.msk [vmem:[#allocation6 + $0x7c] sm:$0xf] %vm5540, %v5443
          %5573 = vst.msk [vmem:[#allocation6 + $0x80] sm:$0xf] %vm5540, %v5444
          %5574 = vst.msk [vmem:[#allocation6 + $0x84] sm:$0xf] %vm5540, %v5445
          %5575 = vst.msk [vmem:[#allocation6 + $0x88] sm:$0xf] %vm5540, %v5446
          %5576 = vst.msk [vmem:[#allocation6 + $0x8c] sm:$0xf] %vm5540, %v5447
          %5577 = vst.msk [vmem:[#allocation6 + $0x90] sm:$0xf] %vm5540, %v5448
          %5578 = vst.msk [vmem:[#allocation6 + $0x94] sm:$0xf] %vm5540, %v5449
          %5579 = vst.msk [vmem:[#allocation6 + $0x98] sm:$0xf] %vm5540, %v5450
          %5580 = vst.msk [vmem:[#allocation6 + $0x9c] sm:$0xf] %vm5540, %v5451
          %5581 = vst.msk [vmem:[#allocation6 + $0xa0] sm:$0xf] %vm5540, %v5452
          %5582 = vst.msk [vmem:[#allocation6 + $0xa4] sm:$0xf] %vm5540, %v5453
          %5583 = vst.msk [vmem:[#allocation6 + $0xa8] sm:$0xf] %vm5540, %v5454
          %5584 = vst.msk [vmem:[#allocation6 + $0xac] sm:$0xf] %vm5540, %v5455
          %5585 = vst.msk [vmem:[#allocation6 + $0xb0] sm:$0xf] %vm5540, %v5456
          %5586 = vst.msk [vmem:[#allocation6 + $0xb4] sm:$0xf] %vm5540, %v5457
          %5587 = vst.msk [vmem:[#allocation6 + $0xb8] sm:$0xf] %vm5540, %v5458
          %5588 = vst.msk [vmem:[#allocation6 + $0xbc] sm:$0xf] %vm5540, %v5459
          %5589 = vst.msk [vmem:[#allocation6 + $0xc0] sm:$0xf] %vm5540, %v5460
          %5590 = vst.msk [vmem:[#allocation6 + $0xc4] sm:$0xf] %vm5540, %v5461
          %5591 = vst.msk [vmem:[#allocation6 + $0xc8] sm:$0xf] %vm5540, %v5462
          %5592 = vst.msk [vmem:[#allocation6 + $0xcc] sm:$0xf] %vm5540, %v5463
          %5593 = vst.msk [vmem:[#allocation6 + $0xd0] sm:$0xf] %vm5540, %v5464
          %5594 = vst.msk [vmem:[#allocation6 + $0xd4] sm:$0xf] %vm5540, %v5465
          %5595 = vst.msk [vmem:[#allocation6 + $0xd8] sm:$0xf] %vm5540, %v5466
          %5596 = vst.msk [vmem:[#allocation6 + $0xdc] sm:$0xf] %vm5540, %v5467
          %5597 = vst.msk [vmem:[#allocation6 + $0xe0] sm:$0xf] %vm5540, %v5468
          %5598 = vst.msk [vmem:[#allocation6 + $0xe4] sm:$0xf] %vm5540, %v5469
          %5599 = vst.msk [vmem:[#allocation6 + $0xe8] sm:$0xf] %vm5540, %v5470
          %5600 = vst.msk [vmem:[#allocation6 + $0xec] sm:$0xf] %vm5540, %v5471
          %5601 = vst.msk [vmem:[#allocation6 + $0xf0] sm:$0xf] %vm5540, %v5472
          %5602 = vst.msk [vmem:[#allocation6 + $0xf4] sm:$0xf] %vm5540, %v5473
          %5603 = vst.msk [vmem:[#allocation6 + $0xf8] sm:$0xf] %vm5540, %v5474
          %5604 = vst.msk [vmem:[#allocation6 + $0xfc] sm:$0xf] %vm5540, %v5475
        $region68: #{_lambda_.1} parent=47 // pred_fallthru
          _
        // Predicated region
        $region69: #{_lambda_.1} parent=47 // pred_check
          %p5605 = pneg %p199
        $region70: #{_lambda_.1} parent=47 // pred_check_branch
          %5607 = sbr.rel (%p5605) target = $region72
        $region71: #{_lambda_.1} parent=47 // pred_region
          %s5609 = ssub.s32 4096, 4096
          %5610 = vsyncadd [#allocation7], %s5609
          %s5611 = sshll.u32 [#allocation6], 4
          %s5612 = int_to_ptr.vmem [resolvable:$true] %s5611
          %5617 = dma.vmem_to_hbm [thread:$0]  %s5612, 4096, %s7, [#allocation7], 64, 64, 4
        $region72: #{_lambda_.1} parent=47 // pred_fallthru
          _
        // Predicated region
        $region73: #{_lambda_.1} parent=47 // pred_check
          %p5618 = pneg %p199
        $region74: #{_lambda_.1} parent=47 // pred_check_branch
          %5620 = sbr.rel (%p5618) target = $region76
        $region75: #{_lambda_.1} parent=47 // pred_region
          %5621 = dma.done [#allocation7], 4096
        $region76: #{_lambda_.1} parent=47 // pred_fallthru
          _
      $region48: #{_lambda_.1} parent=5 // pred_fallthru
        _
      %p5622 = scmp.le.s32.totalorder 2, %s14
      // Predicated region
      $region77: #{_lambda_.1} parent=5 // pred_check
        %p5623 = pneg %p5622
      $region78: #{_lambda_.1} parent=5 // pred_check_branch
        %5625 = sbr.rel (%p5623) target = $region80
      $region79: #{_lambda_.1} parent=5 // pred_region
        %s5626 = ssub.s32 %s14, 2
      $region80: #{_lambda_.1} parent=5 // pred_fallthru
        _
    $region6: #{_lambda_.1} parent=1 // loop_footer
      %s18 = sadd.s32 1, %s14
    $region7: #{_lambda_.1} parent=1 // loop_footer_branch
      %13 = sbr.rel target = $region3
    $region8: #{_lambda_.1} parent=1 // loop_exit
      _
    %5627 = vsyncpa [#allocation7], 1
    %s5628 = scalar_lea.sflag [#allocation7], 1
    %5629 = vsyncpa %s5628, 1

</llo_original>
